<compile_context>
chip_gen: v7x
topology: tpu7x:2x2x1
jax: 0.10.0
libtpu: 0.0.40
codegen_flags: <defaults>
</compile_context>

<pallas_src>
import functools

import jax
import jax.numpy as jnp
from jax.experimental import pallas as pl
from jax.experimental.pallas import tpu as pltpu

EPS = 1e-5
LANE = 128


def _round_up(n, m):
    return ((n + m - 1) // m) * m


def _hw_config():
    """(tile_m cap, vmem_limit_bytes) — generation aware."""
    tile_cap, vmem_limit = 512, 48 * 1024 * 1024            # safe for v7x (64 MiB VMEM)
    try:
        info = pltpu.get_tpu_info()
        if getattr(info, "vmem_capacity_bytes", 0) >= 100 * 1024 * 1024:
            tile_cap, vmem_limit = 1024, 96 * 1024 * 1024    # v5e / v6e (128 MiB VMEM)
    except Exception:
        pass
    return tile_cap, vmem_limit


TILE_CAP, VMEM_LIMIT = _hw_config()


def _choose_tile_m(m):
    t = TILE_CAP
    while t > 8 and m < 2 * t:
        t //= 2
    return max(t, 8)


def _cparams():
    return pltpu.CompilerParams(dimension_semantics=("parallel",),
                                vmem_limit_bytes=VMEM_LIMIT)


# ----------------------------- Pallas kernels ------------------------------
def _mm_stats_kernel(x_ref, w_ref, z_ref, s_ref, q_ref):
    """im2col tile matmul (bf16 in, f32 acc) + per-tile BN partial stats; z stored bf16."""
    z = jnp.dot(x_ref[...], w_ref[...], preferred_element_type=jnp.float32)
    z_ref[...] = z.astype(z_ref.dtype)
    s_ref[...] = jnp.sum(z, axis=0, keepdims=True)
    q_ref[...] = jnp.sum(z * z, axis=0, keepdims=True)


def _halo_accumulate(x_ref, w_ref, m_out, wp, wo, offs, cp):
    """Sum of 9 shifted matmuls over the flattened, spatially padded activation."""
    acc = jnp.zeros((m_out, cp), jnp.float32)
    for d, k in enumerate(offs):
        lhs = x_ref[0, k:k + m_out, :]                       # static sublane-offset slice
        acc += jnp.dot(lhs, w_ref[d], preferred_element_type=jnp.float32)
    # Zero the (wp - wo) invalid "wide" columns so they don't pollute the BN stats.
    ridx = jax.lax.broadcasted_iota(jnp.int32, (m_out, cp), 0).astype(jnp.float32)
    col = ridx - jnp.floor(ridx / float(wp)) * float(wp)
    return jnp.where(col < float(wo), acc, 0.0)


def _halo_body(x_ref, w_ref, z_ref, s_ref, q_ref, *, offs, m_out, wp, wo):
    cp = z_ref.shape[-1]
    acc = _halo_accumulate(x_ref, w_ref, m_out, wp, wo, offs, cp)
    z_ref[0] = acc.astype(z_ref.dtype)
    s_ref[...] = jnp.sum(acc, axis=0, keepdims=True)
    q_ref[...] = jnp.sum(acc * acc, axis=0, keepdims=True)


def _halo_skip_body(x_ref, w_ref, xs_ref, ws_ref,
                    z_ref, zs_ref, s_ref, q_ref, ss_ref, qs_ref,
                    *, offs, m_out, wp, wo):
    cp = z_ref.shape[-1]
    acc = _halo_accumulate(x_ref, w_ref, m_out, wp, wo, offs, cp)
    z_ref[0] = acc.astype(z_ref.dtype)
    s_ref[...] = jnp.sum(acc, axis=0, keepdims=True)
    q_ref[...] = jnp.sum(acc * acc, axis=0, keepdims=True)
    # fused 1x1 projection skip (its wide layout has exact zeros in invalid columns)
    zs = jnp.dot(xs_ref[0], ws_ref[...], preferred_element_type=jnp.float32)
    zs_ref[0] = zs.astype(zs_ref.dtype)
    ss_ref[...] = jnp.sum(zs, axis=0, keepdims=True)
    qs_ref[...] = jnp.sum(zs * zs, axis=0, keepdims=True)


def _apply_kernel(z_ref, sc_ref, sh_ref, o_ref):
    y = z_ref[...].astype(jnp.float32) * sc_ref[...] + sh_ref[...]
    o_ref[...] = jnp.maximum(y, 0.0).astype(o_ref.dtype)


def _apply_skip_kernel(z_ref, sc_ref, sh_ref, skip_ref, o_ref):
    y = z_ref[...].astype(jnp.float32) * sc_ref[...] + sh_ref[...]
    o_ref[...] = jnp.maximum(y + skip_ref[...].astype(jnp.float32), 0.0).astype(o_ref.dtype)


def _apply_proj_kernel(z_ref, sc_ref, sh_ref, zs_ref, scs_ref, shs_ref, o_ref):
    y = z_ref[...].astype(jnp.float32) * sc_ref[...] + sh_ref[...]
    y = y + zs_ref[...].astype(jnp.float32) * scs_ref[...] + shs_ref[...]
    o_ref[...] = jnp.maximum(y, 0.0).astype(o_ref.dtype)


# --------------------------- pallas_call wrappers ---------------------------
def matmul_stats(xp, wmat, tile_m):
    m_pad, kp = xp.shape
    cp = wmat.shape[1]
    t = m_pad // tile_m
    return pl.pallas_call(
        _mm_stats_kernel,
        out_shape=(jax.ShapeDtypeStruct((m_pad, cp), jnp.bfloat16),
                   jax.ShapeDtypeStruct((1, t * cp), jnp.float32),
                   jax.ShapeDtypeStruct((1, t * cp), jnp.float32)),
        grid=(t,),
        in_specs=[pl.BlockSpec((tile_m, kp), lambda i: (i, 0)),
                  pl.BlockSpec((kp, cp), lambda i: (0, 0))],       # weight VMEM-resident
        out_specs=(pl.BlockSpec((tile_m, cp), lambda i: (i, 0)),
                   pl.BlockSpec((1, cp), lambda i: (0, i)),        # lane-dense partials
                   pl.BlockSpec((1, cp), lambda i: (0, i))),
        compiler_params=_cparams(),
    )(xp, wmat)


def halo_conv_stats(xf, w_taps, ho, wo, xs=None, ws=None):
    """3x3 stride-1 conv as 9 shifted matmuls, per-image grid, + BN partial stats."""
    n, l_in, ci = xf.shape
    cp = w_taps.shape[-1]
    wp = wo + 3
    m_out = ho * wp
    offs = tuple(dy * wp + dx for dy in range(3) for dx in range(3))

    stats = jax.ShapeDtypeStruct((1, n * cp), jnp.float32)
    vec_spec = pl.BlockSpec((1, cp), lambda b: (0, b))
    z_spec = pl.BlockSpec((1, m_out, cp), lambda b: (b, 0, 0))
    x_spec = pl.BlockSpec((1, l_in, ci), lambda b: (b, 0, 0))
    w_spec = pl.BlockSpec(w_taps.shape, lambda b: (0, 0, 0))        # taps resident

    if xs is None:
        kernel = functools.partial(_halo_body, offs=offs, m_out=m_out, wp=wp, wo=wo)
        return pl.pallas_call(
            kernel,
            out_shape=(jax.ShapeDtypeStruct((n, m_out, cp), jnp.bfloat16), stats, stats),
            grid=(n,),
            in_specs=[x_spec, w_spec],
            out_specs=(z_spec, vec_spec, vec_spec),
            compiler_params=_cparams(),
        )(xf, w_taps)

    cs = xs.shape[-1]
    kernel = functools.partial(_halo_skip_body, offs=offs, m_out=m_out, wp=wp, wo=wo)
    return pl.pallas_call(
        kernel,
        out_shape=(jax.ShapeDtypeStruct((n, m_out, cp), jnp.bfloat16),
                   jax.ShapeDtypeStruct((n, m_out, cp), jnp.bfloat16),
                   stats, stats, stats, stats),
        grid=(n,),
        in_specs=[x_spec, w_spec,
                  pl.BlockSpec((1, m_out, cs), lambda b: (b, 0, 0)),
                  pl.BlockSpec(ws.shape, lambda b: (0, 0))],
        out_specs=(z_spec, z_spec, vec_spec, vec_spec, vec_spec, vec_spec),
        compiler_params=_cparams(),
    )(xf, w_taps, xs, ws)


def apply_bn_act_2d(z, sc, sh, tile_m, out_dtype):
    m_pad, cp = z.shape
    row = pl.BlockSpec((tile_m, cp), lambda i: (i, 0))
    vec = pl.BlockSpec((1, cp), lambda i: (0, 0))
    return pl.pallas_call(
        _apply_kernel,
        out_shape=jax.ShapeDtypeStruct((m_pad, cp), out_dtype),
        grid=(m_pad // tile_m,),
        in_specs=[row, vec, vec],
        out_specs=row,
        compiler_params=_cparams(),
    )(z, sc, sh)


def apply_bn_act_3d(z, sc, sh, out_dtype, skip=None, zs=None, scs=None, shs=None):
    n, m_out, cp = z.shape
    row = pl.BlockSpec((1, m_out, cp), lambda b: (b, 0, 0))
    vec = pl.BlockSpec((1, 1, cp), lambda b: (0, 0, 0))
    if zs is not None:
        kernel, ops, ins = _apply_proj_kernel, (z, sc, sh, zs, scs, shs), \
            [row, vec, vec, row, vec, vec]
    elif skip is not None:
        kernel, ops, ins = _apply_skip_kernel, (z, sc, sh, skip), [row, vec, vec, row]
    else:
        kernel, ops, ins = _apply_kernel, (z, sc, sh), [row, vec, vec]
    return pl.pallas_call(
        kernel,
        out_shape=jax.ShapeDtypeStruct((n, m_out, cp), out_dtype),
        grid=(n,),
        in_specs=ins,
        out_specs=row,
        compiler_params=_cparams(),
    )(*ops)


# ------------------------------ JAX glue ------------------------------------
def _pad2d(a, rows, cols, dtype=None):
    out = jnp.pad(a, ((0, rows - a.shape[0]), (0, cols - a.shape[1])))
    return out.astype(dtype) if dtype is not None else out


def _prep_weight_taps(w_oihw, cp_in, cp_out):
    co, ci, kh, kw = w_oihw.shape
    w = jnp.transpose(w_oihw, (2, 3, 1, 0)).reshape(kh * kw, ci, co)
    return jnp.pad(w, ((0, 0), (0, cp_in - ci), (0, cp_out - co))).astype(jnp.bfloat16)


def _prep_weight_2d(w_oihw, kp, cp):
    co, ci, kh, kw = w_oihw.shape
    w = jnp.transpose(w_oihw, (2, 3, 1, 0)).reshape(kh * kw * ci, co)
    return _pad2d(w, kp, cp, jnp.bfloat16)


def _prep_vec(v, cp):
    return _pad2d(v.reshape(1, -1).astype(jnp.float32), 1, cp)


def _stats_total(s, cp):
    return s.reshape(-1, cp).sum(axis=0, keepdims=True)


def _bn_fold(s, q, m_true, gamma_p, beta_p):
    mean = s / float(m_true)
    var = q / float(m_true) - mean * mean          # biased (population) variance
    scale = gamma_p * jax.lax.rsqrt(var + EPS)
    shift = beta_p - mean * scale
    return scale, shift


def _halo_input(x_nhwc):
    """NHWC (channels already padded, bf16) -> spatially padded, flattened (n, L, c)."""
    n, h, w, c = x_nhwc.shape
    xp = jnp.pad(x_nhwc, ((0, 0), (1, 2), (1, 2), (0, 0)))
    return xp.reshape(n, (h + 3) * (w + 3), c)


def _wide_pad(x_nhwc, cp):
    """NHWC -> 'wide' row layout (n, h*(w+3), cp) bf16 with zero W / channel pad."""
    n, h, w, c = x_nhwc.shape
    xw = jnp.pad(x_nhwc.astype(jnp.bfloat16), ((0, 0), (0, 0), (0, 3), (0, cp - c)))
    return xw.reshape(n, h * (w + 3), cp)


def im2col(x_nhwc, ksize, stride, padding):
    n, h, w, c = x_nhwc.shape
    xp = jnp.pad(x_nhwc, ((0, 0), (padding, padding), (padding, padding), (0, 0)))
    ho = (h + 2 * padding - ksize) // stride + 1
    wo = (w + 2 * padding - ksize) // stride + 1
    cols = []
    for dy in range(ksize):
        for dx in range(ksize):
            cols.append(xp[:, dy:dy + (ho - 1) * stride + 1:stride,
                               dx:dx + (wo - 1) * stride + 1:stride, :])
    patches = jnp.concatenate(cols, axis=-1)
    return patches.reshape(n * ho * wo, ksize * ksize * c), ho, wo


def init_block_params(key, in_channels, out_channels, stride):
    ks = jax.random.split(key, 9)
    params = {
        "w1": 0.1 * jax.random.normal(ks[0], (out_channels, in_channels, 3, 3), jnp.float32),
        "g1": 1.0 + 0.1 * jax.random.normal(ks[1], (out_channels,), jnp.float32),
        "b1": 0.1 * jax.random.normal(ks[2], (out_channels,), jnp.float32),
        "w2": 0.1 * jax.random.normal(ks[3], (out_channels, out_channels, 3, 3), jnp.float32),
        "g2": 1.0 + 0.1 * jax.random.normal(ks[4], (out_channels,), jnp.float32),
        "b2": 0.1 * jax.random.normal(ks[5], (out_channels,), jnp.float32),
    }
    if stride != 1 or in_channels != out_channels:
        params["ws"] = 0.1 * jax.random.normal(ks[6], (out_channels, in_channels, 1, 1), jnp.float32)
        params["gs"] = 1.0 + 0.1 * jax.random.normal(ks[7], (out_channels,), jnp.float32)
        params["bs"] = 0.1 * jax.random.normal(ks[8], (out_channels,), jnp.float32)
    return params


def block_forward(params, x_nchw, stride):
    """ResNet basic Block forward (training-mode BN). Input/output are NCHW."""
    x = jnp.transpose(x_nchw, (0, 2, 3, 1)).astype(jnp.float32)    # NHWC
    n, h, w, cin = x.shape
    cout = params["w1"].shape[0]
    cp = _round_up(cout, LANE)
    ho = (h - 1) // stride + 1
    wo = (w - 1) // stride + 1
    m = n * ho * wo

    g1, b1 = _prep_vec(params["g1"], cp), _prep_vec(params["b1"], cp)

    # ---- conv1 (3x3, stride, pad 1) + bn1 + relu ----
    if stride == 1:
        ci1 = _round_up(cin, LANE)
        xb = jnp.pad(x.astype(jnp.bfloat16), ((0, 0), (0, 0), (0, 0), (0, ci1 - cin)))
        z1, s1, q1 = halo_conv_stats(_halo_input(xb),
                                     _prep_weight_taps(params["w1"], ci1, cp), ho, wo)
        sc1, sh1 = _bn_fold(_stats_total(s1, cp), _stats_total(q1, cp), m, g1, b1)
        y1w = apply_bn_act_3d(z1, sc1.reshape(1, 1, cp), sh1.reshape(1, 1, cp), jnp.bfloat16)
        y1 = y1w.reshape(n, ho, wo + 3, cp)[:, :, :wo, :]          # drop invalid wide cols
    else:
        p1, _, _ = im2col(x.astype(jnp.bfloat16), 3, stride, 1)    # bf16 before im2col
        kp = _round_up(p1.shape[1], LANE)
        tile_m = _choose_tile_m(m)
        m_pad = _round_up(m, tile_m)
        z1, s1, q1 = matmul_stats(_pad2d(p1, m_pad, kp),
                                  _prep_weight_2d(params["w1"], kp, cp), tile_m)
        sc1, sh1 = _bn_fold(_stats_total(s1, cp), _stats_total(q1, cp), m, g1, b1)
        y1 = apply_bn_act_2d(z1, sc1, sh1, tile_m, jnp.bfloat16)
        y1 = y1[:m].reshape(n, ho, wo, cp)

    # ---- conv2 (3x3, stride 1, pad 1) + bn2 [+ fused skip] + add + relu ----
    y1f = _halo_input(y1)                                          # bf16, cp channels
    w2 = _prep_weight_taps(params["w2"], cp, cp)
    g2, b2 = _prep_vec(params["g2"], cp), _prep_vec(params["b2"], cp)
    wp2 = wo + 3

    if "ws" in params:
        cs = _round_up(cin, LANE)
        xs = _wide_pad(x[:, ::stride, ::stride, :], cs)            # (n, ho*wp2, cs) bf16
        ws = jnp.pad(params["ws"][:, :, 0, 0].T,
                     ((0, cs - cin), (0, cp - cout))).astype(jnp.bfloat16)
        z2, zsk, s2, q2, ss, qs = halo_conv_stats(y1f, w2, ho, wo, xs=xs, ws=ws)
        sc2, sh2 = _bn_fold(_stats_total(s2, cp), _stats_total(q2, cp), m, g2, b2)
        scs, shs = _bn_fold(_stats_total(ss, cp), _stats_total(qs, cp), m,
                            _prep_vec(params["gs"], cp), _prep_vec(params["bs"], cp))
        outw = apply_bn_act_3d(z2, sc2.reshape(1, 1, cp), sh2.reshape(1, 1, cp),
                               jnp.float32, zs=zsk,
                               scs=scs.reshape(1, 1, cp), shs=shs.reshape(1, 1, cp))
    else:
        skip = _wide_pad(x, cp)                                    # identity skip, bf16
        z2, s2, q2 = halo_conv_stats(y1f, w2, ho, wo)
        sc2, sh2 = _bn_fold(_stats_total(s2, cp), _stats_total(q2, cp), m, g2, b2)
        outw = apply_bn_act_3d(z2, sc2.reshape(1, 1, cp), sh2.reshape(1, 1, cp),
                               jnp.float32, skip=skip)

    out = outw.reshape(n, ho, wp2, cp)[:, :, :wo, :cout]
    return jnp.transpose(out, (0, 3, 1, 2))                        # back to NCHW


# --------------- quantization-matched pure-JAX reference (check) ------------
def _ref_conv(x, w, stride, padding, dtype):
    return jax.lax.conv_general_dilated(
        x.astype(dtype), w.astype(dtype),
        window_strides=(stride, stride),
        padding=((padding, padding), (padding, padding)),
        dimension_numbers=("NCHW", "OIHW", "NCHW"),
        preferred_element_type=jnp.float32)


def _ref_bn(x, gamma, beta):
    mean = jnp.mean(x, axis=(0, 2, 3), keepdims=True)
    var = jnp.mean((x - mean) ** 2, axis=(0, 2, 3), keepdims=True)
    return (x - mean) * jax.lax.rsqrt(var + EPS) * gamma.reshape(1, -1, 1, 1) \
        + beta.reshape(1, -1, 1, 1)


def _ref_block(params, x, stride, dtype=jnp.bfloat16):
    out = jnp.maximum(_ref_bn(_ref_conv(x, params["w1"], stride, 1, dtype),
                              params["g1"], params["b1"]), 0.0)
    out = _ref_bn(_ref_conv(out, params["w2"], 1, 1, dtype), params["g2"], params["b2"])
    if "ws" in params:
        skip = _ref_bn(_ref_conv(x, params["ws"], stride, 0, dtype),
                       params["gs"], params["bs"])
    else:
        skip = x
    return jnp.maximum(out + skip, 0.0)


# --------------------------------- main --------------------------------------
if __name__ == "__main__":
    key = jax.random.PRNGKey(0)
    k_x1, k_p1, k_x2, k_p2 = jax.random.split(key, 4)

    # Case 1: projection skip (stride 2, 4 -> 8 channels): im2col conv1 + halo conv2.
    n, cin, h, w = 2, 4, 16, 16
    cout, stride = 8, 2
    x1 = jax.random.normal(k_x1, (n, cin, h, w), jnp.float32)
    params1 = init_block_params(k_p1, cin, cout, stride)
    fwd1 = jax.jit(functools.partial(block_forward, stride=stride))
    out1 = jax.block_until_ready(fwd1(params1, x1))
    ref1 = jax.block_until_ready(_ref_block(params1, x1, stride))
    assert out1.shape == ref1.shape == (n, cout, h // stride, w // stride)
    assert jnp.allclose(out1, ref1, rtol=2e-2, atol=2e-2), "projection-skip mismatch"

    # Case 2: identity skip (stride 1, 8 -> 8 channels): halo conv for both convs.
    c2 = 8
    x2 = jax.random.normal(k_x2, (n, c2, h, w), jnp.float32)
    params2 = init_block_params(k_p2, c2, c2, 1)
    fwd2 = jax.jit(functools.partial(block_forward, stride=1))
    out2 = jax.block_until_ready(fwd2(params2, x2))
    ref2 = jax.block_until_ready(_ref_block(params2, x2, 1))
    assert out2.shape == ref2.shape == (n, c2, h, w)
    assert jnp.allclose(out2, ref2, rtol=2e-2, atol=2e-2), "identity-skip mismatch"

    print("KERNEL_OK")
</pallas_src>

<mosaic_0001>
module attributes {stable_mosaic.version = 11 : i64} {
  func.func @_mm_stats_kernel(%arg0: i32, %arg1: memref<64x128xbf16, #tpu.memory_space<vmem>>, %arg2: memref<128x128xbf16, #tpu.memory_space<vmem>>, %arg3: memref<64x128xbf16, #tpu.memory_space<vmem>>, %arg4: memref<1x128xf32, #tpu.memory_space<vmem>>, %arg5: memref<1x128xf32, #tpu.memory_space<vmem>>) attributes {dimension_semantics = [#tpu.dimension_semantics<parallel>], iteration_bounds = array<i64: 2>, scalar_prefetch = 0 : i64, scratch_operands = 0 : i64, tpu.core_type = #tpu.core_type<tc>, window_params = [{transform_indices = @transform_0, window_bounds = array<i64: 64, 128>}, {pipeline_mode = #tpu.pipeline_mode<synchronous>, transform_indices = @transform_1, window_bounds = array<i64: 128, 128>}, {transform_indices = @transform_2, window_bounds = array<i64: 64, 128>}, {transform_indices = @transform_3, window_bounds = array<i64: 1, 128>}, {transform_indices = @transform_4, window_bounds = array<i64: 1, 128>}]} {
    %c0 = arith.constant 0 : index
    %c0_0 = arith.constant 0 : index
    %0 = vector.load %arg1[%c0, %c0_0] : memref<64x128xbf16, #tpu.memory_space<vmem>>, vector<64x128xbf16>
    %c0_1 = arith.constant 0 : index
    %c0_2 = arith.constant 0 : index
    %1 = vector.load %arg2[%c0_1, %c0_2] : memref<128x128xbf16, #tpu.memory_space<vmem>>, vector<128x128xbf16>
    %cst = arith.constant dense<0.000000e+00> : vector<64x128xf32>
    %2 = tpu.matmul %0, %1, %cst {dimension_numbers = #tpu.dot_dimension_numbers<[1], [0], [0], [1], [0, 0, 1, 1], [], []>} : vector<64x128xbf16>, vector<128x128xbf16>, vector<64x128xf32> -> vector<64x128xf32>
    %3 = arith.truncf %2 : vector<64x128xf32> to vector<64x128xbf16>
    %c0_3 = arith.constant 0 : index
    %c0_4 = arith.constant 0 : index
    %4 = vector.load %arg3[%c0_3, %c0_4] : memref<64x128xbf16, #tpu.memory_space<vmem>>, vector<64x128xbf16>
    tpu.vector_store %arg3[%c0_3, %c0_4], %3 {strides = array<i32>} : memref<64x128xbf16, #tpu.memory_space<vmem>>, vector<64x128xbf16>,
    %cst_5 = arith.constant dense<0.000000e+00> : vector<128xf32>
    %5 = vector.multi_reduction <add>, %2, %cst_5 [0] : vector<64x128xf32> to vector<128xf32>
    %6 = vector.shape_cast %5 : vector<128xf32> to vector<1x128xf32>
    %c0_6 = arith.constant 0 : index
    %c0_7 = arith.constant 0 : index
    %7 = vector.load %arg4[%c0_6, %c0_7] : memref<1x128xf32, #tpu.memory_space<vmem>>, vector<1x128xf32>
    tpu.vector_store %arg4[%c0_6, %c0_7], %6 {strides = array<i32>} : memref<1x128xf32, #tpu.memory_space<vmem>>, vector<1x128xf32>,
    %8 = arith.mulf %2, %2 : vector<64x128xf32>
    %cst_8 = arith.constant dense<0.000000e+00> : vector<128xf32>
    %9 = vector.multi_reduction <add>, %8, %cst_8 [0] : vector<64x128xf32> to vector<128xf32>
    %10 = vector.shape_cast %9 : vector<128xf32> to vector<1x128xf32>
    %c0_9 = arith.constant 0 : index
    %c0_10 = arith.constant 0 : index
    %11 = vector.load %arg5[%c0_9, %c0_10] : memref<1x128xf32, #tpu.memory_space<vmem>>, vector<1x128xf32>
    tpu.vector_store %arg5[%c0_9, %c0_10], %10 {strides = array<i32>} : memref<1x128xf32, #tpu.memory_space<vmem>>, vector<1x128xf32>,
    return
  }
  func.func @transform_0(%arg0: i32) -> (i32, i32) {
    %c0_i32 = arith.constant 0 : i32
    %c0_i32_0 = arith.constant 0 : i32
    return %arg0, %c0_i32 : i32, i32
  }
  func.func @transform_1(%arg0: i32) -> (i32, i32) {
    %c0_i32 = arith.constant 0 : i32
    %c0_i32_0 = arith.constant 0 : i32
    %c0_i32_1 = arith.constant 0 : i32
    return %c0_i32, %c0_i32_0 : i32, i32
  }
  func.func @transform_2(%arg0: i32) -> (i32, i32) {
    %c0_i32 = arith.constant 0 : i32
    %c0_i32_0 = arith.constant 0 : i32
    return %arg0, %c0_i32 : i32, i32
  }
  func.func @transform_3(%arg0: i32) -> (i32, i32) {
    %c0_i32 = arith.constant 0 : i32
    %c0_i32_0 = arith.constant 0 : i32
    return %c0_i32, %arg0 : i32, i32
  }
  func.func @transform_4(%arg0: i32) -> (i32, i32) {
    %c0_i32 = arith.constant 0 : i32
    %c0_i32_0 = arith.constant 0 : i32
    return %c0_i32, %arg0 : i32, i32
  }
}

module attributes {stable_mosaic.version = 11 : i64} {
  func.func @_apply_kernel(%arg0: i32, %arg1: memref<64x128xbf16, #tpu.memory_space<vmem>>, %arg2: memref<1x128xf32, #tpu.memory_space<vmem>>, %arg3: memref<1x128xf32, #tpu.memory_space<vmem>>, %arg4: memref<64x128xbf16, #tpu.memory_space<vmem>>) attributes {dimension_semantics = [#tpu.dimension_semantics<parallel>], iteration_bounds = array<i64: 2>, scalar_prefetch = 0 : i64, scratch_operands = 0 : i64, tpu.core_type = #tpu.core_type<tc>, window_params = [{transform_indices = @transform_0, window_bounds = array<i64: 64, 128>}, {pipeline_mode = #tpu.pipeline_mode<synchronous>, transform_indices = @transform_1, window_bounds = array<i64: 1, 128>}, {pipeline_mode = #tpu.pipeline_mode<synchronous>, transform_indices = @transform_2, window_bounds = array<i64: 1, 128>}, {transform_indices = @transform_3, window_bounds = array<i64: 64, 128>}]} {
    %c0 = arith.constant 0 : index
    %c0_0 = arith.constant 0 : index
    %0 = vector.load %arg1[%c0, %c0_0] : memref<64x128xbf16, #tpu.memory_space<vmem>>, vector<64x128xbf16>
    %1 = arith.extf %0 : vector<64x128xbf16> to vector<64x128xf32>
    %c0_1 = arith.constant 0 : index
    %c0_2 = arith.constant 0 : index
    %2 = vector.load %arg2[%c0_1, %c0_2] : memref<1x128xf32, #tpu.memory_space<vmem>>, vector<1x128xf32>
    %3 = vector.broadcast %2 : vector<1x128xf32> to vector<64x128xf32>
    %4 = arith.mulf %1, %3 : vector<64x128xf32>
    %c0_3 = arith.constant 0 : index
    %c0_4 = arith.constant 0 : index
    %5 = vector.load %arg3[%c0_3, %c0_4] : memref<1x128xf32, #tpu.memory_space<vmem>>, vector<1x128xf32>
    %6 = vector.broadcast %5 : vector<1x128xf32> to vector<64x128xf32>
    %7 = arith.addf %4, %6 : vector<64x128xf32>
    %cst = arith.constant 0.000000e+00 : f32
    %8 = vector.broadcast %cst : f32 to vector<64x128xf32>
    %9 = arith.maximumf %7, %8 : vector<64x128xf32>
    %10 = arith.truncf %9 : vector<64x128xf32> to vector<64x128xbf16>
    %c0_5 = arith.constant 0 : index
    %c0_6 = arith.constant 0 : index
    %11 = vector.load %arg4[%c0_5, %c0_6] : memref<64x128xbf16, #tpu.memory_space<vmem>>, vector<64x128xbf16>
    tpu.vector_store %arg4[%c0_5, %c0_6], %10 {strides = array<i32>} : memref<64x128xbf16, #tpu.memory_space<vmem>>, vector<64x128xbf16>,
    return
  }
  func.func @transform_0(%arg0: i32) -> (i32, i32) {
    %c0_i32 = arith.constant 0 : i32
    %c0_i32_0 = arith.constant 0 : i32
    return %arg0, %c0_i32 : i32, i32
  }
  func.func @transform_1(%arg0: i32) -> (i32, i32) {
    %c0_i32 = arith.constant 0 : i32
    %c0_i32_0 = arith.constant 0 : i32
    %c0_i32_1 = arith.constant 0 : i32
    return %c0_i32, %c0_i32_0 : i32, i32
  }
  func.func @transform_2(%arg0: i32) -> (i32, i32) {
    %c0_i32 = arith.constant 0 : i32
    %c0_i32_0 = arith.constant 0 : i32
    %c0_i32_1 = arith.constant 0 : i32
    return %c0_i32, %c0_i32_0 : i32, i32
  }
  func.func @transform_3(%arg0: i32) -> (i32, i32) {
    %c0_i32 = arith.constant 0 : i32
    %c0_i32_0 = arith.constant 0 : i32
    return %arg0, %c0_i32 : i32, i32
  }
}

module attributes {stable_mosaic.version = 11 : i64} {
  func.func @_apply_proj_kernel(%arg0: i32, %arg1: memref<1x88x128xbf16, #tpu.memory_space<vmem>>, %arg2: memref<1x1x128xf32, #tpu.memory_space<vmem>>, %arg3: memref<1x1x128xf32, #tpu.memory_space<vmem>>, %arg4: memref<1x88x128xbf16, #tpu.memory_space<vmem>>, %arg5: memref<1x1x128xf32, #tpu.memory_space<vmem>>, %arg6: memref<1x1x128xf32, #tpu.memory_space<vmem>>, %arg7: memref<1x88x128xf32, #tpu.memory_space<vmem>>) attributes {dimension_semantics = [#tpu.dimension_semantics<parallel>], iteration_bounds = array<i64: 2>, scalar_prefetch = 0 : i64, scratch_operands = 0 : i64, tpu.core_type = #tpu.core_type<tc>, window_params = [{transform_indices = @transform_0, window_bounds = array<i64: 1, 88, 128>}, {pipeline_mode = #tpu.pipeline_mode<synchronous>, transform_indices = @transform_1, window_bounds = array<i64: 1, 1, 128>}, {pipeline_mode = #tpu.pipeline_mode<synchronous>, transform_indices = @transform_2, window_bounds = array<i64: 1, 1, 128>}, {transform_indices = @transform_3, window_bounds = array<i64: 1, 88, 128>}, {pipeline_mode = #tpu.pipeline_mode<synchronous>, transform_indices = @transform_4, window_bounds = array<i64: 1, 1, 128>}, {pipeline_mode = #tpu.pipeline_mode<synchronous>, transform_indices = @transform_5, window_bounds = array<i64: 1, 1, 128>}, {transform_indices = @transform_6, window_bounds = array<i64: 1, 88, 128>}]} {
    %c0 = arith.constant 0 : index
    %c0_0 = arith.constant 0 : index
    %c0_1 = arith.constant 0 : index
    %0 = vector.load %arg1[%c0, %c0_0, %c0_1] : memref<1x88x128xbf16, #tpu.memory_space<vmem>>, vector<1x88x128xbf16>
    %1 = arith.extf %0 : vector<1x88x128xbf16> to vector<1x88x128xf32>
    %c0_2 = arith.constant 0 : index
    %c0_3 = arith.constant 0 : index
    %c0_4 = arith.constant 0 : index
    %2 = vector.load %arg2[%c0_2, %c0_3, %c0_4] : memref<1x1x128xf32, #tpu.memory_space<vmem>>, vector<1x1x128xf32>
    %3 = vector.broadcast %2 : vector<1x1x128xf32> to vector<1x88x128xf32>
    %4 = arith.mulf %1, %3 : vector<1x88x128xf32>
    %c0_5 = arith.constant 0 : index
    %c0_6 = arith.constant 0 : index
    %c0_7 = arith.constant 0 : index
    %5 = vector.load %arg3[%c0_5, %c0_6, %c0_7] : memref<1x1x128xf32, #tpu.memory_space<vmem>>, vector<1x1x128xf32>
    %6 = vector.broadcast %5 : vector<1x1x128xf32> to vector<1x88x128xf32>
    %7 = arith.addf %4, %6 : vector<1x88x128xf32>
    %c0_8 = arith.constant 0 : index
    %c0_9 = arith.constant 0 : index
    %c0_10 = arith.constant 0 : index
    %8 = vector.load %arg4[%c0_8, %c0_9, %c0_10] : memref<1x88x128xbf16, #tpu.memory_space<vmem>>, vector<1x88x128xbf16>
    %9 = arith.extf %8 : vector<1x88x128xbf16> to vector<1x88x128xf32>
    %c0_11 = arith.constant 0 : index
    %c0_12 = arith.constant 0 : index
    %c0_13 = arith.constant 0 : index
    %10 = vector.load %arg5[%c0_11, %c0_12, %c0_13] : memref<1x1x128xf32, #tpu.memory_space<vmem>>, vector<1x1x128xf32>
    %11 = vector.broadcast %10 : vector<1x1x128xf32> to vector<1x88x128xf32>
    %12 = arith.mulf %9, %11 : vector<1x88x128xf32>
    %13 = arith.addf %7, %12 : vector<1x88x128xf32>
    %c0_14 = arith.constant 0 : index
    %c0_15 = arith.constant 0 : index
    %c0_16 = arith.constant 0 : index
    %14 = vector.load %arg6[%c0_14, %c0_15, %c0_16] : memref<1x1x128xf32, #tpu.memory_space<vmem>>, vector<1x1x128xf32>
    %15 = vector.broadcast %14 : vector<1x1x128xf32> to vector<1x88x128xf32>
    %16 = arith.addf %13, %15 : vector<1x88x128xf32>
    %cst = arith.constant 0.000000e+00 : f32
    %17 = vector.broadcast %cst : f32 to vector<1x88x128xf32>
    %18 = arith.maximumf %16, %17 : vector<1x88x128xf32>
    %c0_17 = arith.constant 0 : index
    %c0_18 = arith.constant 0 : index
    %c0_19 = arith.constant 0 : index
    %19 = vector.load %arg7[%c0_17, %c0_18, %c0_19] : memref<1x88x128xf32, #tpu.memory_space<vmem>>, vector<1x88x128xf32>
    tpu.vector_store %arg7[%c0_17, %c0_18, %c0_19], %18 {strides = array<i32>} : memref<1x88x128xf32, #tpu.memory_space<vmem>>, vector<1x88x128xf32>,
    return
  }
  func.func @transform_0(%arg0: i32) -> (i32, i32, i32) {
    %c0_i32 = arith.constant 0 : i32
    %c0_i32_0 = arith.constant 0 : i32
    %c0_i32_1 = arith.constant 0 : i32
    return %arg0, %c0_i32, %c0_i32_0 : i32, i32, i32
  }
  func.func @transform_1(%arg0: i32) -> (i32, i32, i32) {
    %c0_i32 = arith.constant 0 : i32
    %c0_i32_0 = arith.constant 0 : i32
    %c0_i32_1 = arith.constant 0 : i32
    %c0_i32_2 = arith.constant 0 : i32
    return %c0_i32, %c0_i32_0, %c0_i32_1 : i32, i32, i32
  }
  func.func @transform_2(%arg0: i32) -> (i32, i32, i32) {
    %c0_i32 = arith.constant 0 : i32
    %c0_i32_0 = arith.constant 0 : i32
    %c0_i32_1 = arith.constant 0 : i32
    %c0_i32_2 = arith.constant 0 : i32
    return %c0_i32, %c0_i32_0, %c0_i32_1 : i32, i32, i32
  }
  func.func @transform_3(%arg0: i32) -> (i32, i32, i32) {
    %c0_i32 = arith.constant 0 : i32
    %c0_i32_0 = arith.constant 0 : i32
    %c0_i32_1 = arith.constant 0 : i32
    return %arg0, %c0_i32, %c0_i32_0 : i32, i32, i32
  }
  func.func @transform_4(%arg0: i32) -> (i32, i32, i32) {
    %c0_i32 = arith.constant 0 : i32
    %c0_i32_0 = arith.constant 0 : i32
    %c0_i32_1 = arith.constant 0 : i32
    %c0_i32_2 = arith.constant 0 : i32
    return %c0_i32, %c0_i32_0, %c0_i32_1 : i32, i32, i32
  }
  func.func @transform_5(%arg0: i32) -> (i32, i32, i32) {
    %c0_i32 = arith.constant 0 : i32
    %c0_i32_0 = arith.constant 0 : i32
    %c0_i32_1 = arith.constant 0 : i32
    %c0_i32_2 = arith.constant 0 : i32
    return %c0_i32, %c0_i32_0, %c0_i32_1 : i32, i32, i32
  }
  func.func @transform_6(%arg0: i32) -> (i32, i32, i32) {
    %c0_i32 = arith.constant 0 : i32
    %c0_i32_0 = arith.constant 0 : i32
    %c0_i32_1 = arith.constant 0 : i32
    return %arg0, %c0_i32, %c0_i32_0 : i32, i32, i32
  }
}

module attributes {stable_mosaic.version = 11 : i64} {
  func.func @_halo_skip_body(%arg0: i32, %arg1: memref<1x121x128xbf16, #tpu.memory_space<vmem>>, %arg2: memref<9x128x128xbf16, #tpu.memory_space<vmem>>, %arg3: memref<1x88x128xbf16, #tpu.memory_space<vmem>>, %arg4: memref<128x128xbf16, #tpu.memory_space<vmem>>, %arg5: memref<1x88x128xbf16, #tpu.memory_space<vmem>>, %arg6: memref<1x88x128xbf16, #tpu.memory_space<vmem>>, %arg7: memref<1x128xf32, #tpu.memory_space<vmem>>, %arg8: memref<1x128xf32, #tpu.memory_space<vmem>>, %arg9: memref<1x128xf32, #tpu.memory_space<vmem>>, %arg10: memref<1x128xf32, #tpu.memory_space<vmem>>) attributes {dimension_semantics = [#tpu.dimension_semantics<parallel>], iteration_bounds = array<i64: 2>, scalar_prefetch = 0 : i64, scratch_operands = 0 : i64, tpu.core_type = #tpu.core_type<tc>, window_params = [{transform_indices = @transform_0, window_bounds = array<i64: 1, 121, 128>}, {pipeline_mode = #tpu.pipeline_mode<synchronous>, transform_indices = @transform_1, window_bounds = array<i64: 9, 128, 128>}, {transform_indices = @transform_2, window_bounds = array<i64: 1, 88, 128>}, {pipeline_mode = #tpu.pipeline_mode<synchronous>, transform_indices = @transform_3, window_bounds = array<i64: 128, 128>}, {transform_indices = @transform_4, window_bounds = array<i64: 1, 88, 128>}, {transform_indices = @transform_5, window_bounds = array<i64: 1, 88, 128>}, {transform_indices = @transform_6, window_bounds = array<i64: 1, 128>}, {transform_indices = @transform_7, window_bounds = array<i64: 1, 128>}, {transform_indices = @transform_8, window_bounds = array<i64: 1, 128>}, {transform_indices = @transform_9, window_bounds = array<i64: 1, 128>}]} {
    %cst = arith.constant 0.000000e+00 : f32
    %0 = vector.broadcast %cst : f32 to vector<88x128xf32>
    %c0 = arith.constant 0 : index
    %c0_0 = arith.constant 0 : index
    %c0_1 = arith.constant 0 : index
    %1 = vector.load %arg1[%c0, %c0_0, %c0_1] : memref<1x121x128xbf16, #tpu.memory_space<vmem>>, vector<1x88x128xbf16>
    %2 = vector.shape_cast %1 : vector<1x88x128xbf16> to vector<88x128xbf16>
    %c0_2 = arith.constant 0 : index
    %c0_3 = arith.constant 0 : index
    %c0_4 = arith.constant 0 : index
    %3 = vector.load %arg2[%c0_2, %c0_3, %c0_4] : memref<9x128x128xbf16, #tpu.memory_space<vmem>>, vector<1x128x128xbf16>
    %4 = vector.shape_cast %3 : vector<1x128x128xbf16> to vector<128x128xbf16>
    %cst_5 = arith.constant dense<0.000000e+00> : vector<88x128xf32>
    %5 = tpu.matmul %2, %4, %cst_5 {dimension_numbers = #tpu.dot_dimension_numbers<[1], [0], [0], [1], [0, 0, 1, 1], [], []>} : vector<88x128xbf16>, vector<128x128xbf16>, vector<88x128xf32> -> vector<88x128xf32>
    %6 = arith.addf %0, %5 : vector<88x128xf32>
    %c0_6 = arith.constant 0 : index
    %c1 = arith.constant 1 : index
    %c0_7 = arith.constant 0 : index
    %7 = vector.load %arg1[%c0_6, %c1, %c0_7] : memref<1x121x128xbf16, #tpu.memory_space<vmem>>, vector<1x88x128xbf16>
    %8 = vector.shape_cast %7 : vector<1x88x128xbf16> to vector<88x128xbf16>
    %c1_8 = arith.constant 1 : index
    %c0_9 = arith.constant 0 : index
    %c0_10 = arith.constant 0 : index
    %9 = vector.load %arg2[%c1_8, %c0_9, %c0_10] : memref<9x128x128xbf16, #tpu.memory_space<vmem>>, vector<1x128x128xbf16>
    %10 = vector.shape_cast %9 : vector<1x128x128xbf16> to vector<128x128xbf16>
    %cst_11 = arith.constant dense<0.000000e+00> : vector<88x128xf32>
    %11 = tpu.matmul %8, %10, %cst_11 {dimension_numbers = #tpu.dot_dimension_numbers<[1], [0], [0], [1], [0, 0, 1, 1], [], []>} : vector<88x128xbf16>, vector<128x128xbf16>, vector<88x128xf32> -> vector<88x128xf32>
    %12 = arith.addf %6, %11 : vector<88x128xf32>
    %c0_12 = arith.constant 0 : index
    %c2 = arith.constant 2 : index
    %c0_13 = arith.constant 0 : index
    %13 = vector.load %arg1[%c0_12, %c2, %c0_13] : memref<1x121x128xbf16, #tpu.memory_space<vmem>>, vector<1x88x128xbf16>
    %14 = vector.shape_cast %13 : vector<1x88x128xbf16> to vector<88x128xbf16>
    %c2_14 = arith.constant 2 : index
    %c0_15 = arith.constant 0 : index
    %c0_16 = arith.constant 0 : index
    %15 = vector.load %arg2[%c2_14, %c0_15, %c0_16] : memref<9x128x128xbf16, #tpu.memory_space<vmem>>, vector<1x128x128xbf16>
    %16 = vector.shape_cast %15 : vector<1x128x128xbf16> to vector<128x128xbf16>
    %cst_17 = arith.constant dense<0.000000e+00> : vector<88x128xf32>
    %17 = tpu.matmul %14, %16, %cst_17 {dimension_numbers = #tpu.dot_dimension_numbers<[1], [0], [0], [1], [0, 0, 1, 1], [], []>} : vector<88x128xbf16>, vector<128x128xbf16>, vector<88x128xf32> -> vector<88x128xf32>
    %18 = arith.addf %12, %17 : vector<88x128xf32>
    %c0_18 = arith.constant 0 : index
    %c11 = arith.constant 11 : index
    %c0_19 = arith.constant 0 : index
    %19 = vector.load %arg1[%c0_18, %c11, %c0_19] : memref<1x121x128xbf16, #tpu.memory_space<vmem>>, vector<1x88x128xbf16>
    %20 = vector.shape_cast %19 : vector<1x88x128xbf16> to vector<88x128xbf16>
    %c3 = arith.constant 3 : index
    %c0_20 = arith.constant 0 : index
    %c0_21 = arith.constant 0 : index
    %21 = vector.load %arg2[%c3, %c0_20, %c0_21] : memref<9x128x128xbf16, #tpu.memory_space<vmem>>, vector<1x128x128xbf16>
    %22 = vector.shape_cast %21 : vector<1x128x128xbf16> to vector<128x128xbf16>
    %cst_22 = arith.constant dense<0.000000e+00> : vector<88x128xf32>
    %23 = tpu.matmul %20, %22, %cst_22 {dimension_numbers = #tpu.dot_dimension_numbers<[1], [0], [0], [1], [0, 0, 1, 1], [], []>} : vector<88x128xbf16>, vector<128x128xbf16>, vector<88x128xf32> -> vector<88x128xf32>
    %24 = arith.addf %18, %23 : vector<88x128xf32>
    %c0_23 = arith.constant 0 : index
    %c12 = arith.constant 12 : index
    %c0_24 = arith.constant 0 : index
    %25 = vector.load %arg1[%c0_23, %c12, %c0_24] : memref<1x121x128xbf16, #tpu.memory_space<vmem>>, vector<1x88x128xbf16>
    %26 = vector.shape_cast %25 : vector<1x88x128xbf16> to vector<88x128xbf16>
    %c4 = arith.constant 4 : index
    %c0_25 = arith.constant 0 : index
    %c0_26 = arith.constant 0 : index
    %27 = vector.load %arg2[%c4, %c0_25, %c0_26] : memref<9x128x128xbf16, #tpu.memory_space<vmem>>, vector<1x128x128xbf16>
    %28 = vector.shape_cast %27 : vector<1x128x128xbf16> to vector<128x128xbf16>
    %cst_27 = arith.constant dense<0.000000e+00> : vector<88x128xf32>
    %29 = tpu.matmul %26, %28, %cst_27 {dimension_numbers = #tpu.dot_dimension_numbers<[1], [0], [0], [1], [0, 0, 1, 1], [], []>} : vector<88x128xbf16>, vector<128x128xbf16>, vector<88x128xf32> -> vector<88x128xf32>
    %30 = arith.addf %24, %29 : vector<88x128xf32>
    %c0_28 = arith.constant 0 : index
    %c13 = arith.constant 13 : index
    %c0_29 = arith.constant 0 : index
    %31 = vector.load %arg1[%c0_28, %c13, %c0_29] : memref<1x121x128xbf16, #tpu.memory_space<vmem>>, vector<1x88x128xbf16>
    %32 = vector.shape_cast %31 : vector<1x88x128xbf16> to vector<88x128xbf16>
    %c5 = arith.constant 5 : index
    %c0_30 = arith.constant 0 : index
    %c0_31 = arith.constant 0 : index
    %33 = vector.load %arg2[%c5, %c0_30, %c0_31] : memref<9x128x128xbf16, #tpu.memory_space<vmem>>, vector<1x128x128xbf16>
    %34 = vector.shape_cast %33 : vector<1x128x128xbf16> to vector<128x128xbf16>
    %cst_32 = arith.constant dense<0.000000e+00> : vector<88x128xf32>
    %35 = tpu.matmul %32, %34, %cst_32 {dimension_numbers = #tpu.dot_dimension_numbers<[1], [0], [0], [1], [0, 0, 1, 1], [], []>} : vector<88x128xbf16>, vector<128x128xbf16>, vector<88x128xf32> -> vector<88x128xf32>
    %36 = arith.addf %30, %35 : vector<88x128xf32>
    %c0_33 = arith.constant 0 : index
    %c22 = arith.constant 22 : index
    %c0_34 = arith.constant 0 : index
    %37 = vector.load %arg1[%c0_33, %c22, %c0_34] : memref<1x121x128xbf16, #tpu.memory_space<vmem>>, vector<1x88x128xbf16>
    %38 = vector.shape_cast %37 : vector<1x88x128xbf16> to vector<88x128xbf16>
    %c6 = arith.constant 6 : index
    %c0_35 = arith.constant 0 : index
    %c0_36 = arith.constant 0 : index
    %39 = vector.load %arg2[%c6, %c0_35, %c0_36] : memref<9x128x128xbf16, #tpu.memory_space<vmem>>, vector<1x128x128xbf16>
    %40 = vector.shape_cast %39 : vector<1x128x128xbf16> to vector<128x128xbf16>
    %cst_37 = arith.constant dense<0.000000e+00> : vector<88x128xf32>
    %41 = tpu.matmul %38, %40, %cst_37 {dimension_numbers = #tpu.dot_dimension_numbers<[1], [0], [0], [1], [0, 0, 1, 1], [], []>} : vector<88x128xbf16>, vector<128x128xbf16>, vector<88x128xf32> -> vector<88x128xf32>
    %42 = arith.addf %36, %41 : vector<88x128xf32>
    %c0_38 = arith.constant 0 : index
    %c23 = arith.constant 23 : index
    %c0_39 = arith.constant 0 : index
    %43 = vector.load %arg1[%c0_38, %c23, %c0_39] : memref<1x121x128xbf16, #tpu.memory_space<vmem>>, vector<1x88x128xbf16>
    %44 = vector.shape_cast %43 : vector<1x88x128xbf16> to vector<88x128xbf16>
    %c7 = arith.constant 7 : index
    %c0_40 = arith.constant 0 : index
    %c0_41 = arith.constant 0 : index
    %45 = vector.load %arg2[%c7, %c0_40, %c0_41] : memref<9x128x128xbf16, #tpu.memory_space<vmem>>, vector<1x128x128xbf16>
    %46 = vector.shape_cast %45 : vector<1x128x128xbf16> to vector<128x128xbf16>
    %cst_42 = arith.constant dense<0.000000e+00> : vector<88x128xf32>
    %47 = tpu.matmul %44, %46, %cst_42 {dimension_numbers = #tpu.dot_dimension_numbers<[1], [0], [0], [1], [0, 0, 1, 1], [], []>} : vector<88x128xbf16>, vector<128x128xbf16>, vector<88x128xf32> -> vector<88x128xf32>
    %48 = arith.addf %42, %47 : vector<88x128xf32>
    %c0_43 = arith.constant 0 : index
    %c24 = arith.constant 24 : index
    %c0_44 = arith.constant 0 : index
    %49 = vector.load %arg1[%c0_43, %c24, %c0_44] : memref<1x121x128xbf16, #tpu.memory_space<vmem>>, vector<1x88x128xbf16>
    %50 = vector.shape_cast %49 : vector<1x88x128xbf16> to vector<88x128xbf16>
    %c8 = arith.constant 8 : index
    %c0_45 = arith.constant 0 : index
    %c0_46 = arith.constant 0 : index
    %51 = vector.load %arg2[%c8, %c0_45, %c0_46] : memref<9x128x128xbf16, #tpu.memory_space<vmem>>, vector<1x128x128xbf16>
    %52 = vector.shape_cast %51 : vector<1x128x128xbf16> to vector<128x128xbf16>
    %cst_47 = arith.constant dense<0.000000e+00> : vector<88x128xf32>
    %53 = tpu.matmul %50, %52, %cst_47 {dimension_numbers = #tpu.dot_dimension_numbers<[1], [0], [0], [1], [0, 0, 1, 1], [], []>} : vector<88x128xbf16>, vector<128x128xbf16>, vector<88x128xf32> -> vector<88x128xf32>
    %54 = arith.addf %48, %53 : vector<88x128xf32>
    %55 = tpu.iota {dimensions = array<i32: 0>} : vector<88x128xi32>
    %56 = arith.sitofp %55 : vector<88x128xi32> to vector<88x128xf32>
    %cst_48 = arith.constant 1.100000e+01 : f32
    %57 = vector.broadcast %cst_48 : f32 to vector<88x128xf32>
    %58 = arith.divf %56, %57 : vector<88x128xf32>
    %59 = math.floor %58 : vector<88x128xf32>
    %cst_49 = arith.constant 1.100000e+01 : f32
    %60 = vector.broadcast %cst_49 : f32 to vector<88x128xf32>
    %61 = arith.mulf %59, %60 : vector<88x128xf32>
    %62 = arith.subf %56, %61 : vector<88x128xf32>
    %cst_50 = arith.constant 8.000000e+00 : f32
    %63 = vector.broadcast %cst_50 : f32 to vector<88x128xf32>
    %64 = arith.cmpf olt, %62, %63 : vector<88x128xf32>
    %cst_51 = arith.constant 0.000000e+00 : f32
    %65 = vector.broadcast %cst_51 : f32 to vector<88x128xf32>
    %66 = arith.select %64, %54, %65 : vector<88x128xi1>, vector<88x128xf32>
    %67 = arith.truncf %66 : vector<88x128xf32> to vector<88x128xbf16>
    %c0_52 = arith.constant 0 : index
    %c0_53 = arith.constant 0 : index
    %c0_54 = arith.constant 0 : index
    %68 = vector.load %arg5[%c0_52, %c0_53, %c0_54] : memref<1x88x128xbf16, #tpu.memory_space<vmem>>, vector<1x88x128xbf16>
    %69 = vector.shape_cast %68 : vector<1x88x128xbf16> to vector<88x128xbf16>
    %70 = vector.shape_cast %67 : vector<88x128xbf16> to vector<1x88x128xbf16>
    tpu.vector_store %arg5[%c0_52, %c0_53, %c0_54], %70 {strides = array<i32>} : memref<1x88x128xbf16, #tpu.memory_space<vmem>>, vector<1x88x128xbf16>,
    %cst_55 = arith.constant dense<0.000000e+00> : vector<128xf32>
    %71 = vector.multi_reduction <add>, %66, %cst_55 [0] : vector<88x128xf32> to vector<128xf32>
    %72 = vector.shape_cast %71 : vector<128xf32> to vector<1x128xf32>
    %c0_56 = arith.constant 0 : index
    %c0_57 = arith.constant 0 : index
    %73 = vector.load %arg7[%c0_56, %c0_57] : memref<1x128xf32, #tpu.memory_space<vmem>>, vector<1x128xf32>
    tpu.vector_store %arg7[%c0_56, %c0_57], %72 {strides = array<i32>} : memref<1x128xf32, #tpu.memory_space<vmem>>, vector<1x128xf32>,
    %74 = arith.mulf %66, %66 : vector<88x128xf32>
    %cst_58 = arith.constant dense<0.000000e+00> : vector<128xf32>
    %75 = vector.multi_reduction <add>, %74, %cst_58 [0] : vector<88x128xf32> to vector<128xf32>
    %76 = vector.shape_cast %75 : vector<128xf32> to vector<1x128xf32>
    %c0_59 = arith.constant 0 : index
    %c0_60 = arith.constant 0 : index
    %77 = vector.load %arg8[%c0_59, %c0_60] : memref<1x128xf32, #tpu.memory_space<vmem>>, vector<1x128xf32>
    tpu.vector_store %arg8[%c0_59, %c0_60], %76 {strides = array<i32>} : memref<1x128xf32, #tpu.memory_space<vmem>>, vector<1x128xf32>,
    %c0_61 = arith.constant 0 : index
    %c0_62 = arith.constant 0 : index
    %c0_63 = arith.constant 0 : index
    %78 = vector.load %arg3[%c0_61, %c0_62, %c0_63] : memref<1x88x128xbf16, #tpu.memory_space<vmem>>, vector<1x88x128xbf16>
    %79 = vector.shape_cast %78 : vector<1x88x128xbf16> to vector<88x128xbf16>
    %c0_64 = arith.constant 0 : index
    %c0_65 = arith.constant 0 : index
    %80 = vector.load %arg4[%c0_64, %c0_65] : memref<128x128xbf16, #tpu.memory_space<vmem>>, vector<128x128xbf16>
    %cst_66 = arith.constant dense<0.000000e+00> : vector<88x128xf32>
    %81 = tpu.matmul %79, %80, %cst_66 {dimension_numbers = #tpu.dot_dimension_numbers<[1], [0], [0], [1], [0, 0, 1, 1], [], []>} : vector<88x128xbf16>, vector<128x128xbf16>, vector<88x128xf32> -> vector<88x128xf32>
    %82 = arith.truncf %81 : vector<88x128xf32> to vector<88x128xbf16>
    %c0_67 = arith.constant 0 : index
    %c0_68 = arith.constant 0 : index
    %c0_69 = arith.constant 0 : index
    %83 = vector.load %arg6[%c0_67, %c0_68, %c0_69] : memref<1x88x128xbf16, #tpu.memory_space<vmem>>, vector<1x88x128xbf16>
    %84 = vector.shape_cast %83 : vector<1x88x128xbf16> to vector<88x128xbf16>
    %85 = vector.shape_cast %82 : vector<88x128xbf16> to vector<1x88x128xbf16>
    tpu.vector_store %arg6[%c0_67, %c0_68, %c0_69], %85 {strides = array<i32>} : memref<1x88x128xbf16, #tpu.memory_space<vmem>>, vector<1x88x128xbf16>,
    %cst_70 = arith.constant dense<0.000000e+00> : vector<128xf32>
    %86 = vector.multi_reduction <add>, %81, %cst_70 [0] : vector<88x128xf32> to vector<128xf32>
    %87 = vector.shape_cast %86 : vector<128xf32> to vector<1x128xf32>
    %c0_71 = arith.constant 0 : index
    %c0_72 = arith.constant 0 : index
    %88 = vector.load %arg9[%c0_71, %c0_72] : memref<1x128xf32, #tpu.memory_space<vmem>>, vector<1x128xf32>
    tpu.vector_store %arg9[%c0_71, %c0_72], %87 {strides = array<i32>} : memref<1x128xf32, #tpu.memory_space<vmem>>, vector<1x128xf32>,
    %89 = arith.mulf %81, %81 : vector<88x128xf32>
    %cst_73 = arith.constant dense<0.000000e+00> : vector<128xf32>
    %90 = vector.multi_reduction <add>, %89, %cst_73 [0] : vector<88x128xf32> to vector<128xf32>
    %91 = vector.shape_cast %90 : vector<128xf32> to vector<1x128xf32>
    %c0_74 = arith.constant 0 : index
    %c0_75 = arith.constant 0 : index
    %92 = vector.load %arg10[%c0_74, %c0_75] : memref<1x128xf32, #tpu.memory_space<vmem>>, vector<1x128xf32>
    tpu.vector_store %arg10[%c0_74, %c0_75], %91 {strides = array<i32>} : memref<1x128xf32, #tpu.memory_space<vmem>>, vector<1x128xf32>,
    return
  }
  func.func @transform_0(%arg0: i32) -> (i32, i32, i32) {
    %c0_i32 = arith.constant 0 : i32
    %c0_i32_0 = arith.constant 0 : i32
    %c0_i32_1 = arith.constant 0 : i32
    return %arg0, %c0_i32, %c0_i32_0 : i32, i32, i32
  }
  func.func @transform_1(%arg0: i32) -> (i32, i32, i32) {
    %c0_i32 = arith.constant 0 : i32
    %c0_i32_0 = arith.constant 0 : i32
    %c0_i32_1 = arith.constant 0 : i32
    %c0_i32_2 = arith.constant 0 : i32
    return %c0_i32, %c0_i32_0, %c0_i32_1 : i32, i32, i32
  }
  func.func @transform_2(%arg0: i32) -> (i32, i32, i32) {
    %c0_i32 = arith.constant 0 : i32
    %c0_i32_0 = arith.constant 0 : i32
    %c0_i32_1 = arith.constant 0 : i32
    return %arg0, %c0_i32, %c0_i32_0 : i32, i32, i32
  }
  func.func @transform_3(%arg0: i32) -> (i32, i32) {
    %c0_i32 = arith.constant 0 : i32
    %c0_i32_0 = arith.constant 0 : i32
    %c0_i32_1 = arith.constant 0 : i32
    return %c0_i32, %c0_i32_0 : i32, i32
  }
  func.func @transform_4(%arg0: i32) -> (i32, i32, i32) {
    %c0_i32 = arith.constant 0 : i32
    %c0_i32_0 = arith.constant 0 : i32
    %c0_i32_1 = arith.constant 0 : i32
    return %arg0, %c0_i32, %c0_i32_0 : i32, i32, i32
  }
  func.func @transform_5(%arg0: i32) -> (i32, i32, i32) {
    %c0_i32 = arith.constant 0 : i32
    %c0_i32_0 = arith.constant 0 : i32
    %c0_i32_1 = arith.constant 0 : i32
    return %arg0, %c0_i32, %c0_i32_0 : i32, i32, i32
  }
  func.func @transform_6(%arg0: i32) -> (i32, i32) {
    %c0_i32 = arith.constant 0 : i32
    %c0_i32_0 = arith.constant 0 : i32
    return %c0_i32, %arg0 : i32, i32
  }
  func.func @transform_7(%arg0: i32) -> (i32, i32) {
    %c0_i32 = arith.constant 0 : i32
    %c0_i32_0 = arith.constant 0 : i32
    return %c0_i32, %arg0 : i32, i32
  }
  func.func @transform_8(%arg0: i32) -> (i32, i32) {
    %c0_i32 = arith.constant 0 : i32
    %c0_i32_0 = arith.constant 0 : i32
    return %c0_i32, %arg0 : i32, i32
  }
  func.func @transform_9(%arg0: i32) -> (i32, i32) {
    %c0_i32 = arith.constant 0 : i32
    %c0_i32_0 = arith.constant 0 : i32
    return %c0_i32, %arg0 : i32, i32
  }
}

</mosaic_0001>

<llo_original>
// kernel: block_forward.5
$region0: #{block_forward.5}
  #allocation0 [shape = 'u32[]', space=smem, size = 0x4, offset = 0x4, fixed_abs, tag = 'smem constant byte address 0x4 - core index']
  #allocation1 [shape = 'u32[144,128]{1,0:T(1,128)}', space=vmem, size = 0x12000, scoped, tag = 'internal scratch']
  %s0 = inlined_call_operand.vmem [shape: bf16[128,128], index: 0, kind: input, shape index: {}]
  %s1 = inlined_call_operand.vmem [shape: f32[1,128], index: 1, kind: input, shape index: {}]
  %s2 = inlined_call_operand.vmem [shape: f32[1,128], index: 2, kind: input, shape index: {}]
  %s3 = inlined_call_operand.vmem [shape: bf16[128,128], index: 3, kind: output, shape index: {}]
  %s4 = sld [smem:[#allocation0]]
  $region45: #{block_forward.5} parent=0
    _
  %s6 = ssub.s32 1, %s4
  %s7 = scalar_select 0, %s6, %s4
  loop: start=0, step=1, limit=4
  $region2: #{block_forward.5} parent=0 // loop_pre_header
    _
  $region3: #{block_forward.5} parent=0 // loop_header
    %s9 = sphi 0, %s13
    %p10 = scmp.ge.s32.totalorder %s9, 4
    %s19 = sphi 0, %s21
    %s22 = sphi 0, %s19
    %s23 = sphi 0, %s22
    %s39 = sphi 0, %s23
    %s43 = sphi 0, %s43
    %s45 = sphi 0, %s43
    %s46 = sphi 0, %s45
    %s60 = sphi 0, %s46
    %s64 = sphi 0, %s64
    %s66 = sphi 0, %s64
    %s67 = sphi 0, %s66
    %s81 = sphi 0, %s67
    %s87 = sphi 0, %s89
    %s90 = sphi 0, %s87
    %s91 = sphi 0, %s90
    %s107 = sphi 0, %s91
  $region4: #{block_forward.5} parent=0 // loop_header_branch
    %12 = sbr.rel (%p10) target = $region8
  $region5: #{block_forward.5} parent=0 // loop_body
    %s14 = ssub.s32 %s9, 1
    %s15 = ssub.s32 %s9, 2
    %s16 = sadd.s32 %s9, 1
    %s17 = ssub.s32 %s9, %s16
    %p18 = scmp.eq.s32.totalorder %s17, 0
    %s20 = sadd.s32 %s19, 1
    %s21 = scalar_select %p18, %s19, %s20
    %p24 = pneg %p18
    %p25 = scmp.eq.s32.totalorder %s9, 1
    %p26 = por %p24, %p25
    %p27 = scmp.ne.s32.totalorder %s19, %s22
    %p28 = scmp.eq.s32.totalorder %s9, 0
    %p29 = por %p27, %p28
    %p30 = scmp.ne.s32.totalorder %s19, %s22
    %p31 = scmp.eq.s32.totalorder %s14, 1
    %p32 = por %p30, %p31
    %p33 = scmp.ne.s32.totalorder %s22, %s23
    %p34 = scmp.eq.s32.totalorder %s14, 0
    %p35 = por %p33, %p34
    %p36 = scmp.ne.s32.totalorder %s22, %s23
    %p37 = scmp.eq.s32.totalorder %s15, 1
    %p38 = por %p36, %p37
    %p40 = scmp.ne.s32.totalorder %s23, %s39
    %p41 = scmp.eq.s32.totalorder %s15, 0
    %p42 = por %p40, %p41
    %s44 = sadd.s32 %s43, 1
    %p47 = scmp.eq.s32.totalorder %s9, 1
    %p48 = scmp.ne.s32.totalorder %s43, %s45
    %p49 = scmp.eq.s32.totalorder %s9, 0
    %p50 = por %p48, %p49
    %p51 = scmp.ne.s32.totalorder %s43, %s45
    %p52 = scmp.eq.s32.totalorder %s14, 1
    %p53 = por %p51, %p52
    %p54 = scmp.ne.s32.totalorder %s45, %s46
    %p55 = scmp.eq.s32.totalorder %s14, 0
    %p56 = por %p54, %p55
    %p57 = scmp.ne.s32.totalorder %s45, %s46
    %p58 = scmp.eq.s32.totalorder %s15, 1
    %p59 = por %p57, %p58
    %p61 = scmp.ne.s32.totalorder %s46, %s60
    %p62 = scmp.eq.s32.totalorder %s15, 0
    %p63 = por %p61, %p62
    %s65 = sadd.s32 %s64, 1
    %p68 = scmp.eq.s32.totalorder %s9, 1
    %p69 = scmp.ne.s32.totalorder %s64, %s66
    %p70 = scmp.eq.s32.totalorder %s9, 0
    %p71 = por %p69, %p70
    %p72 = scmp.ne.s32.totalorder %s64, %s66
    %p73 = scmp.eq.s32.totalorder %s14, 1
    %p74 = por %p72, %p73
    %p75 = scmp.ne.s32.totalorder %s66, %s67
    %p76 = scmp.eq.s32.totalorder %s14, 0
    %p77 = por %p75, %p76
    %p78 = scmp.ne.s32.totalorder %s66, %s67
    %p79 = scmp.eq.s32.totalorder %s15, 1
    %p80 = por %p78, %p79
    %p82 = scmp.ne.s32.totalorder %s67, %s81
    %p83 = scmp.eq.s32.totalorder %s15, 0
    %p84 = por %p82, %p83
    %s85 = ssub.s32 %s9, %s16
    %p86 = scmp.eq.s32.totalorder %s85, 0
    %s88 = sadd.s32 %s87, 1
    %s89 = scalar_select %p86, %s87, %s88
    %p92 = pneg %p86
    %p93 = scmp.eq.s32.totalorder %s9, 1
    %p94 = por %p92, %p93
    %p95 = scmp.ne.s32.totalorder %s87, %s90
    %p96 = scmp.eq.s32.totalorder %s9, 0
    %p97 = por %p95, %p96
    %p98 = scmp.ne.s32.totalorder %s87, %s90
    %p99 = scmp.eq.s32.totalorder %s14, 1
    %p100 = por %p98, %p99
    %p101 = scmp.ne.s32.totalorder %s90, %s91
    %p102 = scmp.eq.s32.totalorder %s14, 0
    %p103 = por %p101, %p102
    %p104 = scmp.ne.s32.totalorder %s90, %s91
    %p105 = scmp.eq.s32.totalorder %s15, 1
    %p106 = por %p104, %p105
    %p108 = scmp.ne.s32.totalorder %s91, %s107
    %p109 = scmp.eq.s32.totalorder %s15, 0
    %p110 = por %p108, %p109
    %p111 = scmp.le.s32.totalorder 1, %s9
    %p112 = scmp.lt.s32.totalorder %s9, 3
    %p113 = pnand %p111, %p112
    %p114 = pneg %p113
    // Predicated region
    $region9: #{block_forward.5} parent=5 // pred_check
      _
    $region10: #{block_forward.5} parent=5 // pred_check_branch
      %116 = sbr.rel (%p113) target = $region12
    $region11: #{block_forward.5} parent=5 // pred_region
      %s117 = ssub.s32 %s9, 1
      // Predicated region
      $region13: #{block_forward.5} parent=11 // pred_check
        %p118 = pneg %p56
      $region14: #{block_forward.5} parent=11 // pred_check_branch
        %120 = sbr.rel (%p118) target = $region16
      $region15: #{block_forward.5} parent=11 // pred_region
        _
      $region16: #{block_forward.5} parent=11 // pred_fallthru
        _
      // Predicated region
      $region17: #{block_forward.5} parent=11 // pred_check
        %p121 = pneg %p77
      $region18: #{block_forward.5} parent=11 // pred_check_branch
        %123 = sbr.rel (%p121) target = $region20
      $region19: #{block_forward.5} parent=11 // pred_region
        _
      $region20: #{block_forward.5} parent=11 // pred_fallthru
        _
    $region12: #{block_forward.5} parent=5 // pred_fallthru
      _
    %p124 = scmp.lt.s32.totalorder %s9, 2
    // Predicated region
    $region21: #{block_forward.5} parent=5 // pred_check
      %p125 = pneg %p124
    $region22: #{block_forward.5} parent=5 // pred_check_branch
      %127 = sbr.rel (%p125) target = $region24
    $region23: #{block_forward.5} parent=5 // pred_region
      // Predicated region
      $region25: #{block_forward.5} parent=23 // pred_check
        %p128 = pneg %p29
      $region26: #{block_forward.5} parent=23 // pred_check_branch
        %130 = sbr.rel (%p128) target = $region28
      $region27: #{block_forward.5} parent=23 // pred_region
        %s131 = smul.u32 8, %s9
        %p132 = scmp.lt.s32.totalorder %s131, 15
        %s133 = scalar_select %p132, %s131, 15
        %s134 = smul.addr %s133, 4
        %s135 = scalar_lea.vmem %s0, %s134
        %s136 = smul.u32 8, %s9
      $region28: #{block_forward.5} parent=23 // pred_fallthru
        _
    $region24: #{block_forward.5} parent=5 // pred_fallthru
      _
    %p137 = scmp.le.s32.totalorder 1, %s9
    %p138 = scmp.lt.s32.totalorder %s9, 3
    %p139 = pnand %p137, %p138
    %p140 = pneg %p139
    // Predicated region
    $region29: #{block_forward.5} parent=5 // pred_check
      _
    $region30: #{block_forward.5} parent=5 // pred_check_branch
      %142 = sbr.rel (%p139) target = $region32
    $region31: #{block_forward.5} parent=5 // pred_region
      %s143 = ssub.s32 %s9, 1
      %s144 = smul.u32 8, %s14
      %p145 = scmp.lt.s32.totalorder %s144, 15
      %s146 = scalar_select %p145, %s144, 15
      %s147 = smul.addr %s146, 4
      %s148 = scalar_lea.vmem %s0, %s147
      %p149 = pneg %p35
      %p150 = pneg %p32
      %p151 = pneg %p56
      %p152 = pneg %p53
      %p153 = pneg %p77
      %p154 = pneg %p74
      %p155 = pneg %p103
      %p156 = pneg %p100
      %s157 = smul.u32 8, %s14
      %p158 = scmp.lt.s32.totalorder %s157, 15
      %s159 = scalar_select %p158, %s157, 15
      %s160 = smul.addr %s159, 4
      %s161 = scalar_lea.vmem %s3, %s160
      %s162 = smul.u32 8, %s14
      %p163 = scmp.lt.s32.totalorder %s162, 15
      %s164 = scalar_select %p163, %s162, 15
      %s165 = smul.addr %s164, 4
      %s166 = scalar_lea.vmem %s0, %s165
      %s167 = smul.u32 8, %s14
      %s168 = smul.u32 8, %s14
      %p169 = scmp.lt.s32.totalorder %s168, 15
      %s170 = scalar_select %p169, %s168, 15
      %s171 = smul.addr %s170, 4
      %s172 = scalar_lea.vmem %s3, %s171
      %s173 = smul.u32 8, %s14
      %v174 = vld [vmem:[%s166] sm:$0xf]
      %v175 = vld [vmem:[%s166 + $0x4] sm:$0xf]
      %v176 = vld [vmem:[%s166 + $0x8] sm:$0xf]
      %v177 = vld [vmem:[%s166 + $0xc] sm:$0xf]
      %v178 = vld [vmem:[%s166 + $0x10] sm:$0xf]
      %v179 = vld [vmem:[%s166 + $0x14] sm:$0xf]
      %v180 = vld [vmem:[%s166 + $0x18] sm:$0xf]
      %v181 = vld [vmem:[%s166 + $0x1c] sm:$0xf]
      %v182 = vunpack.c.l.bf16 %v174
      %v183 = vunpack.c.l.bf16 %v175
      %v184 = vunpack.c.l.bf16 %v176
      %v185 = vunpack.c.l.bf16 %v177
      %v186 = vunpack.c.l.bf16 %v178
      %v187 = vunpack.c.l.bf16 %v179
      %v188 = vunpack.c.l.bf16 %v180
      %v189 = vunpack.c.l.bf16 %v181
      %v190 = vld [vmem:[%s1] sm:$0x1]
      %v192 = vlaneseq
      %v193 = vshrl.u32 %v192, 7
      %v194 = vsub.s32 0, %v193
      %v195 = vrot.slane %v190, %v194
      %v197 = vmul.f32 %v182, %v195
      %v198 = vmul.f32 %v183, %v195
      %v199 = vmul.f32 %v184, %v195
      %v200 = vmul.f32 %v185, %v195
      %v201 = vmul.f32 %v186, %v195
      %v202 = vmul.f32 %v187, %v195
      %v203 = vmul.f32 %v188, %v195
      %v204 = vmul.f32 %v189, %v195
      %v205 = vld [vmem:[%s2] sm:$0x1]
      %v207 = vlaneseq
      %v208 = vshrl.u32 %v207, 7
      %v209 = vsub.s32 0, %v208
      %v210 = vrot.slane %v205, %v209
      %v212 = vadd.f32 %v197, %v210
      %v213 = vadd.f32 %v198, %v210
      %v214 = vadd.f32 %v199, %v210
      %v215 = vadd.f32 %v200, %v210
      %v216 = vadd.f32 %v201, %v210
      %v217 = vadd.f32 %v202, %v210
      %v218 = vadd.f32 %v203, %v210
      %v219 = vadd.f32 %v204, %v210
      %v220 = vmax.f32 %v212, 0.0
      %v221 = vmax.f32 %v213, 0.0
      %v222 = vmax.f32 %v214, 0.0
      %v223 = vmax.f32 %v215, 0.0
      %v224 = vmax.f32 %v216, 0.0
      %v225 = vmax.f32 %v217, 0.0
      %v226 = vmax.f32 %v218, 0.0
      %v227 = vmax.f32 %v219, 0.0
      %v228 = vpack.c.bf16 %v221, %v220
      %v229 = vpack.c.bf16 %v223, %v222
      %v230 = vpack.c.bf16 %v225, %v224
      %v231 = vpack.c.bf16 %v227, %v226
      %v236 = vunpack.c.l.b16 %v228
      %v237 = vunpack.c.h.b16 %v228
      %v238 = vunpack.c.l.b16 %v229
      %v239 = vunpack.c.h.b16 %v229
      %v240 = vunpack.c.l.b16 %v230
      %v241 = vunpack.c.h.b16 %v230
      %v242 = vunpack.c.l.b16 %v231
      %v243 = vunpack.c.h.b16 %v231
      %v244 = vpack.c.b16 %v236, %v236
      %v245 = vpack.c.b16 %v237, %v237
      %v246 = vpack.c.b16 %v238, %v238
      %v247 = vpack.c.b16 %v239, %v239
      %v248 = vpack.c.b16 %v240, %v240
      %v249 = vpack.c.b16 %v241, %v241
      %v250 = vpack.c.b16 %v242, %v242
      %v251 = vpack.c.b16 %v243, %v243
      %260 = vst [vmem:[%s172] sm:$0xf] %v244
      %261 = vst [vmem:[%s172 + $0x4] sm:$0xf] %v245
      %262 = vst [vmem:[%s172 + $0x8] sm:$0xf] %v246
      %263 = vst [vmem:[%s172 + $0xc] sm:$0xf] %v247
      %264 = vst [vmem:[%s172 + $0x10] sm:$0xf] %v248
      %265 = vst [vmem:[%s172 + $0x14] sm:$0xf] %v249
      %266 = vst [vmem:[%s172 + $0x18] sm:$0xf] %v250
      %267 = vst [vmem:[%s172 + $0x1c] sm:$0xf] %v251
      %s268 = smul.u32 8, %s14
      %p269 = scmp.lt.s32.totalorder %s268, 15
      %s270 = scalar_select %p269, %s268, 15
      %s271 = smul.addr %s270, 4
      %s272 = scalar_lea.vmem %s3, %s271
      // Predicated region
      $region33: #{block_forward.5} parent=31 // pred_check
        %p273 = pneg %p100
      $region34: #{block_forward.5} parent=31 // pred_check_branch
        %275 = sbr.rel (%p273) target = $region36
      $region35: #{block_forward.5} parent=31 // pred_region
        %s276 = smul.u32 8, %s14
      $region36: #{block_forward.5} parent=31 // pred_fallthru
        _
    $region32: #{block_forward.5} parent=5 // pred_fallthru
      _
    %p277 = scmp.le.s32.totalorder 2, %s9
    // Predicated region
    $region37: #{block_forward.5} parent=5 // pred_check
      %p278 = pneg %p277
    $region38: #{block_forward.5} parent=5 // pred_check_branch
      %280 = sbr.rel (%p278) target = $region40
    $region39: #{block_forward.5} parent=5 // pred_region
      %s281 = ssub.s32 %s9, 2
      // Predicated region
      $region41: #{block_forward.5} parent=39 // pred_check
        %p282 = pneg %p106
      $region42: #{block_forward.5} parent=39 // pred_check_branch
        %284 = sbr.rel (%p282) target = $region44
      $region43: #{block_forward.5} parent=39 // pred_region
        %s285 = smul.u32 8, %s15
        %p286 = scmp.lt.s32.totalorder %s285, 15
        %s287 = scalar_select %p286, %s285, 15
        %s288 = smul.addr %s287, 4
        %s289 = scalar_lea.vmem %s3, %s288
      $region44: #{block_forward.5} parent=39 // pred_fallthru
        _
    $region40: #{block_forward.5} parent=5 // pred_fallthru
      _
  $region6: #{block_forward.5} parent=0 // loop_footer
    %s13 = sadd.s32 1, %s9
  $region7: #{block_forward.5} parent=0 // loop_footer_branch
    %8 = sbr.rel target = $region3
  $region8: #{block_forward.5} parent=0 // loop_exit
    _

// kernel: block_forward.4
$region0: #{block_forward.4}
  #allocation0 [shape = 'u32[]', space=smem, size = 0x4, offset = 0x4, fixed_abs, tag = 'smem constant byte address 0x4 - core index']
  #allocation1 [shape = 'u32[144,128]{1,0:T(1,128)}', space=vmem, size = 0x12000, scoped, tag = 'internal scratch']
  %s0 = inlined_call_operand.vmem [shape: bf16[128,128], index: 0, kind: input, shape index: {}]
  %s1 = inlined_call_operand.vmem [shape: bf16[128,128], index: 1, kind: input, shape index: {}]
  %s2 = inlined_call_operand.vmem [shape: bf16[128,128], index: 2, kind: output, shape index: {0}]
  %s3 = inlined_call_operand.vmem [shape: f32[1,256], index: 3, kind: output, shape index: {1}]
  %s4 = inlined_call_operand.vmem [shape: f32[1,256], index: 4, kind: output, shape index: {2}]
  %5 = xla_tuple %s2, %s3, %s4
  %s6 = sld [smem:[#allocation0]]
  $region57: #{block_forward.4} parent=0
    _
  %s8 = ssub.s32 1, %s6
  %s9 = scalar_select 0, %s8, %s6
  loop: start=0, step=1, limit=4
  $region2: #{block_forward.4} parent=0 // loop_pre_header
    _
  $region3: #{block_forward.4} parent=0 // loop_header
    %s11 = sphi 0, %s15
    %p12 = scmp.ge.s32.totalorder %s11, 4
    %s21 = sphi 0, %s23
    %s24 = sphi 0, %s21
    %s25 = sphi 0, %s24
    %s41 = sphi 0, %s25
    %s45 = sphi 0, %s45
    %s47 = sphi 0, %s45
    %s48 = sphi 0, %s47
    %s62 = sphi 0, %s48
    %s68 = sphi 0, %s70
    %s71 = sphi 0, %s68
    %s72 = sphi 0, %s71
    %s88 = sphi 0, %s72
    %s94 = sphi 0, %s96
    %s97 = sphi 0, %s94
    %s98 = sphi 0, %s97
    %s114 = sphi 0, %s98
    %s120 = sphi 0, %s122
    %s123 = sphi 0, %s120
    %s124 = sphi 0, %s123
    %s140 = sphi 0, %s124
  $region4: #{block_forward.4} parent=0 // loop_header_branch
    %14 = sbr.rel (%p12) target = $region8
  $region5: #{block_forward.4} parent=0 // loop_body
    %s16 = ssub.s32 %s11, 1
    %s17 = ssub.s32 %s11, 2
    %s18 = sadd.s32 %s11, 1
    %s19 = ssub.s32 %s11, %s18
    %p20 = scmp.eq.s32.totalorder %s19, 0
    %s22 = sadd.s32 %s21, 1
    %s23 = scalar_select %p20, %s21, %s22
    %p26 = pneg %p20
    %p27 = scmp.eq.s32.totalorder %s11, 1
    %p28 = por %p26, %p27
    %p29 = scmp.ne.s32.totalorder %s21, %s24
    %p30 = scmp.eq.s32.totalorder %s11, 0
    %p31 = por %p29, %p30
    %p32 = scmp.ne.s32.totalorder %s21, %s24
    %p33 = scmp.eq.s32.totalorder %s16, 1
    %p34 = por %p32, %p33
    %p35 = scmp.ne.s32.totalorder %s24, %s25
    %p36 = scmp.eq.s32.totalorder %s16, 0
    %p37 = por %p35, %p36
    %p38 = scmp.ne.s32.totalorder %s24, %s25
    %p39 = scmp.eq.s32.totalorder %s17, 1
    %p40 = por %p38, %p39
    %p42 = scmp.ne.s32.totalorder %s25, %s41
    %p43 = scmp.eq.s32.totalorder %s17, 0
    %p44 = por %p42, %p43
    %s46 = sadd.s32 %s45, 1
    %p49 = scmp.eq.s32.totalorder %s11, 1
    %p50 = scmp.ne.s32.totalorder %s45, %s47
    %p51 = scmp.eq.s32.totalorder %s11, 0
    %p52 = por %p50, %p51
    %p53 = scmp.ne.s32.totalorder %s45, %s47
    %p54 = scmp.eq.s32.totalorder %s16, 1
    %p55 = por %p53, %p54
    %p56 = scmp.ne.s32.totalorder %s47, %s48
    %p57 = scmp.eq.s32.totalorder %s16, 0
    %p58 = por %p56, %p57
    %p59 = scmp.ne.s32.totalorder %s47, %s48
    %p60 = scmp.eq.s32.totalorder %s17, 1
    %p61 = por %p59, %p60
    %p63 = scmp.ne.s32.totalorder %s48, %s62
    %p64 = scmp.eq.s32.totalorder %s17, 0
    %p65 = por %p63, %p64
    %s66 = ssub.s32 %s11, %s18
    %p67 = scmp.eq.s32.totalorder %s66, 0
    %s69 = sadd.s32 %s68, 1
    %s70 = scalar_select %p67, %s68, %s69
    %p73 = pneg %p67
    %p74 = scmp.eq.s32.totalorder %s11, 1
    %p75 = por %p73, %p74
    %p76 = scmp.ne.s32.totalorder %s68, %s71
    %p77 = scmp.eq.s32.totalorder %s11, 0
    %p78 = por %p76, %p77
    %p79 = scmp.ne.s32.totalorder %s68, %s71
    %p80 = scmp.eq.s32.totalorder %s16, 1
    %p81 = por %p79, %p80
    %p82 = scmp.ne.s32.totalorder %s71, %s72
    %p83 = scmp.eq.s32.totalorder %s16, 0
    %p84 = por %p82, %p83
    %p85 = scmp.ne.s32.totalorder %s71, %s72
    %p86 = scmp.eq.s32.totalorder %s17, 1
    %p87 = por %p85, %p86
    %p89 = scmp.ne.s32.totalorder %s72, %s88
    %p90 = scmp.eq.s32.totalorder %s17, 0
    %p91 = por %p89, %p90
    %s92 = ssub.s32 %s11, %s18
    %p93 = scmp.eq.s32.totalorder %s92, 0
    %s95 = sadd.s32 %s94, 1
    %s96 = scalar_select %p93, %s94, %s95
    %p99 = pneg %p93
    %p100 = scmp.eq.s32.totalorder %s11, 1
    %p101 = por %p99, %p100
    %p102 = scmp.ne.s32.totalorder %s94, %s97
    %p103 = scmp.eq.s32.totalorder %s11, 0
    %p104 = por %p102, %p103
    %p105 = scmp.ne.s32.totalorder %s94, %s97
    %p106 = scmp.eq.s32.totalorder %s16, 1
    %p107 = por %p105, %p106
    %p108 = scmp.ne.s32.totalorder %s97, %s98
    %p109 = scmp.eq.s32.totalorder %s16, 0
    %p110 = por %p108, %p109
    %p111 = scmp.ne.s32.totalorder %s97, %s98
    %p112 = scmp.eq.s32.totalorder %s17, 1
    %p113 = por %p111, %p112
    %p115 = scmp.ne.s32.totalorder %s98, %s114
    %p116 = scmp.eq.s32.totalorder %s17, 0
    %p117 = por %p115, %p116
    %s118 = ssub.s32 %s11, %s18
    %p119 = scmp.eq.s32.totalorder %s118, 0
    %s121 = sadd.s32 %s120, 1
    %s122 = scalar_select %p119, %s120, %s121
    %p125 = pneg %p119
    %p126 = scmp.eq.s32.totalorder %s11, 1
    %p127 = por %p125, %p126
    %p128 = scmp.ne.s32.totalorder %s120, %s123
    %p129 = scmp.eq.s32.totalorder %s11, 0
    %p130 = por %p128, %p129
    %p131 = scmp.ne.s32.totalorder %s120, %s123
    %p132 = scmp.eq.s32.totalorder %s16, 1
    %p133 = por %p131, %p132
    %p134 = scmp.ne.s32.totalorder %s123, %s124
    %p135 = scmp.eq.s32.totalorder %s16, 0
    %p136 = por %p134, %p135
    %p137 = scmp.ne.s32.totalorder %s123, %s124
    %p138 = scmp.eq.s32.totalorder %s17, 1
    %p139 = por %p137, %p138
    %p141 = scmp.ne.s32.totalorder %s124, %s140
    %p142 = scmp.eq.s32.totalorder %s17, 0
    %p143 = por %p141, %p142
    %p144 = scmp.le.s32.totalorder 1, %s11
    %p145 = scmp.lt.s32.totalorder %s11, 3
    %p146 = pnand %p144, %p145
    %p147 = pneg %p146
    // Predicated region
    $region9: #{block_forward.4} parent=5 // pred_check
      _
    $region10: #{block_forward.4} parent=5 // pred_check_branch
      %149 = sbr.rel (%p146) target = $region12
    $region11: #{block_forward.4} parent=5 // pred_region
      %s150 = ssub.s32 %s11, 1
      // Predicated region
      $region13: #{block_forward.4} parent=11 // pred_check
        %p151 = pneg %p58
      $region14: #{block_forward.4} parent=11 // pred_check_branch
        %153 = sbr.rel (%p151) target = $region16
      $region15: #{block_forward.4} parent=11 // pred_region
        _
      $region16: #{block_forward.4} parent=11 // pred_fallthru
        _
    $region12: #{block_forward.4} parent=5 // pred_fallthru
      _
    %p154 = scmp.lt.s32.totalorder %s11, 2
    // Predicated region
    $region17: #{block_forward.4} parent=5 // pred_check
      %p155 = pneg %p154
    $region18: #{block_forward.4} parent=5 // pred_check_branch
      %157 = sbr.rel (%p155) target = $region20
    $region19: #{block_forward.4} parent=5 // pred_region
      // Predicated region
      $region21: #{block_forward.4} parent=19 // pred_check
        %p158 = pneg %p31
      $region22: #{block_forward.4} parent=19 // pred_check_branch
        %160 = sbr.rel (%p158) target = $region24
      $region23: #{block_forward.4} parent=19 // pred_region
        %s161 = smul.u32 8, %s11
        %p162 = scmp.lt.s32.totalorder %s161, 15
        %s163 = scalar_select %p162, %s161, 15
        %s164 = smul.addr %s163, 4
        %s165 = scalar_lea.vmem %s0, %s164
        %s166 = smul.u32 8, %s11
      $region24: #{block_forward.4} parent=19 // pred_fallthru
        _
    $region20: #{block_forward.4} parent=5 // pred_fallthru
      _
    %p167 = scmp.le.s32.totalorder 1, %s11
    %p168 = scmp.lt.s32.totalorder %s11, 3
    %p169 = pnand %p167, %p168
    %p170 = pneg %p169
    // Predicated region
    $region25: #{block_forward.4} parent=5 // pred_check
      _
    $region26: #{block_forward.4} parent=5 // pred_check_branch
      %172 = sbr.rel (%p169) target = $region28
    $region27: #{block_forward.4} parent=5 // pred_region
      %s173 = ssub.s32 %s11, 1
      %s174 = smul.u32 8, %s16
      %p175 = scmp.lt.s32.totalorder %s174, 15
      %s176 = scalar_select %p175, %s174, 15
      %s177 = smul.addr %s176, 4
      %s178 = scalar_lea.vmem %s0, %s177
      %p179 = pneg %p37
      %p180 = pneg %p34
      %p181 = pneg %p58
      %p182 = pneg %p55
      %p183 = pneg %p84
      %p184 = pneg %p81
      %s185 = smul.u32 8, %s16
      %p186 = scmp.lt.s32.totalorder %s185, 15
      %s187 = scalar_select %p186, %s185, 15
      %s188 = smul.addr %s187, 4
      %s189 = scalar_lea.vmem %s2, %s188
      %p190 = pneg %p110
      %p191 = pneg %p107
      %p192 = scmp.lt.s32.totalorder %s16, 1
      %s193 = scalar_select %p192, %s16, 1
      %s194 = scalar_lea.vmem %s3, %s193
      %p195 = pneg %p136
      %p196 = pneg %p133
      %p197 = scmp.lt.s32.totalorder %s16, 1
      %s198 = scalar_select %p197, %s16, 1
      %s199 = scalar_lea.vmem %s4, %s198
      %s200 = smul.u32 8, %s16
      %p201 = scmp.lt.s32.totalorder %s200, 15
      %s202 = scalar_select %p201, %s200, 15
      %s203 = smul.addr %s202, 4
      %s204 = scalar_lea.vmem %s0, %s203
      %s205 = smul.u32 8, %s16
      %s206 = smul.u32 8, %s16
      %p207 = scmp.lt.s32.totalorder %s206, 15
      %s208 = scalar_select %p207, %s206, 15
      %s209 = smul.addr %s208, 4
      %s210 = scalar_lea.vmem %s2, %s209
      %s211 = smul.u32 8, %s16
      %p212 = scmp.lt.s32.totalorder %s16, 1
      %s213 = scalar_select %p212, %s16, 1
      %s214 = scalar_lea.vmem %s3, %s213
      %p215 = scmp.lt.s32.totalorder %s16, 1
      %s216 = scalar_select %p215, %s16, 1
      %s217 = scalar_lea.vmem %s4, %s216
      %v219 = vld [vmem:[%s204] sm:$0xf]
      %v220 = vld [vmem:[%s204 + $0x4] sm:$0xf]
      %v221 = vld [vmem:[%s204 + $0x8] sm:$0xf]
      %v222 = vld [vmem:[%s204 + $0xc] sm:$0xf]
      %v223 = vld [vmem:[%s204 + $0x10] sm:$0xf]
      %v224 = vld [vmem:[%s204 + $0x14] sm:$0xf]
      %v225 = vld [vmem:[%s204 + $0x18] sm:$0xf]
      %v226 = vld [vmem:[%s204 + $0x1c] sm:$0xf]
      %v227 = vld [vmem:[%s1] sm:$0xf]
      %v228 = vld [vmem:[%s1 + $0x4] sm:$0xf]
      %v229 = vld [vmem:[%s1 + $0x8] sm:$0xf]
      %v230 = vld [vmem:[%s1 + $0xc] sm:$0xf]
      %v231 = vld [vmem:[%s1 + $0x10] sm:$0xf]
      %v232 = vld [vmem:[%s1 + $0x14] sm:$0xf]
      %v233 = vld [vmem:[%s1 + $0x18] sm:$0xf]
      %v234 = vld [vmem:[%s1 + $0x1c] sm:$0xf]
      %v235 = vld [vmem:[%s1 + $0x20] sm:$0xf]
      %v236 = vld [vmem:[%s1 + $0x24] sm:$0xf]
      %v237 = vld [vmem:[%s1 + $0x28] sm:$0xf]
      %v238 = vld [vmem:[%s1 + $0x2c] sm:$0xf]
      %v239 = vld [vmem:[%s1 + $0x30] sm:$0xf]
      %v240 = vld [vmem:[%s1 + $0x34] sm:$0xf]
      %v241 = vld [vmem:[%s1 + $0x38] sm:$0xf]
      %v242 = vld [vmem:[%s1 + $0x3c] sm:$0xf]
      %v251 = vunpack.c.l.b16 %v219
      %v252 = vunpack.c.l.b16 %v220
      %v253 = vunpack.c.l.b16 %v221
      %v254 = vunpack.c.l.b16 %v222
      %v255 = vunpack.c.l.b16 %v223
      %v256 = vunpack.c.l.b16 %v224
      %v257 = vunpack.c.l.b16 %v225
      %v258 = vunpack.c.l.b16 %v226
      %v259 = vpack.c.b16 %v252, %v251
      %v260 = vpack.c.b16 %v254, %v253
      %v261 = vpack.c.b16 %v256, %v255
      %v262 = vpack.c.b16 %v258, %v257
      %v283 = vunpack.c.l.b16 %v227
      %v284 = vunpack.c.l.b16 %v228
      %v285 = vunpack.c.l.b16 %v229
      %v286 = vunpack.c.l.b16 %v230
      %v287 = vunpack.c.l.b16 %v231
      %v288 = vunpack.c.l.b16 %v232
      %v289 = vunpack.c.l.b16 %v233
      %v290 = vunpack.c.l.b16 %v234
      %v291 = vunpack.c.l.b16 %v235
      %v292 = vunpack.c.l.b16 %v236
      %v293 = vunpack.c.l.b16 %v237
      %v294 = vunpack.c.l.b16 %v238
      %v295 = vunpack.c.l.b16 %v239
      %v296 = vunpack.c.l.b16 %v240
      %v297 = vunpack.c.l.b16 %v241
      %v298 = vunpack.c.l.b16 %v242
      %v299 = vpack.c.b16 %v284, %v283
      %v300 = vpack.c.b16 %v286, %v285
      %v301 = vpack.c.b16 %v288, %v287
      %v302 = vpack.c.b16 %v290, %v289
      %v303 = vpack.c.b16 %v292, %v291
      %v304 = vpack.c.b16 %v294, %v293
      %v305 = vpack.c.b16 %v296, %v295
      %v306 = vpack.c.b16 %v298, %v297
      %315 = vmatprep.subr.bf16.mxu0 0
      %316 = vmatpush1.bf16.msra.mxu0 %v299
      %317 = vmatprep.subr.bf16.mxu0 0
      %318 = vmatpush1.bf16.msra.mxu0 %v300
      %319 = vmatprep.subr.bf16.mxu0 0
      %320 = vmatpush1.bf16.msra.mxu0 %v301
      %321 = vmatprep.subr.bf16.mxu0 0
      %322 = vmatpush1.bf16.msra.mxu0 %v302
      %323 = vmatprep.subr.bf16.mxu0 0
      %324 = vmatpush1.bf16.msra.mxu0 %v303
      %325 = vmatprep.subr.bf16.mxu0 0
      %326 = vmatpush1.bf16.msra.mxu0 %v304
      %327 = vmatprep.subr.bf16.mxu0 0
      %328 = vmatpush1.bf16.msra.mxu0 %v305
      %329 = vmatprep.subr.bf16.mxu0 0
      %330 = vmatpush1.bf16.msra.mxu0 %v306
      %331 = vmatprep.subr.bf16.mxu0 0
      %332 = vmatpush1.bf16.msra.mxu0 0
      %333 = vmatprep.subr.bf16.mxu0 0
      %334 = vmatpush1.bf16.msra.mxu0 0
      %335 = vmatprep.subr.bf16.mxu0 0
      %336 = vmatpush1.bf16.msra.mxu0 0
      %337 = vmatprep.subr.bf16.mxu0 0
      %338 = vmatpush1.bf16.msra.mxu0 0
      %339 = vmatprep.subr.bf16.mxu0 0
      %340 = vmatpush1.bf16.msra.mxu0 0
      %341 = vmatprep.subr.bf16.mxu0 0
      %342 = vmatpush1.bf16.msra.mxu0 0
      %343 = vmatprep.subr.bf16.mxu0 0
      %344 = vmatpush1.bf16.msra.mxu0 0
      %345 = vmatprep.subr.bf16.mxu0 0
      %346 = vmatpush1.bf16.msra.mxu0 0
      %347 = vmatprep.mubr.bf16.mxu0 0
      %348 = vmatmul.mubr.bf16.gmra.mrb[0].mxu0 %v259
      %v349 = vpop.f32.mrb[0].mxu0
      %v350 = vadd.f32 0.0, %v349
      %v351 = vpop.f32.mrb[0].mxu0
      %v352 = vpop.f32.mrb[0].mxu0
      %v353 = vadd.f32 0.0, %v352
      %v354 = vpop.f32.mrb[0].mxu0
      %355 = vmatprep.mubr.bf16.mxu0 0
      %356 = vmatmul.mubr.bf16.gmra.mrb[0].mxu0 %v260
      %v357 = vpop.f32.mrb[0].mxu0
      %v358 = vadd.f32 0.0, %v357
      %v359 = vpop.f32.mrb[0].mxu0
      %v360 = vpop.f32.mrb[0].mxu0
      %v361 = vadd.f32 0.0, %v360
      %v362 = vpop.f32.mrb[0].mxu0
      %363 = vmatprep.mubr.bf16.mxu0 0
      %364 = vmatmul.mubr.bf16.gmra.mrb[0].mxu0 %v261
      %v365 = vpop.f32.mrb[0].mxu0
      %v366 = vadd.f32 0.0, %v365
      %v367 = vpop.f32.mrb[0].mxu0
      %v368 = vpop.f32.mrb[0].mxu0
      %v369 = vadd.f32 0.0, %v368
      %v370 = vpop.f32.mrb[0].mxu0
      %371 = vmatprep.mubr.bf16.mxu0 0
      %372 = vmatmul.mubr.bf16.gmra.mrb[0].mxu0 %v262
      %v373 = vpop.f32.mrb[0].mxu0
      %v374 = vadd.f32 0.0, %v373
      %v375 = vpop.f32.mrb[0].mxu0
      %v376 = vpop.f32.mrb[0].mxu0
      %v377 = vadd.f32 0.0, %v376
      %v378 = vpop.f32.mrb[0].mxu0
      %379 = vdwg.mxu0
      %v380 = vpack.c.bf16 %v353, %v350
      %v381 = vpack.c.bf16 %v361, %v358
      %v382 = vpack.c.bf16 %v369, %v366
      %v383 = vpack.c.bf16 %v377, %v374
      %v388 = vunpack.c.l.b16 %v380
      %v389 = vunpack.c.h.b16 %v380
      %v390 = vunpack.c.l.b16 %v381
      %v391 = vunpack.c.h.b16 %v381
      %v392 = vunpack.c.l.b16 %v382
      %v393 = vunpack.c.h.b16 %v382
      %v394 = vunpack.c.l.b16 %v383
      %v395 = vunpack.c.h.b16 %v383
      %v396 = vpack.c.b16 %v388, %v388
      %v397 = vpack.c.b16 %v389, %v389
      %v398 = vpack.c.b16 %v390, %v390
      %v399 = vpack.c.b16 %v391, %v391
      %v400 = vpack.c.b16 %v392, %v392
      %v401 = vpack.c.b16 %v393, %v393
      %v402 = vpack.c.b16 %v394, %v394
      %v403 = vpack.c.b16 %v395, %v395
      %412 = vst [vmem:[%s210] sm:$0xf] %v396
      %413 = vst [vmem:[%s210 + $0x4] sm:$0xf] %v397
      %414 = vst [vmem:[%s210 + $0x8] sm:$0xf] %v398
      %415 = vst [vmem:[%s210 + $0xc] sm:$0xf] %v399
      %416 = vst [vmem:[%s210 + $0x10] sm:$0xf] %v400
      %417 = vst [vmem:[%s210 + $0x14] sm:$0xf] %v401
      %418 = vst [vmem:[%s210 + $0x18] sm:$0xf] %v402
      %419 = vst [vmem:[%s210 + $0x1c] sm:$0xf] %v403
      %v420 = vadd.f32 %v350, %v353
      %v421 = vadd.f32 %v420, %v358
      %v422 = vadd.f32 %v421, %v361
      %v423 = vadd.f32 %v422, %v366
      %v424 = vadd.f32 %v423, %v369
      %v425 = vadd.f32 %v424, %v374
      %v426 = vadd.f32 %v425, %v377
      %v427 = vrot.slane %v426, 4
      %v428 = vadd.f32 %v426, %v427
      %v429 = vrot.slane %v428, 2
      %v430 = vadd.f32 %v428, %v429
      %v431 = vrot.slane %v430, 1
      %v432 = vadd.f32 %v430, %v431
      %433 = vst [vmem:[%s214] sm:$0x1] %v432
      %v434 = vmul.f32 %v350, %v350
      %v435 = vmul.f32 %v353, %v353
      %v436 = vmul.f32 %v358, %v358
      %v437 = vmul.f32 %v361, %v361
      %v438 = vmul.f32 %v366, %v366
      %v439 = vmul.f32 %v369, %v369
      %v440 = vmul.f32 %v374, %v374
      %v441 = vmul.f32 %v377, %v377
      %v442 = vadd.f32 %v434, %v435
      %v443 = vadd.f32 %v442, %v436
      %v444 = vadd.f32 %v443, %v437
      %v445 = vadd.f32 %v444, %v438
      %v446 = vadd.f32 %v445, %v439
      %v447 = vadd.f32 %v446, %v440
      %v448 = vadd.f32 %v447, %v441
      %v449 = vrot.slane %v448, 4
      %v450 = vadd.f32 %v448, %v449
      %v451 = vrot.slane %v450, 2
      %v452 = vadd.f32 %v450, %v451
      %v453 = vrot.slane %v452, 1
      %v454 = vadd.f32 %v452, %v453
      %455 = vst [vmem:[%s217] sm:$0x1] %v454
      %s456 = smul.u32 8, %s16
      %p457 = scmp.lt.s32.totalorder %s456, 15
      %s458 = scalar_select %p457, %s456, 15
      %s459 = smul.addr %s458, 4
      %s460 = scalar_lea.vmem %s2, %s459
      %p461 = scmp.lt.s32.totalorder %s16, 1
      %s462 = scalar_select %p461, %s16, 1
      %s463 = scalar_lea.vmem %s3, %s462
      %p464 = scmp.lt.s32.totalorder %s16, 1
      %s465 = scalar_select %p464, %s16, 1
      %s466 = scalar_lea.vmem %s4, %s465
      // Predicated region
      $region29: #{block_forward.4} parent=27 // pred_check
        %p467 = pneg %p81
      $region30: #{block_forward.4} parent=27 // pred_check_branch
        %469 = sbr.rel (%p467) target = $region32
      $region31: #{block_forward.4} parent=27 // pred_region
        %s470 = smul.u32 8, %s16
      $region32: #{block_forward.4} parent=27 // pred_fallthru
        _
      // Predicated region
      $region33: #{block_forward.4} parent=27 // pred_check
        %p471 = pneg %p107
      $region34: #{block_forward.4} parent=27 // pred_check_branch
        %473 = sbr.rel (%p471) target = $region36
      $region35: #{block_forward.4} parent=27 // pred_region
        _
      $region36: #{block_forward.4} parent=27 // pred_fallthru
        _
      // Predicated region
      $region37: #{block_forward.4} parent=27 // pred_check
        %p474 = pneg %p133
      $region38: #{block_forward.4} parent=27 // pred_check_branch
        %476 = sbr.rel (%p474) target = $region40
      $region39: #{block_forward.4} parent=27 // pred_region
        _
      $region40: #{block_forward.4} parent=27 // pred_fallthru
        _
    $region28: #{block_forward.4} parent=5 // pred_fallthru
      _
    %p477 = scmp.le.s32.totalorder 2, %s11
    // Predicated region
    $region41: #{block_forward.4} parent=5 // pred_check
      %p478 = pneg %p477
    $region42: #{block_forward.4} parent=5 // pred_check_branch
      %480 = sbr.rel (%p478) target = $region44
    $region43: #{block_forward.4} parent=5 // pred_region
      %s481 = ssub.s32 %s11, 2
      // Predicated region
      $region45: #{block_forward.4} parent=43 // pred_check
        %p482 = pneg %p87
      $region46: #{block_forward.4} parent=43 // pred_check_branch
        %484 = sbr.rel (%p482) target = $region48
      $region47: #{block_forward.4} parent=43 // pred_region
        %s485 = smul.u32 8, %s17
        %p486 = scmp.lt.s32.totalorder %s485, 15
        %s487 = scalar_select %p486, %s485, 15
        %s488 = smul.addr %s487, 4
        %s489 = scalar_lea.vmem %s2, %s488
      $region48: #{block_forward.4} parent=43 // pred_fallthru
        _
      // Predicated region
      $region49: #{block_forward.4} parent=43 // pred_check
        %p490 = pneg %p113
      $region50: #{block_forward.4} parent=43 // pred_check_branch
        %492 = sbr.rel (%p490) target = $region52
      $region51: #{block_forward.4} parent=43 // pred_region
        %p493 = scmp.lt.s32.totalorder %s17, 1
        %s494 = scalar_select %p493, %s17, 1
        %s495 = scalar_lea.vmem %s3, %s494
      $region52: #{block_forward.4} parent=43 // pred_fallthru
        _
      // Predicated region
      $region53: #{block_forward.4} parent=43 // pred_check
        %p496 = pneg %p139
      $region54: #{block_forward.4} parent=43 // pred_check_branch
        %498 = sbr.rel (%p496) target = $region56
      $region55: #{block_forward.4} parent=43 // pred_region
        %p499 = scmp.lt.s32.totalorder %s17, 1
        %s500 = scalar_select %p499, %s17, 1
        %s501 = scalar_lea.vmem %s4, %s500
      $region56: #{block_forward.4} parent=43 // pred_fallthru
        _
    $region44: #{block_forward.4} parent=5 // pred_fallthru
      _
  $region6: #{block_forward.4} parent=0 // loop_footer
    %s15 = sadd.s32 1, %s11
  $region7: #{block_forward.4} parent=0 // loop_footer_branch
    %10 = sbr.rel target = $region3
  $region8: #{block_forward.4} parent=0 // loop_exit
    _

// kernel: block_forward.7
$region0: #{block_forward.7}
  #allocation0 [shape = 'u32[]', space=smem, size = 0x4, offset = 0x4, fixed_abs, tag = 'smem constant byte address 0x4 - core index']
  #allocation1 [shape = 'u32[144,128]{1,0:T(1,128)}', space=vmem, size = 0x12000, scoped, tag = 'internal scratch']
  %s0 = inlined_call_operand.vmem [shape: bf16[2,88,128], index: 0, kind: input, shape index: {}]
  %s1 = inlined_call_operand.vmem [shape: f32[1,1,128], index: 1, kind: input, shape index: {}]
  %s2 = inlined_call_operand.vmem [shape: f32[1,1,128], index: 2, kind: input, shape index: {}]
  %s3 = inlined_call_operand.vmem [shape: bf16[2,88,128], index: 3, kind: input, shape index: {}]
  %s4 = inlined_call_operand.vmem [shape: f32[1,1,128], index: 4, kind: input, shape index: {}]
  %s5 = inlined_call_operand.vmem [shape: f32[1,1,128], index: 5, kind: input, shape index: {}]
  %s6 = inlined_call_operand.vmem [shape: f32[2,88,128], index: 6, kind: output, shape index: {}]
  %s7 = sld [smem:[#allocation0]]
  $region57: #{block_forward.7} parent=0
    _
  %s9 = ssub.s32 1, %s7
  %s10 = scalar_select 0, %s9, %s7
  loop: start=0, step=1, limit=4
  $region2: #{block_forward.7} parent=0 // loop_pre_header
    _
  $region3: #{block_forward.7} parent=0 // loop_header
    %s12 = sphi 0, %s16
    %p13 = scmp.ge.s32.totalorder %s12, 4
    %s22 = sphi 0, %s24
    %s25 = sphi 0, %s22
    %s26 = sphi 0, %s25
    %s42 = sphi 0, %s26
    %s46 = sphi 0, %s46
    %s48 = sphi 0, %s46
    %s49 = sphi 0, %s48
    %s63 = sphi 0, %s49
    %s67 = sphi 0, %s67
    %s69 = sphi 0, %s67
    %s70 = sphi 0, %s69
    %s84 = sphi 0, %s70
    %s90 = sphi 0, %s92
    %s93 = sphi 0, %s90
    %s94 = sphi 0, %s93
    %s110 = sphi 0, %s94
    %s114 = sphi 0, %s114
    %s116 = sphi 0, %s114
    %s117 = sphi 0, %s116
    %s131 = sphi 0, %s117
    %s135 = sphi 0, %s135
    %s137 = sphi 0, %s135
    %s138 = sphi 0, %s137
    %s152 = sphi 0, %s138
    %s158 = sphi 0, %s160
    %s161 = sphi 0, %s158
    %s162 = sphi 0, %s161
    %s178 = sphi 0, %s162
  $region4: #{block_forward.7} parent=0 // loop_header_branch
    %15 = sbr.rel (%p13) target = $region8
  $region5: #{block_forward.7} parent=0 // loop_body
    %s17 = ssub.s32 %s12, 1
    %s18 = ssub.s32 %s12, 2
    %s19 = sadd.s32 %s12, 1
    %s20 = ssub.s32 %s12, %s19
    %p21 = scmp.eq.s32.totalorder %s20, 0
    %s23 = sadd.s32 %s22, 1
    %s24 = scalar_select %p21, %s22, %s23
    %p27 = pneg %p21
    %p28 = scmp.eq.s32.totalorder %s12, 1
    %p29 = por %p27, %p28
    %p30 = scmp.ne.s32.totalorder %s22, %s25
    %p31 = scmp.eq.s32.totalorder %s12, 0
    %p32 = por %p30, %p31
    %p33 = scmp.ne.s32.totalorder %s22, %s25
    %p34 = scmp.eq.s32.totalorder %s17, 1
    %p35 = por %p33, %p34
    %p36 = scmp.ne.s32.totalorder %s25, %s26
    %p37 = scmp.eq.s32.totalorder %s17, 0
    %p38 = por %p36, %p37
    %p39 = scmp.ne.s32.totalorder %s25, %s26
    %p40 = scmp.eq.s32.totalorder %s18, 1
    %p41 = por %p39, %p40
    %p43 = scmp.ne.s32.totalorder %s26, %s42
    %p44 = scmp.eq.s32.totalorder %s18, 0
    %p45 = por %p43, %p44
    %s47 = sadd.s32 %s46, 1
    %p50 = scmp.eq.s32.totalorder %s12, 1
    %p51 = scmp.ne.s32.totalorder %s46, %s48
    %p52 = scmp.eq.s32.totalorder %s12, 0
    %p53 = por %p51, %p52
    %p54 = scmp.ne.s32.totalorder %s46, %s48
    %p55 = scmp.eq.s32.totalorder %s17, 1
    %p56 = por %p54, %p55
    %p57 = scmp.ne.s32.totalorder %s48, %s49
    %p58 = scmp.eq.s32.totalorder %s17, 0
    %p59 = por %p57, %p58
    %p60 = scmp.ne.s32.totalorder %s48, %s49
    %p61 = scmp.eq.s32.totalorder %s18, 1
    %p62 = por %p60, %p61
    %p64 = scmp.ne.s32.totalorder %s49, %s63
    %p65 = scmp.eq.s32.totalorder %s18, 0
    %p66 = por %p64, %p65
    %s68 = sadd.s32 %s67, 1
    %p71 = scmp.eq.s32.totalorder %s12, 1
    %p72 = scmp.ne.s32.totalorder %s67, %s69
    %p73 = scmp.eq.s32.totalorder %s12, 0
    %p74 = por %p72, %p73
    %p75 = scmp.ne.s32.totalorder %s67, %s69
    %p76 = scmp.eq.s32.totalorder %s17, 1
    %p77 = por %p75, %p76
    %p78 = scmp.ne.s32.totalorder %s69, %s70
    %p79 = scmp.eq.s32.totalorder %s17, 0
    %p80 = por %p78, %p79
    %p81 = scmp.ne.s32.totalorder %s69, %s70
    %p82 = scmp.eq.s32.totalorder %s18, 1
    %p83 = por %p81, %p82
    %p85 = scmp.ne.s32.totalorder %s70, %s84
    %p86 = scmp.eq.s32.totalorder %s18, 0
    %p87 = por %p85, %p86
    %s88 = ssub.s32 %s12, %s19
    %p89 = scmp.eq.s32.totalorder %s88, 0
    %s91 = sadd.s32 %s90, 1
    %s92 = scalar_select %p89, %s90, %s91
    %p95 = pneg %p89
    %p96 = scmp.eq.s32.totalorder %s12, 1
    %p97 = por %p95, %p96
    %p98 = scmp.ne.s32.totalorder %s90, %s93
    %p99 = scmp.eq.s32.totalorder %s12, 0
    %p100 = por %p98, %p99
    %p101 = scmp.ne.s32.totalorder %s90, %s93
    %p102 = scmp.eq.s32.totalorder %s17, 1
    %p103 = por %p101, %p102
    %p104 = scmp.ne.s32.totalorder %s93, %s94
    %p105 = scmp.eq.s32.totalorder %s17, 0
    %p106 = por %p104, %p105
    %p107 = scmp.ne.s32.totalorder %s93, %s94
    %p108 = scmp.eq.s32.totalorder %s18, 1
    %p109 = por %p107, %p108
    %p111 = scmp.ne.s32.totalorder %s94, %s110
    %p112 = scmp.eq.s32.totalorder %s18, 0
    %p113 = por %p111, %p112
    %s115 = sadd.s32 %s114, 1
    %p118 = scmp.eq.s32.totalorder %s12, 1
    %p119 = scmp.ne.s32.totalorder %s114, %s116
    %p120 = scmp.eq.s32.totalorder %s12, 0
    %p121 = por %p119, %p120
    %p122 = scmp.ne.s32.totalorder %s114, %s116
    %p123 = scmp.eq.s32.totalorder %s17, 1
    %p124 = por %p122, %p123
    %p125 = scmp.ne.s32.totalorder %s116, %s117
    %p126 = scmp.eq.s32.totalorder %s17, 0
    %p127 = por %p125, %p126
    %p128 = scmp.ne.s32.totalorder %s116, %s117
    %p129 = scmp.eq.s32.totalorder %s18, 1
    %p130 = por %p128, %p129
    %p132 = scmp.ne.s32.totalorder %s117, %s131
    %p133 = scmp.eq.s32.totalorder %s18, 0
    %p134 = por %p132, %p133
    %s136 = sadd.s32 %s135, 1
    %p139 = scmp.eq.s32.totalorder %s12, 1
    %p140 = scmp.ne.s32.totalorder %s135, %s137
    %p141 = scmp.eq.s32.totalorder %s12, 0
    %p142 = por %p140, %p141
    %p143 = scmp.ne.s32.totalorder %s135, %s137
    %p144 = scmp.eq.s32.totalorder %s17, 1
    %p145 = por %p143, %p144
    %p146 = scmp.ne.s32.totalorder %s137, %s138
    %p147 = scmp.eq.s32.totalorder %s17, 0
    %p148 = por %p146, %p147
    %p149 = scmp.ne.s32.totalorder %s137, %s138
    %p150 = scmp.eq.s32.totalorder %s18, 1
    %p151 = por %p149, %p150
    %p153 = scmp.ne.s32.totalorder %s138, %s152
    %p154 = scmp.eq.s32.totalorder %s18, 0
    %p155 = por %p153, %p154
    %s156 = ssub.s32 %s12, %s19
    %p157 = scmp.eq.s32.totalorder %s156, 0
    %s159 = sadd.s32 %s158, 1
    %s160 = scalar_select %p157, %s158, %s159
    %p163 = pneg %p157
    %p164 = scmp.eq.s32.totalorder %s12, 1
    %p165 = por %p163, %p164
    %p166 = scmp.ne.s32.totalorder %s158, %s161
    %p167 = scmp.eq.s32.totalorder %s12, 0
    %p168 = por %p166, %p167
    %p169 = scmp.ne.s32.totalorder %s158, %s161
    %p170 = scmp.eq.s32.totalorder %s17, 1
    %p171 = por %p169, %p170
    %p172 = scmp.ne.s32.totalorder %s161, %s162
    %p173 = scmp.eq.s32.totalorder %s17, 0
    %p174 = por %p172, %p173
    %p175 = scmp.ne.s32.totalorder %s161, %s162
    %p176 = scmp.eq.s32.totalorder %s18, 1
    %p177 = por %p175, %p176
    %p179 = scmp.ne.s32.totalorder %s162, %s178
    %p180 = scmp.eq.s32.totalorder %s18, 0
    %p181 = por %p179, %p180
    %p182 = scmp.le.s32.totalorder 1, %s12
    %p183 = scmp.lt.s32.totalorder %s12, 3
    %p184 = pnand %p182, %p183
    %p185 = pneg %p184
    // Predicated region
    $region9: #{block_forward.7} parent=5 // pred_check
      _
    $region10: #{block_forward.7} parent=5 // pred_check_branch
      %187 = sbr.rel (%p184) target = $region12
    $region11: #{block_forward.7} parent=5 // pred_region
      %s188 = ssub.s32 %s12, 1
      // Predicated region
      $region13: #{block_forward.7} parent=11 // pred_check
        %p189 = pneg %p59
      $region14: #{block_forward.7} parent=11 // pred_check_branch
        %191 = sbr.rel (%p189) target = $region16
      $region15: #{block_forward.7} parent=11 // pred_region
        _
      $region16: #{block_forward.7} parent=11 // pred_fallthru
        _
      // Predicated region
      $region17: #{block_forward.7} parent=11 // pred_check
        %p192 = pneg %p80
      $region18: #{block_forward.7} parent=11 // pred_check_branch
        %194 = sbr.rel (%p192) target = $region20
      $region19: #{block_forward.7} parent=11 // pred_region
        _
      $region20: #{block_forward.7} parent=11 // pred_fallthru
        _
      // Predicated region
      $region21: #{block_forward.7} parent=11 // pred_check
        %p195 = pneg %p127
      $region22: #{block_forward.7} parent=11 // pred_check_branch
        %197 = sbr.rel (%p195) target = $region24
      $region23: #{block_forward.7} parent=11 // pred_region
        _
      $region24: #{block_forward.7} parent=11 // pred_fallthru
        _
      // Predicated region
      $region25: #{block_forward.7} parent=11 // pred_check
        %p198 = pneg %p148
      $region26: #{block_forward.7} parent=11 // pred_check_branch
        %200 = sbr.rel (%p198) target = $region28
      $region27: #{block_forward.7} parent=11 // pred_region
        _
      $region28: #{block_forward.7} parent=11 // pred_fallthru
        _
    $region12: #{block_forward.7} parent=5 // pred_fallthru
      _
    %p201 = scmp.lt.s32.totalorder %s12, 2
    // Predicated region
    $region29: #{block_forward.7} parent=5 // pred_check
      %p202 = pneg %p201
    $region30: #{block_forward.7} parent=5 // pred_check_branch
      %204 = sbr.rel (%p202) target = $region32
    $region31: #{block_forward.7} parent=5 // pred_region
      // Predicated region
      $region33: #{block_forward.7} parent=31 // pred_check
        %p205 = pneg %p32
      $region34: #{block_forward.7} parent=31 // pred_check_branch
        %207 = sbr.rel (%p205) target = $region36
      $region35: #{block_forward.7} parent=31 // pred_region
        %p208 = scmp.lt.s32.totalorder %s12, 1
        %s209 = scalar_select %p208, %s12, 1
        %s210 = smul.addr %s209, 11
        %s211 = smul.addr %s210, 4
        %s212 = scalar_lea.vmem %s0, %s211
      $region36: #{block_forward.7} parent=31 // pred_fallthru
        _
      // Predicated region
      $region37: #{block_forward.7} parent=31 // pred_check
        %p213 = pneg %p100
      $region38: #{block_forward.7} parent=31 // pred_check_branch
        %215 = sbr.rel (%p213) target = $region40
      $region39: #{block_forward.7} parent=31 // pred_region
        %p216 = scmp.lt.s32.totalorder %s12, 1
        %s217 = scalar_select %p216, %s12, 1
        %s218 = smul.addr %s217, 11
        %s219 = smul.addr %s218, 4
        %s220 = scalar_lea.vmem %s3, %s219
      $region40: #{block_forward.7} parent=31 // pred_fallthru
        _
    $region32: #{block_forward.7} parent=5 // pred_fallthru
      _
    %p221 = scmp.le.s32.totalorder 1, %s12
    %p222 = scmp.lt.s32.totalorder %s12, 3
    %p223 = pnand %p221, %p222
    %p224 = pneg %p223
    // Predicated region
    $region41: #{block_forward.7} parent=5 // pred_check
      _
    $region42: #{block_forward.7} parent=5 // pred_check_branch
      %226 = sbr.rel (%p223) target = $region44
    $region43: #{block_forward.7} parent=5 // pred_region
      %s227 = ssub.s32 %s12, 1
      %p228 = scmp.lt.s32.totalorder %s17, 1
      %s229 = scalar_select %p228, %s17, 1
      %s230 = smul.addr %s229, 11
      %s231 = smul.addr %s230, 4
      %s232 = scalar_lea.vmem %s0, %s231
      %p233 = pneg %p38
      %p234 = pneg %p35
      %p235 = pneg %p59
      %p236 = pneg %p56
      %p237 = pneg %p80
      %p238 = pneg %p77
      %p239 = scmp.lt.s32.totalorder %s17, 1
      %s240 = scalar_select %p239, %s17, 1
      %s241 = smul.addr %s240, 11
      %s242 = smul.addr %s241, 4
      %s243 = scalar_lea.vmem %s3, %s242
      %p244 = pneg %p106
      %p245 = pneg %p103
      %p246 = pneg %p127
      %p247 = pneg %p124
      %p248 = pneg %p148
      %p249 = pneg %p145
      %p250 = pneg %p174
      %p251 = pneg %p171
      %p252 = scmp.lt.s32.totalorder %s17, 1
      %s253 = scalar_select %p252, %s17, 1
      %s254 = smul.addr %s253, 11
      %s255 = smul.addr %s254, 8
      %s256 = scalar_lea.vmem %s6, %s255
      %p257 = scmp.lt.s32.totalorder %s17, 1
      %s258 = scalar_select %p257, %s17, 1
      %s259 = smul.addr %s258, 11
      %s260 = smul.addr %s259, 4
      %s261 = scalar_lea.vmem %s0, %s260
      %p262 = scmp.lt.s32.totalorder %s17, 1
      %s263 = scalar_select %p262, %s17, 1
      %s264 = smul.addr %s263, 11
      %s265 = smul.addr %s264, 4
      %s266 = scalar_lea.vmem %s3, %s265
      %p267 = scmp.lt.s32.totalorder %s17, 1
      %s268 = scalar_select %p267, %s17, 1
      %s269 = smul.addr %s268, 11
      %s270 = smul.addr %s269, 8
      %s271 = scalar_lea.vmem %s6, %s270
      %v272 = vld [vmem:[%s261] sm:$0xf]
      %v273 = vld [vmem:[%s261 + $0x4] sm:$0xf]
      %v274 = vld [vmem:[%s261 + $0x8] sm:$0xf]
      %v275 = vld [vmem:[%s261 + $0xc] sm:$0xf]
      %v276 = vld [vmem:[%s261 + $0x10] sm:$0xf]
      %v277 = vld [vmem:[%s261 + $0x14] sm:$0xf]
      %v278 = vld [vmem:[%s261 + $0x18] sm:$0xf]
      %v279 = vld [vmem:[%s261 + $0x1c] sm:$0xf]
      %v280 = vld [vmem:[%s261 + $0x20] sm:$0xf]
      %v281 = vld [vmem:[%s261 + $0x24] sm:$0xf]
      %v282 = vld [vmem:[%s261 + $0x28] sm:$0xf]
      %v283 = vunpack.c.l.bf16 %v272
      %v284 = vunpack.c.l.bf16 %v273
      %v285 = vunpack.c.l.bf16 %v274
      %v286 = vunpack.c.l.bf16 %v275
      %v287 = vunpack.c.l.bf16 %v276
      %v288 = vunpack.c.l.bf16 %v277
      %v289 = vunpack.c.l.bf16 %v278
      %v290 = vunpack.c.l.bf16 %v279
      %v291 = vunpack.c.l.bf16 %v280
      %v292 = vunpack.c.l.bf16 %v281
      %v293 = vunpack.c.l.bf16 %v282
      %v294 = vld [vmem:[%s1] sm:$0x1]
      %v296 = vlaneseq
      %v297 = vshrl.u32 %v296, 7
      %v298 = vsub.s32 0, %v297
      %v299 = vrot.slane %v294, %v298
      %v301 = vmul.f32 %v283, %v299
      %v302 = vmul.f32 %v284, %v299
      %v303 = vmul.f32 %v285, %v299
      %v304 = vmul.f32 %v286, %v299
      %v305 = vmul.f32 %v287, %v299
      %v306 = vmul.f32 %v288, %v299
      %v307 = vmul.f32 %v289, %v299
      %v308 = vmul.f32 %v290, %v299
      %v309 = vmul.f32 %v291, %v299
      %v310 = vmul.f32 %v292, %v299
      %v311 = vmul.f32 %v293, %v299
      %v312 = vld [vmem:[%s2] sm:$0x1]
      %v314 = vlaneseq
      %v315 = vshrl.u32 %v314, 7
      %v316 = vsub.s32 0, %v315
      %v317 = vrot.slane %v312, %v316
      %v319 = vadd.f32 %v301, %v317
      %v320 = vadd.f32 %v302, %v317
      %v321 = vadd.f32 %v303, %v317
      %v322 = vadd.f32 %v304, %v317
      %v323 = vadd.f32 %v305, %v317
      %v324 = vadd.f32 %v306, %v317
      %v325 = vadd.f32 %v307, %v317
      %v326 = vadd.f32 %v308, %v317
      %v327 = vadd.f32 %v309, %v317
      %v328 = vadd.f32 %v310, %v317
      %v329 = vadd.f32 %v311, %v317
      %v330 = vld [vmem:[%s266] sm:$0xf]
      %v331 = vld [vmem:[%s266 + $0x4] sm:$0xf]
      %v332 = vld [vmem:[%s266 + $0x8] sm:$0xf]
      %v333 = vld [vmem:[%s266 + $0xc] sm:$0xf]
      %v334 = vld [vmem:[%s266 + $0x10] sm:$0xf]
      %v335 = vld [vmem:[%s266 + $0x14] sm:$0xf]
      %v336 = vld [vmem:[%s266 + $0x18] sm:$0xf]
      %v337 = vld [vmem:[%s266 + $0x1c] sm:$0xf]
      %v338 = vld [vmem:[%s266 + $0x20] sm:$0xf]
      %v339 = vld [vmem:[%s266 + $0x24] sm:$0xf]
      %v340 = vld [vmem:[%s266 + $0x28] sm:$0xf]
      %v341 = vunpack.c.l.bf16 %v330
      %v342 = vunpack.c.l.bf16 %v331
      %v343 = vunpack.c.l.bf16 %v332
      %v344 = vunpack.c.l.bf16 %v333
      %v345 = vunpack.c.l.bf16 %v334
      %v346 = vunpack.c.l.bf16 %v335
      %v347 = vunpack.c.l.bf16 %v336
      %v348 = vunpack.c.l.bf16 %v337
      %v349 = vunpack.c.l.bf16 %v338
      %v350 = vunpack.c.l.bf16 %v339
      %v351 = vunpack.c.l.bf16 %v340
      %v352 = vld [vmem:[%s4] sm:$0x1]
      %v354 = vlaneseq
      %v355 = vshrl.u32 %v354, 7
      %v356 = vsub.s32 0, %v355
      %v357 = vrot.slane %v352, %v356
      %v359 = vmul.f32 %v341, %v357
      %v360 = vmul.f32 %v342, %v357
      %v361 = vmul.f32 %v343, %v357
      %v362 = vmul.f32 %v344, %v357
      %v363 = vmul.f32 %v345, %v357
      %v364 = vmul.f32 %v346, %v357
      %v365 = vmul.f32 %v347, %v357
      %v366 = vmul.f32 %v348, %v357
      %v367 = vmul.f32 %v349, %v357
      %v368 = vmul.f32 %v350, %v357
      %v369 = vmul.f32 %v351, %v357
      %v370 = vadd.f32 %v319, %v359
      %v371 = vadd.f32 %v320, %v360
      %v372 = vadd.f32 %v321, %v361
      %v373 = vadd.f32 %v322, %v362
      %v374 = vadd.f32 %v323, %v363
      %v375 = vadd.f32 %v324, %v364
      %v376 = vadd.f32 %v325, %v365
      %v377 = vadd.f32 %v326, %v366
      %v378 = vadd.f32 %v327, %v367
      %v379 = vadd.f32 %v328, %v368
      %v380 = vadd.f32 %v329, %v369
      %v381 = vld [vmem:[%s5] sm:$0x1]
      %v383 = vlaneseq
      %v384 = vshrl.u32 %v383, 7
      %v385 = vsub.s32 0, %v384
      %v386 = vrot.slane %v381, %v385
      %v388 = vadd.f32 %v370, %v386
      %v389 = vadd.f32 %v371, %v386
      %v390 = vadd.f32 %v372, %v386
      %v391 = vadd.f32 %v373, %v386
      %v392 = vadd.f32 %v374, %v386
      %v393 = vadd.f32 %v375, %v386
      %v394 = vadd.f32 %v376, %v386
      %v395 = vadd.f32 %v377, %v386
      %v396 = vadd.f32 %v378, %v386
      %v397 = vadd.f32 %v379, %v386
      %v398 = vadd.f32 %v380, %v386
      %v399 = vmax.f32 %v388, 0.0
      %v400 = vmax.f32 %v389, 0.0
      %v401 = vmax.f32 %v390, 0.0
      %v402 = vmax.f32 %v391, 0.0
      %v403 = vmax.f32 %v392, 0.0
      %v404 = vmax.f32 %v393, 0.0
      %v405 = vmax.f32 %v394, 0.0
      %v406 = vmax.f32 %v395, 0.0
      %v407 = vmax.f32 %v396, 0.0
      %v408 = vmax.f32 %v397, 0.0
      %v409 = vmax.f32 %v398, 0.0
      %410 = vst [vmem:[%s271] sm:$0xff] %v399
      %411 = vst [vmem:[%s271 + $0x8] sm:$0xff] %v400
      %412 = vst [vmem:[%s271 + $0x10] sm:$0xff] %v401
      %413 = vst [vmem:[%s271 + $0x18] sm:$0xff] %v402
      %414 = vst [vmem:[%s271 + $0x20] sm:$0xff] %v403
      %415 = vst [vmem:[%s271 + $0x28] sm:$0xff] %v404
      %416 = vst [vmem:[%s271 + $0x30] sm:$0xff] %v405
      %417 = vst [vmem:[%s271 + $0x38] sm:$0xff] %v406
      %418 = vst [vmem:[%s271 + $0x40] sm:$0xff] %v407
      %419 = vst [vmem:[%s271 + $0x48] sm:$0xff] %v408
      %420 = vst [vmem:[%s271 + $0x50] sm:$0xff] %v409
      %p421 = scmp.lt.s32.totalorder %s17, 1
      %s422 = scalar_select %p421, %s17, 1
      %s423 = smul.addr %s422, 11
      %s424 = smul.addr %s423, 8
      %s425 = scalar_lea.vmem %s6, %s424
      // Predicated region
      $region45: #{block_forward.7} parent=43 // pred_check
        %p426 = pneg %p171
      $region46: #{block_forward.7} parent=43 // pred_check_branch
        %428 = sbr.rel (%p426) target = $region48
      $region47: #{block_forward.7} parent=43 // pred_region
        _
      $region48: #{block_forward.7} parent=43 // pred_fallthru
        _
    $region44: #{block_forward.7} parent=5 // pred_fallthru
      _
    %p429 = scmp.le.s32.totalorder 2, %s12
    // Predicated region
    $region49: #{block_forward.7} parent=5 // pred_check
      %p430 = pneg %p429
    $region50: #{block_forward.7} parent=5 // pred_check_branch
      %432 = sbr.rel (%p430) target = $region52
    $region51: #{block_forward.7} parent=5 // pred_region
      %s433 = ssub.s32 %s12, 2
      // Predicated region
      $region53: #{block_forward.7} parent=51 // pred_check
        %p434 = pneg %p177
      $region54: #{block_forward.7} parent=51 // pred_check_branch
        %436 = sbr.rel (%p434) target = $region56
      $region55: #{block_forward.7} parent=51 // pred_region
        %p437 = scmp.lt.s32.totalorder %s18, 1
        %s438 = scalar_select %p437, %s18, 1
        %s439 = smul.addr %s438, 11
        %s440 = smul.addr %s439, 8
        %s441 = scalar_lea.vmem %s6, %s440
      $region56: #{block_forward.7} parent=51 // pred_fallthru
        _
    $region52: #{block_forward.7} parent=5 // pred_fallthru
      _
  $region6: #{block_forward.7} parent=0 // loop_footer
    %s16 = sadd.s32 1, %s12
  $region7: #{block_forward.7} parent=0 // loop_footer_branch
    %11 = sbr.rel target = $region3
  $region8: #{block_forward.7} parent=0 // loop_exit
    _

// kernel: block_forward.6
$region0: #{block_forward.6}
  #allocation0 [shape = 'u32[]', space=smem, size = 0x4, offset = 0x4, fixed_abs, tag = 'smem constant byte address 0x4 - core index']
  #allocation1 [shape = 'u32[144,128]{1,0:T(1,128)}', space=vmem, size = 0x12000, scoped, tag = 'internal scratch']
  %s0 = inlined_call_operand.vmem [shape: bf16[2,121,128], index: 0, kind: input, shape index: {}]
  %s1 = inlined_call_operand.vmem [shape: bf16[9,128,128], index: 1, kind: input, shape index: {}]
  %s2 = inlined_call_operand.vmem [shape: bf16[2,88,128], index: 2, kind: input, shape index: {}]
  %s3 = inlined_call_operand.vmem [shape: bf16[128,128], index: 3, kind: input, shape index: {}]
  %s4 = inlined_call_operand.vmem [shape: bf16[2,88,128], index: 4, kind: output, shape index: {0}]
  %s5 = inlined_call_operand.vmem [shape: bf16[2,88,128], index: 5, kind: output, shape index: {1}]
  %s6 = inlined_call_operand.vmem [shape: f32[1,256], index: 6, kind: output, shape index: {2}]
  %s7 = inlined_call_operand.vmem [shape: f32[1,256], index: 7, kind: output, shape index: {3}]
  %s8 = inlined_call_operand.vmem [shape: f32[1,256], index: 8, kind: output, shape index: {4}]
  %s9 = inlined_call_operand.vmem [shape: f32[1,256], index: 9, kind: output, shape index: {5}]
  %10 = xla_tuple %s4, %s5, %s6, %s7, %s8, %s9
  %s11 = sld [smem:[#allocation0]]
  $region89: #{block_forward.6} parent=0
    _
  %s13 = ssub.s32 1, %s11
  %s14 = scalar_select 0, %s13, %s11
  loop: start=0, step=1, limit=4
  $region2: #{block_forward.6} parent=0 // loop_pre_header
    _
  $region3: #{block_forward.6} parent=0 // loop_header
    %s16 = sphi 0, %s20
    %p17 = scmp.ge.s32.totalorder %s16, 4
    %s26 = sphi 0, %s28
    %s29 = sphi 0, %s26
    %s30 = sphi 0, %s29
    %s46 = sphi 0, %s30
    %s50 = sphi 0, %s50
    %s52 = sphi 0, %s50
    %s53 = sphi 0, %s52
    %s67 = sphi 0, %s53
    %s73 = sphi 0, %s75
    %s76 = sphi 0, %s73
    %s77 = sphi 0, %s76
    %s93 = sphi 0, %s77
    %s97 = sphi 0, %s97
    %s99 = sphi 0, %s97
    %s100 = sphi 0, %s99
    %s114 = sphi 0, %s100
    %s120 = sphi 0, %s122
    %s123 = sphi 0, %s120
    %s124 = sphi 0, %s123
    %s140 = sphi 0, %s124
    %s146 = sphi 0, %s148
    %s149 = sphi 0, %s146
    %s150 = sphi 0, %s149
    %s166 = sphi 0, %s150
    %s172 = sphi 0, %s174
    %s175 = sphi 0, %s172
    %s176 = sphi 0, %s175
    %s192 = sphi 0, %s176
    %s198 = sphi 0, %s200
    %s201 = sphi 0, %s198
    %s202 = sphi 0, %s201
    %s218 = sphi 0, %s202
    %s224 = sphi 0, %s226
    %s227 = sphi 0, %s224
    %s228 = sphi 0, %s227
    %s244 = sphi 0, %s228
    %s250 = sphi 0, %s252
    %s253 = sphi 0, %s250
    %s254 = sphi 0, %s253
    %s270 = sphi 0, %s254
  $region4: #{block_forward.6} parent=0 // loop_header_branch
    %19 = sbr.rel (%p17) target = $region8
  $region5: #{block_forward.6} parent=0 // loop_body
    %s21 = ssub.s32 %s16, 1
    %s22 = ssub.s32 %s16, 2
    %s23 = sadd.s32 %s16, 1
    %s24 = ssub.s32 %s16, %s23
    %p25 = scmp.eq.s32.totalorder %s24, 0
    %s27 = sadd.s32 %s26, 1
    %s28 = scalar_select %p25, %s26, %s27
    %p31 = pneg %p25
    %p32 = scmp.eq.s32.totalorder %s16, 1
    %p33 = por %p31, %p32
    %p34 = scmp.ne.s32.totalorder %s26, %s29
    %p35 = scmp.eq.s32.totalorder %s16, 0
    %p36 = por %p34, %p35
    %p37 = scmp.ne.s32.totalorder %s26, %s29
    %p38 = scmp.eq.s32.totalorder %s21, 1
    %p39 = por %p37, %p38
    %p40 = scmp.ne.s32.totalorder %s29, %s30
    %p41 = scmp.eq.s32.totalorder %s21, 0
    %p42 = por %p40, %p41
    %p43 = scmp.ne.s32.totalorder %s29, %s30
    %p44 = scmp.eq.s32.totalorder %s22, 1
    %p45 = por %p43, %p44
    %p47 = scmp.ne.s32.totalorder %s30, %s46
    %p48 = scmp.eq.s32.totalorder %s22, 0
    %p49 = por %p47, %p48
    %s51 = sadd.s32 %s50, 1
    %p54 = scmp.eq.s32.totalorder %s16, 1
    %p55 = scmp.ne.s32.totalorder %s50, %s52
    %p56 = scmp.eq.s32.totalorder %s16, 0
    %p57 = por %p55, %p56
    %p58 = scmp.ne.s32.totalorder %s50, %s52
    %p59 = scmp.eq.s32.totalorder %s21, 1
    %p60 = por %p58, %p59
    %p61 = scmp.ne.s32.totalorder %s52, %s53
    %p62 = scmp.eq.s32.totalorder %s21, 0
    %p63 = por %p61, %p62
    %p64 = scmp.ne.s32.totalorder %s52, %s53
    %p65 = scmp.eq.s32.totalorder %s22, 1
    %p66 = por %p64, %p65
    %p68 = scmp.ne.s32.totalorder %s53, %s67
    %p69 = scmp.eq.s32.totalorder %s22, 0
    %p70 = por %p68, %p69
    %s71 = ssub.s32 %s16, %s23
    %p72 = scmp.eq.s32.totalorder %s71, 0
    %s74 = sadd.s32 %s73, 1
    %s75 = scalar_select %p72, %s73, %s74
    %p78 = pneg %p72
    %p79 = scmp.eq.s32.totalorder %s16, 1
    %p80 = por %p78, %p79
    %p81 = scmp.ne.s32.totalorder %s73, %s76
    %p82 = scmp.eq.s32.totalorder %s16, 0
    %p83 = por %p81, %p82
    %p84 = scmp.ne.s32.totalorder %s73, %s76
    %p85 = scmp.eq.s32.totalorder %s21, 1
    %p86 = por %p84, %p85
    %p87 = scmp.ne.s32.totalorder %s76, %s77
    %p88 = scmp.eq.s32.totalorder %s21, 0
    %p89 = por %p87, %p88
    %p90 = scmp.ne.s32.totalorder %s76, %s77
    %p91 = scmp.eq.s32.totalorder %s22, 1
    %p92 = por %p90, %p91
    %p94 = scmp.ne.s32.totalorder %s77, %s93
    %p95 = scmp.eq.s32.totalorder %s22, 0
    %p96 = por %p94, %p95
    %s98 = sadd.s32 %s97, 1
    %p101 = scmp.eq.s32.totalorder %s16, 1
    %p102 = scmp.ne.s32.totalorder %s97, %s99
    %p103 = scmp.eq.s32.totalorder %s16, 0
    %p104 = por %p102, %p103
    %p105 = scmp.ne.s32.totalorder %s97, %s99
    %p106 = scmp.eq.s32.totalorder %s21, 1
    %p107 = por %p105, %p106
    %p108 = scmp.ne.s32.totalorder %s99, %s100
    %p109 = scmp.eq.s32.totalorder %s21, 0
    %p110 = por %p108, %p109
    %p111 = scmp.ne.s32.totalorder %s99, %s100
    %p112 = scmp.eq.s32.totalorder %s22, 1
    %p113 = por %p111, %p112
    %p115 = scmp.ne.s32.totalorder %s100, %s114
    %p116 = scmp.eq.s32.totalorder %s22, 0
    %p117 = por %p115, %p116
    %s118 = ssub.s32 %s16, %s23
    %p119 = scmp.eq.s32.totalorder %s118, 0
    %s121 = sadd.s32 %s120, 1
    %s122 = scalar_select %p119, %s120, %s121
    %p125 = pneg %p119
    %p126 = scmp.eq.s32.totalorder %s16, 1
    %p127 = por %p125, %p126
    %p128 = scmp.ne.s32.totalorder %s120, %s123
    %p129 = scmp.eq.s32.totalorder %s16, 0
    %p130 = por %p128, %p129
    %p131 = scmp.ne.s32.totalorder %s120, %s123
    %p132 = scmp.eq.s32.totalorder %s21, 1
    %p133 = por %p131, %p132
    %p134 = scmp.ne.s32.totalorder %s123, %s124
    %p135 = scmp.eq.s32.totalorder %s21, 0
    %p136 = por %p134, %p135
    %p137 = scmp.ne.s32.totalorder %s123, %s124
    %p138 = scmp.eq.s32.totalorder %s22, 1
    %p139 = por %p137, %p138
    %p141 = scmp.ne.s32.totalorder %s124, %s140
    %p142 = scmp.eq.s32.totalorder %s22, 0
    %p143 = por %p141, %p142
    %s144 = ssub.s32 %s16, %s23
    %p145 = scmp.eq.s32.totalorder %s144, 0
    %s147 = sadd.s32 %s146, 1
    %s148 = scalar_select %p145, %s146, %s147
    %p151 = pneg %p145
    %p152 = scmp.eq.s32.totalorder %s16, 1
    %p153 = por %p151, %p152
    %p154 = scmp.ne.s32.totalorder %s146, %s149
    %p155 = scmp.eq.s32.totalorder %s16, 0
    %p156 = por %p154, %p155
    %p157 = scmp.ne.s32.totalorder %s146, %s149
    %p158 = scmp.eq.s32.totalorder %s21, 1
    %p159 = por %p157, %p158
    %p160 = scmp.ne.s32.totalorder %s149, %s150
    %p161 = scmp.eq.s32.totalorder %s21, 0
    %p162 = por %p160, %p161
    %p163 = scmp.ne.s32.totalorder %s149, %s150
    %p164 = scmp.eq.s32.totalorder %s22, 1
    %p165 = por %p163, %p164
    %p167 = scmp.ne.s32.totalorder %s150, %s166
    %p168 = scmp.eq.s32.totalorder %s22, 0
    %p169 = por %p167, %p168
    %s170 = ssub.s32 %s16, %s23
    %p171 = scmp.eq.s32.totalorder %s170, 0
    %s173 = sadd.s32 %s172, 1
    %s174 = scalar_select %p171, %s172, %s173
    %p177 = pneg %p171
    %p178 = scmp.eq.s32.totalorder %s16, 1
    %p179 = por %p177, %p178
    %p180 = scmp.ne.s32.totalorder %s172, %s175
    %p181 = scmp.eq.s32.totalorder %s16, 0
    %p182 = por %p180, %p181
    %p183 = scmp.ne.s32.totalorder %s172, %s175
    %p184 = scmp.eq.s32.totalorder %s21, 1
    %p185 = por %p183, %p184
    %p186 = scmp.ne.s32.totalorder %s175, %s176
    %p187 = scmp.eq.s32.totalorder %s21, 0
    %p188 = por %p186, %p187
    %p189 = scmp.ne.s32.totalorder %s175, %s176
    %p190 = scmp.eq.s32.totalorder %s22, 1
    %p191 = por %p189, %p190
    %p193 = scmp.ne.s32.totalorder %s176, %s192
    %p194 = scmp.eq.s32.totalorder %s22, 0
    %p195 = por %p193, %p194
    %s196 = ssub.s32 %s16, %s23
    %p197 = scmp.eq.s32.totalorder %s196, 0
    %s199 = sadd.s32 %s198, 1
    %s200 = scalar_select %p197, %s198, %s199
    %p203 = pneg %p197
    %p204 = scmp.eq.s32.totalorder %s16, 1
    %p205 = por %p203, %p204
    %p206 = scmp.ne.s32.totalorder %s198, %s201
    %p207 = scmp.eq.s32.totalorder %s16, 0
    %p208 = por %p206, %p207
    %p209 = scmp.ne.s32.totalorder %s198, %s201
    %p210 = scmp.eq.s32.totalorder %s21, 1
    %p211 = por %p209, %p210
    %p212 = scmp.ne.s32.totalorder %s201, %s202
    %p213 = scmp.eq.s32.totalorder %s21, 0
    %p214 = por %p212, %p213
    %p215 = scmp.ne.s32.totalorder %s201, %s202
    %p216 = scmp.eq.s32.totalorder %s22, 1
    %p217 = por %p215, %p216
    %p219 = scmp.ne.s32.totalorder %s202, %s218
    %p220 = scmp.eq.s32.totalorder %s22, 0
    %p221 = por %p219, %p220
    %s222 = ssub.s32 %s16, %s23
    %p223 = scmp.eq.s32.totalorder %s222, 0
    %s225 = sadd.s32 %s224, 1
    %s226 = scalar_select %p223, %s224, %s225
    %p229 = pneg %p223
    %p230 = scmp.eq.s32.totalorder %s16, 1
    %p231 = por %p229, %p230
    %p232 = scmp.ne.s32.totalorder %s224, %s227
    %p233 = scmp.eq.s32.totalorder %s16, 0
    %p234 = por %p232, %p233
    %p235 = scmp.ne.s32.totalorder %s224, %s227
    %p236 = scmp.eq.s32.totalorder %s21, 1
    %p237 = por %p235, %p236
    %p238 = scmp.ne.s32.totalorder %s227, %s228
    %p239 = scmp.eq.s32.totalorder %s21, 0
    %p240 = por %p238, %p239
    %p241 = scmp.ne.s32.totalorder %s227, %s228
    %p242 = scmp.eq.s32.totalorder %s22, 1
    %p243 = por %p241, %p242
    %p245 = scmp.ne.s32.totalorder %s228, %s244
    %p246 = scmp.eq.s32.totalorder %s22, 0
    %p247 = por %p245, %p246
    %s248 = ssub.s32 %s16, %s23
    %p249 = scmp.eq.s32.totalorder %s248, 0
    %s251 = sadd.s32 %s250, 1
    %s252 = scalar_select %p249, %s250, %s251
    %p255 = pneg %p249
    %p256 = scmp.eq.s32.totalorder %s16, 1
    %p257 = por %p255, %p256
    %p258 = scmp.ne.s32.totalorder %s250, %s253
    %p259 = scmp.eq.s32.totalorder %s16, 0
    %p260 = por %p258, %p259
    %p261 = scmp.ne.s32.totalorder %s250, %s253
    %p262 = scmp.eq.s32.totalorder %s21, 1
    %p263 = por %p261, %p262
    %p264 = scmp.ne.s32.totalorder %s253, %s254
    %p265 = scmp.eq.s32.totalorder %s21, 0
    %p266 = por %p264, %p265
    %p267 = scmp.ne.s32.totalorder %s253, %s254
    %p268 = scmp.eq.s32.totalorder %s22, 1
    %p269 = por %p267, %p268
    %p271 = scmp.ne.s32.totalorder %s254, %s270
    %p272 = scmp.eq.s32.totalorder %s22, 0
    %p273 = por %p271, %p272
    %p274 = scmp.le.s32.totalorder 1, %s16
    %p275 = scmp.lt.s32.totalorder %s16, 3
    %p276 = pnand %p274, %p275
    %p277 = pneg %p276
    // Predicated region
    $region9: #{block_forward.6} parent=5 // pred_check
      _
    $region10: #{block_forward.6} parent=5 // pred_check_branch
      %279 = sbr.rel (%p276) target = $region12
    $region11: #{block_forward.6} parent=5 // pred_region
      %s280 = ssub.s32 %s16, 1
      // Predicated region
      $region13: #{block_forward.6} parent=11 // pred_check
        %p281 = pneg %p63
      $region14: #{block_forward.6} parent=11 // pred_check_branch
        %283 = sbr.rel (%p281) target = $region16
      $region15: #{block_forward.6} parent=11 // pred_region
        _
      $region16: #{block_forward.6} parent=11 // pred_fallthru
        _
      // Predicated region
      $region17: #{block_forward.6} parent=11 // pred_check
        %p284 = pneg %p110
      $region18: #{block_forward.6} parent=11 // pred_check_branch
        %286 = sbr.rel (%p284) target = $region20
      $region19: #{block_forward.6} parent=11 // pred_region
        _
      $region20: #{block_forward.6} parent=11 // pred_fallthru
        _
    $region12: #{block_forward.6} parent=5 // pred_fallthru
      _
    %p287 = scmp.lt.s32.totalorder %s16, 2
    // Predicated region
    $region21: #{block_forward.6} parent=5 // pred_check
      %p288 = pneg %p287
    $region22: #{block_forward.6} parent=5 // pred_check_branch
      %290 = sbr.rel (%p288) target = $region24
    $region23: #{block_forward.6} parent=5 // pred_region
      // Predicated region
      $region25: #{block_forward.6} parent=23 // pred_check
        %p291 = pneg %p36
      $region26: #{block_forward.6} parent=23 // pred_check_branch
        %293 = sbr.rel (%p291) target = $region28
      $region27: #{block_forward.6} parent=23 // pred_region
        %p294 = scmp.lt.s32.totalorder %s16, 1
        %s295 = scalar_select %p294, %s16, 1
        %s296 = smul.addr %s295, 16
        %s297 = smul.addr %s296, 4
        %s298 = scalar_lea.vmem %s0, %s297
      $region28: #{block_forward.6} parent=23 // pred_fallthru
        _
      // Predicated region
      $region29: #{block_forward.6} parent=23 // pred_check
        %p299 = pneg %p83
      $region30: #{block_forward.6} parent=23 // pred_check_branch
        %301 = sbr.rel (%p299) target = $region32
      $region31: #{block_forward.6} parent=23 // pred_region
        %p302 = scmp.lt.s32.totalorder %s16, 1
        %s303 = scalar_select %p302, %s16, 1
        %s304 = smul.addr %s303, 11
        %s305 = smul.addr %s304, 4
        %s306 = scalar_lea.vmem %s2, %s305
      $region32: #{block_forward.6} parent=23 // pred_fallthru
        _
    $region24: #{block_forward.6} parent=5 // pred_fallthru
      _
    %p307 = scmp.le.s32.totalorder 1, %s16
    %p308 = scmp.lt.s32.totalorder %s16, 3
    %p309 = pnand %p307, %p308
    %p310 = pneg %p309
    // Predicated region
    $region33: #{block_forward.6} parent=5 // pred_check
      _
    $region34: #{block_forward.6} parent=5 // pred_check_branch
      %312 = sbr.rel (%p309) target = $region36
    $region35: #{block_forward.6} parent=5 // pred_region
      %s313 = ssub.s32 %s16, 1
      %p314 = scmp.lt.s32.totalorder %s21, 1
      %s315 = scalar_select %p314, %s21, 1
      %s316 = smul.addr %s315, 16
      %s317 = smul.addr %s316, 4
      %s318 = scalar_lea.vmem %s0, %s317
      %p319 = pneg %p42
      %p320 = pneg %p39
      %p321 = pneg %p63
      %p322 = pneg %p60
      %p323 = scmp.lt.s32.totalorder %s21, 1
      %s324 = scalar_select %p323, %s21, 1
      %s325 = smul.addr %s324, 11
      %s326 = smul.addr %s325, 4
      %s327 = scalar_lea.vmem %s2, %s326
      %p328 = pneg %p89
      %p329 = pneg %p86
      %p330 = pneg %p110
      %p331 = pneg %p107
      %p332 = pneg %p136
      %p333 = pneg %p133
      %p334 = scmp.lt.s32.totalorder %s21, 1
      %s335 = scalar_select %p334, %s21, 1
      %s336 = smul.addr %s335, 11
      %s337 = smul.addr %s336, 4
      %s338 = scalar_lea.vmem %s4, %s337
      %p339 = pneg %p162
      %p340 = pneg %p159
      %p341 = scmp.lt.s32.totalorder %s21, 1
      %s342 = scalar_select %p341, %s21, 1
      %s343 = smul.addr %s342, 11
      %s344 = smul.addr %s343, 4
      %s345 = scalar_lea.vmem %s5, %s344
      %p346 = pneg %p188
      %p347 = pneg %p185
      %p348 = scmp.lt.s32.totalorder %s21, 1
      %s349 = scalar_select %p348, %s21, 1
      %s350 = scalar_lea.vmem %s6, %s349
      %p351 = pneg %p214
      %p352 = pneg %p211
      %p353 = scmp.lt.s32.totalorder %s21, 1
      %s354 = scalar_select %p353, %s21, 1
      %s355 = scalar_lea.vmem %s7, %s354
      %p356 = pneg %p240
      %p357 = pneg %p237
      %p358 = scmp.lt.s32.totalorder %s21, 1
      %s359 = scalar_select %p358, %s21, 1
      %s360 = scalar_lea.vmem %s8, %s359
      %p361 = pneg %p266
      %p362 = pneg %p263
      %p363 = scmp.lt.s32.totalorder %s21, 1
      %s364 = scalar_select %p363, %s21, 1
      %s365 = scalar_lea.vmem %s9, %s364
      %p366 = scmp.lt.s32.totalorder %s21, 1
      %s367 = scalar_select %p366, %s21, 1
      %s368 = smul.addr %s367, 16
      %s369 = smul.addr %s368, 4
      %s370 = scalar_lea.vmem %s0, %s369
      %p371 = scmp.lt.s32.totalorder %s21, 1
      %s372 = scalar_select %p371, %s21, 1
      %s373 = smul.addr %s372, 11
      %s374 = smul.addr %s373, 4
      %s375 = scalar_lea.vmem %s2, %s374
      %p376 = scmp.lt.s32.totalorder %s21, 1
      %s377 = scalar_select %p376, %s21, 1
      %s378 = smul.addr %s377, 11
      %s379 = smul.addr %s378, 4
      %s380 = scalar_lea.vmem %s4, %s379
      %p381 = scmp.lt.s32.totalorder %s21, 1
      %s382 = scalar_select %p381, %s21, 1
      %s383 = smul.addr %s382, 11
      %s384 = smul.addr %s383, 4
      %s385 = scalar_lea.vmem %s5, %s384
      %p386 = scmp.lt.s32.totalorder %s21, 1
      %s387 = scalar_select %p386, %s21, 1
      %s388 = scalar_lea.vmem %s6, %s387
      %p389 = scmp.lt.s32.totalorder %s21, 1
      %s390 = scalar_select %p389, %s21, 1
      %s391 = scalar_lea.vmem %s7, %s390
      %p392 = scmp.lt.s32.totalorder %s21, 1
      %s393 = scalar_select %p392, %s21, 1
      %s394 = scalar_lea.vmem %s8, %s393
      %p395 = scmp.lt.s32.totalorder %s21, 1
      %s396 = scalar_select %p395, %s21, 1
      %s397 = scalar_lea.vmem %s9, %s396
      %v399 = vld [vmem:[%s370] sm:$0xf]
      %v400 = vld [vmem:[%s370 + $0x4] sm:$0xf]
      %v401 = vld [vmem:[%s370 + $0x8] sm:$0xf]
      %v402 = vld [vmem:[%s370 + $0xc] sm:$0xf]
      %v403 = vld [vmem:[%s370 + $0x10] sm:$0xf]
      %v404 = vld [vmem:[%s370 + $0x14] sm:$0xf]
      %v405 = vld [vmem:[%s370 + $0x18] sm:$0xf]
      %v406 = vld [vmem:[%s370 + $0x1c] sm:$0xf]
      %v407 = vld [vmem:[%s370 + $0x20] sm:$0xf]
      %v408 = vld [vmem:[%s370 + $0x24] sm:$0xf]
      %v409 = vld [vmem:[%s370 + $0x28] sm:$0xf]
      %v410 = vld [vmem:[%s1] sm:$0xf]
      %v411 = vld [vmem:[%s1 + $0x4] sm:$0xf]
      %v412 = vld [vmem:[%s1 + $0x8] sm:$0xf]
      %v413 = vld [vmem:[%s1 + $0xc] sm:$0xf]
      %v414 = vld [vmem:[%s1 + $0x10] sm:$0xf]
      %v415 = vld [vmem:[%s1 + $0x14] sm:$0xf]
      %v416 = vld [vmem:[%s1 + $0x18] sm:$0xf]
      %v417 = vld [vmem:[%s1 + $0x1c] sm:$0xf]
      %v418 = vld [vmem:[%s1 + $0x20] sm:$0xf]
      %v419 = vld [vmem:[%s1 + $0x24] sm:$0xf]
      %v420 = vld [vmem:[%s1 + $0x28] sm:$0xf]
      %v421 = vld [vmem:[%s1 + $0x2c] sm:$0xf]
      %v422 = vld [vmem:[%s1 + $0x30] sm:$0xf]
      %v423 = vld [vmem:[%s1 + $0x34] sm:$0xf]
      %v424 = vld [vmem:[%s1 + $0x38] sm:$0xf]
      %v425 = vld [vmem:[%s1 + $0x3c] sm:$0xf]
      %v426 = vld [vmem:[%s370 + $0x2c] sm:$0x1]
      %s427 = scalar_lea.vmem %s1, 64
      %v428 = vld [vmem:[%s427] sm:$0xf]
      %v429 = vld [vmem:[%s427 + $0x4] sm:$0xf]
      %v430 = vld [vmem:[%s427 + $0x8] sm:$0xf]
      %v431 = vld [vmem:[%s427 + $0xc] sm:$0xf]
      %v432 = vld [vmem:[%s427 + $0x10] sm:$0xf]
      %v433 = vld [vmem:[%s427 + $0x14] sm:$0xf]
      %v434 = vld [vmem:[%s427 + $0x18] sm:$0xf]
      %v435 = vld [vmem:[%s427 + $0x1c] sm:$0xf]
      %v436 = vld [vmem:[%s427 + $0x20] sm:$0xf]
      %v437 = vld [vmem:[%s427 + $0x24] sm:$0xf]
      %v438 = vld [vmem:[%s427 + $0x28] sm:$0xf]
      %v439 = vld [vmem:[%s427 + $0x2c] sm:$0xf]
      %v440 = vld [vmem:[%s427 + $0x30] sm:$0xf]
      %v441 = vld [vmem:[%s427 + $0x34] sm:$0xf]
      %v442 = vld [vmem:[%s427 + $0x38] sm:$0xf]
      %v443 = vld [vmem:[%s427 + $0x3c] sm:$0xf]
      %v456 = vunpack.c.l.b16 %v399
      %v457 = vunpack.c.l.b16 %v400
      %v458 = vunpack.c.l.b16 %v401
      %v459 = vunpack.c.l.b16 %v402
      %v460 = vunpack.c.l.b16 %v403
      %v461 = vunpack.c.l.b16 %v404
      %v462 = vunpack.c.l.b16 %v405
      %v463 = vunpack.c.l.b16 %v406
      %v464 = vunpack.c.l.b16 %v407
      %v465 = vunpack.c.l.b16 %v408
      %v466 = vunpack.c.l.b16 %v409
      %v467 = vunpack.c.l.b16 %v426
      %v468 = vpack.c.b16 %v457, %v456
      %v469 = vpack.c.b16 %v459, %v458
      %v470 = vpack.c.b16 %v461, %v460
      %v471 = vpack.c.b16 %v463, %v462
      %v472 = vpack.c.b16 %v465, %v464
      %v473 = vpack.c.b16 %v467, %v466
      %vm474 = vsmask.f32 7424
      %v476 = vshrl.u32 %v468, 16
      %v478 = vshll.u32 %v468, 16
      %v480 = vrot.slane %v478, 1
      %v481 = vor.u32 %v476, %v480
      %v483 = vshll.u32 %v469, 16
      %v485 = vrot.slane %v483, 1
      %v486 = vsel %vm474, %v481, %v485
      %v487 = vshrl.u32 %v469, 16
      %v489 = vor.u32 %v487, %v485
      %v491 = vshll.u32 %v470, 16
      %v493 = vrot.slane %v491, 1
      %v494 = vsel %vm474, %v489, %v493
      %v495 = vshrl.u32 %v470, 16
      %v497 = vor.u32 %v495, %v493
      %v499 = vshll.u32 %v471, 16
      %v501 = vrot.slane %v499, 1
      %v502 = vsel %vm474, %v497, %v501
      %v503 = vshrl.u32 %v471, 16
      %v505 = vor.u32 %v503, %v501
      %v507 = vshll.u32 %v472, 16
      %v509 = vrot.slane %v507, 1
      %v510 = vsel %vm474, %v505, %v509
      %v511 = vshrl.u32 %v472, 16
      %v513 = vor.u32 %v511, %v509
      %v515 = vshll.u32 %v473, 16
      %v517 = vrot.slane %v515, 1
      %v518 = vsel %vm474, %v513, %v517
      %v519 = vshrl.u32 %v473, 16
      %v521 = vor.u32 %v519, %v517
      %v544 = vunpack.c.l.b16 %v428
      %v545 = vunpack.c.l.b16 %v429
      %v546 = vunpack.c.l.b16 %v430
      %v547 = vunpack.c.l.b16 %v431
      %v548 = vunpack.c.l.b16 %v432
      %v549 = vunpack.c.l.b16 %v433
      %v550 = vunpack.c.l.b16 %v434
      %v551 = vunpack.c.l.b16 %v435
      %v552 = vunpack.c.l.b16 %v436
      %v553 = vunpack.c.l.b16 %v437
      %v554 = vunpack.c.l.b16 %v438
      %v555 = vunpack.c.l.b16 %v439
      %v556 = vunpack.c.l.b16 %v440
      %v557 = vunpack.c.l.b16 %v441
      %v558 = vunpack.c.l.b16 %v442
      %v559 = vunpack.c.l.b16 %v443
      %v560 = vpack.c.b16 %v545, %v544
      %v561 = vpack.c.b16 %v547, %v546
      %v562 = vpack.c.b16 %v549, %v548
      %v563 = vpack.c.b16 %v551, %v550
      %v564 = vpack.c.b16 %v553, %v552
      %v565 = vpack.c.b16 %v555, %v554
      %v566 = vpack.c.b16 %v557, %v556
      %v567 = vpack.c.b16 %v559, %v558
      %576 = vmatprep.subr.bf16.mxu0 0
      %577 = vmatpush1.bf16.msra.mxu0 %v560
      %578 = vmatprep.subr.bf16.mxu0 0
      %579 = vmatpush1.bf16.msra.mxu0 %v561
      %580 = vmatprep.subr.bf16.mxu0 0
      %581 = vmatpush1.bf16.msra.mxu0 %v562
      %582 = vmatprep.subr.bf16.mxu0 0
      %583 = vmatpush1.bf16.msra.mxu0 %v563
      %584 = vmatprep.subr.bf16.mxu0 0
      %585 = vmatpush1.bf16.msra.mxu0 %v564
      %586 = vmatprep.subr.bf16.mxu0 0
      %587 = vmatpush1.bf16.msra.mxu0 %v565
      %588 = vmatprep.subr.bf16.mxu0 0
      %589 = vmatpush1.bf16.msra.mxu0 %v566
      %590 = vmatprep.subr.bf16.mxu0 0
      %591 = vmatpush1.bf16.msra.mxu0 %v567
      %592 = vmatprep.subr.bf16.mxu0 0
      %593 = vmatpush1.bf16.msra.mxu0 0
      %594 = vmatprep.subr.bf16.mxu0 0
      %595 = vmatpush1.bf16.msra.mxu0 0
      %596 = vmatprep.subr.bf16.mxu0 0
      %597 = vmatpush1.bf16.msra.mxu0 0
      %598 = vmatprep.subr.bf16.mxu0 0
      %599 = vmatpush1.bf16.msra.mxu0 0
      %600 = vmatprep.subr.bf16.mxu0 0
      %601 = vmatpush1.bf16.msra.mxu0 0
      %602 = vmatprep.subr.bf16.mxu0 0
      %603 = vmatpush1.bf16.msra.mxu0 0
      %604 = vmatprep.subr.bf16.mxu0 0
      %605 = vmatpush1.bf16.msra.mxu0 0
      %606 = vmatprep.subr.bf16.mxu0 0
      %607 = vmatpush1.bf16.msra.mxu0 0
      %608 = vmatprep.mubr.bf16.mxu0 0
      %609 = vmatmul.mubr.bf16.gmra.mrb[0].mxu0 %v486
      %v610 = vpop.f32.mrb[0].mxu0
      %v611 = vadd.f32 0.0, %v610
      %v612 = vpop.f32.mrb[0].mxu0
      %v613 = vpop.f32.mrb[0].mxu0
      %v614 = vadd.f32 0.0, %v613
      %v615 = vpop.f32.mrb[0].mxu0
      %616 = vmatprep.mubr.bf16.mxu0 0
      %617 = vmatmul.mubr.bf16.gmra.mrb[0].mxu0 %v494
      %v618 = vpop.f32.mrb[0].mxu0
      %v619 = vadd.f32 0.0, %v618
      %v620 = vpop.f32.mrb[0].mxu0
      %v621 = vpop.f32.mrb[0].mxu0
      %v622 = vadd.f32 0.0, %v621
      %v623 = vpop.f32.mrb[0].mxu0
      %624 = vmatprep.mubr.bf16.mxu0 0
      %625 = vmatmul.mubr.bf16.gmra.mrb[0].mxu0 %v502
      %v626 = vpop.f32.mrb[0].mxu0
      %v627 = vadd.f32 0.0, %v626
      %v628 = vpop.f32.mrb[0].mxu0
      %v629 = vpop.f32.mrb[0].mxu0
      %v630 = vadd.f32 0.0, %v629
      %v631 = vpop.f32.mrb[0].mxu0
      %632 = vmatprep.mubr.bf16.mxu0 0
      %633 = vmatmul.mubr.bf16.gmra.mrb[0].mxu0 %v510
      %v634 = vpop.f32.mrb[0].mxu0
      %v635 = vadd.f32 0.0, %v634
      %v636 = vpop.f32.mrb[0].mxu0
      %v637 = vpop.f32.mrb[0].mxu0
      %v638 = vadd.f32 0.0, %v637
      %v639 = vpop.f32.mrb[0].mxu0
      %640 = vmatprep.mubr.bf16.mxu0 0
      %641 = vmatmul.mubr.bf16.gmra.mrb[0].mxu0 %v518
      %v642 = vpop.f32.mrb[0].mxu0
      %v643 = vadd.f32 0.0, %v642
      %v644 = vpop.f32.mrb[0].mxu0
      %v645 = vpop.f32.mrb[0].mxu0
      %v646 = vadd.f32 0.0, %v645
      %v647 = vpop.f32.mrb[0].mxu0
      %648 = vmatprep.mubr.bf16.mxu0 0
      %649 = vmatmul.mubr.bf16.gmra.mrb[0].mxu0 %v521
      %v650 = vpop.f32.mrb[0].mxu0
      %v651 = vadd.f32 0.0, %v650
      %v652 = vpop.f32.mrb[0].mxu0
      %v653 = vpop.f32.mrb[0].mxu0
      %v654 = vpop.f32.mrb[0].mxu0
      %655 = vdwg.mxu0
      %v656 = vpack.c.b16 %v466, %v466
      %v679 = vunpack.c.l.b16 %v410
      %v680 = vunpack.c.l.b16 %v411
      %v681 = vunpack.c.l.b16 %v412
      %v682 = vunpack.c.l.b16 %v413
      %v683 = vunpack.c.l.b16 %v414
      %v684 = vunpack.c.l.b16 %v415
      %v685 = vunpack.c.l.b16 %v416
      %v686 = vunpack.c.l.b16 %v417
      %v687 = vunpack.c.l.b16 %v418
      %v688 = vunpack.c.l.b16 %v419
      %v689 = vunpack.c.l.b16 %v420
      %v690 = vunpack.c.l.b16 %v421
      %v691 = vunpack.c.l.b16 %v422
      %v692 = vunpack.c.l.b16 %v423
      %v693 = vunpack.c.l.b16 %v424
      %v694 = vunpack.c.l.b16 %v425
      %v695 = vpack.c.b16 %v680, %v679
      %v696 = vpack.c.b16 %v682, %v681
      %v697 = vpack.c.b16 %v684, %v683
      %v698 = vpack.c.b16 %v686, %v685
      %v699 = vpack.c.b16 %v688, %v687
      %v700 = vpack.c.b16 %v690, %v689
      %v701 = vpack.c.b16 %v692, %v691
      %v702 = vpack.c.b16 %v694, %v693
      %711 = vmatprep.subr.bf16.mxu0 0
      %712 = vmatpush1.bf16.msra.mxu0 %v695
      %713 = vmatprep.subr.bf16.mxu0 0
      %714 = vmatpush1.bf16.msra.mxu0 %v696
      %715 = vmatprep.subr.bf16.mxu0 0
      %716 = vmatpush1.bf16.msra.mxu0 %v697
      %717 = vmatprep.subr.bf16.mxu0 0
      %718 = vmatpush1.bf16.msra.mxu0 %v698
      %719 = vmatprep.subr.bf16.mxu0 0
      %720 = vmatpush1.bf16.msra.mxu0 %v699
      %721 = vmatprep.subr.bf16.mxu0 0
      %722 = vmatpush1.bf16.msra.mxu0 %v700
      %723 = vmatprep.subr.bf16.mxu0 0
      %724 = vmatpush1.bf16.msra.mxu0 %v701
      %725 = vmatprep.subr.bf16.mxu0 0
      %726 = vmatpush1.bf16.msra.mxu0 %v702
      %727 = vmatprep.subr.bf16.mxu0 0
      %728 = vmatpush1.bf16.msra.mxu0 0
      %729 = vmatprep.subr.bf16.mxu0 0
      %730 = vmatpush1.bf16.msra.mxu0 0
      %731 = vmatprep.subr.bf16.mxu0 0
      %732 = vmatpush1.bf16.msra.mxu0 0
      %733 = vmatprep.subr.bf16.mxu0 0
      %734 = vmatpush1.bf16.msra.mxu0 0
      %735 = vmatprep.subr.bf16.mxu0 0
      %736 = vmatpush1.bf16.msra.mxu0 0
      %737 = vmatprep.subr.bf16.mxu0 0
      %738 = vmatpush1.bf16.msra.mxu0 0
      %739 = vmatprep.subr.bf16.mxu0 0
      %740 = vmatpush1.bf16.msra.mxu0 0
      %741 = vmatprep.subr.bf16.mxu0 0
      %742 = vmatpush1.bf16.msra.mxu0 0
      %743 = vmatprep.mubr.bf16.mxu0 0
      %744 = vmatmul.mubr.bf16.gmra.mrb[0].mxu0 %v468
      %v745 = vpop.f32.mrb[0].mxu0
      %v746 = vadd.f32 %v611, %v745
      %v747 = vpop.f32.mrb[0].mxu0
      %v748 = vpop.f32.mrb[0].mxu0
      %v749 = vadd.f32 %v614, %v748
      %v750 = vpop.f32.mrb[0].mxu0
      %751 = vmatprep.mubr.bf16.mxu0 0
      %752 = vmatmul.mubr.bf16.gmra.mrb[0].mxu0 %v469
      %v753 = vpop.f32.mrb[0].mxu0
      %v754 = vadd.f32 %v619, %v753
      %v755 = vpop.f32.mrb[0].mxu0
      %v756 = vpop.f32.mrb[0].mxu0
      %v757 = vadd.f32 %v622, %v756
      %v758 = vpop.f32.mrb[0].mxu0
      %759 = vmatprep.mubr.bf16.mxu0 0
      %760 = vmatmul.mubr.bf16.gmra.mrb[0].mxu0 %v470
      %v761 = vpop.f32.mrb[0].mxu0
      %v762 = vadd.f32 %v627, %v761
      %v763 = vpop.f32.mrb[0].mxu0
      %v764 = vpop.f32.mrb[0].mxu0
      %v765 = vadd.f32 %v630, %v764
      %v766 = vpop.f32.mrb[0].mxu0
      %767 = vmatprep.mubr.bf16.mxu0 0
      %768 = vmatmul.mubr.bf16.gmra.mrb[0].mxu0 %v471
      %v769 = vpop.f32.mrb[0].mxu0
      %v770 = vadd.f32 %v635, %v769
      %v771 = vpop.f32.mrb[0].mxu0
      %v772 = vpop.f32.mrb[0].mxu0
      %v773 = vadd.f32 %v638, %v772
      %v774 = vpop.f32.mrb[0].mxu0
      %775 = vmatprep.mubr.bf16.mxu0 0
      %776 = vmatmul.mubr.bf16.gmra.mrb[0].mxu0 %v472
      %v777 = vpop.f32.mrb[0].mxu0
      %v778 = vadd.f32 %v643, %v777
      %v779 = vpop.f32.mrb[0].mxu0
      %v780 = vpop.f32.mrb[0].mxu0
      %v781 = vadd.f32 %v646, %v780
      %v782 = vpop.f32.mrb[0].mxu0
      %783 = vmatprep.mubr.bf16.mxu0 0
      %784 = vmatmul.mubr.bf16.gmra.mrb[0].mxu0 %v656
      %v785 = vpop.f32.mrb[0].mxu0
      %v786 = vadd.f32 %v651, %v785
      %v787 = vpop.f32.mrb[0].mxu0
      %v788 = vpop.f32.mrb[0].mxu0
      %v789 = vpop.f32.mrb[0].mxu0
      %790 = vdwg.mxu0
      %v791 = vld [vmem:[%s370] sm:$0xe]
      %s792 = scalar_lea.vmem %s1, 128
      %v793 = vld [vmem:[%s792] sm:$0xf]
      %v794 = vld [vmem:[%s792 + $0x4] sm:$0xf]
      %v795 = vld [vmem:[%s792 + $0x8] sm:$0xf]
      %v796 = vld [vmem:[%s792 + $0xc] sm:$0xf]
      %v797 = vld [vmem:[%s792 + $0x10] sm:$0xf]
      %v798 = vld [vmem:[%s792 + $0x14] sm:$0xf]
      %v799 = vld [vmem:[%s792 + $0x18] sm:$0xf]
      %v800 = vld [vmem:[%s792 + $0x1c] sm:$0xf]
      %v801 = vld [vmem:[%s792 + $0x20] sm:$0xf]
      %v802 = vld [vmem:[%s792 + $0x24] sm:$0xf]
      %v803 = vld [vmem:[%s792 + $0x28] sm:$0xf]
      %v804 = vld [vmem:[%s792 + $0x2c] sm:$0xf]
      %v805 = vld [vmem:[%s792 + $0x30] sm:$0xf]
      %v806 = vld [vmem:[%s792 + $0x34] sm:$0xf]
      %v807 = vld [vmem:[%s792 + $0x38] sm:$0xf]
      %v808 = vld [vmem:[%s792 + $0x3c] sm:$0xf]
      %v810 = vunpack.c.l.b16 %v791
      %v811 = vpack.c.b16 %v457, %v810
      %vm812 = vcmask 1046528
      %v813 = vrot.slane %v811, 1
      %v814 = vrot.slane %v469, 1
      %v815 = vsel %vm812, %v813, %v814
      %v816 = vrot.slane %v470, 1
      %v817 = vsel %vm812, %v814, %v816
      %v818 = vrot.slane %v471, 1
      %v819 = vsel %vm812, %v816, %v818
      %v820 = vrot.slane %v472, 1
      %v821 = vsel %vm812, %v818, %v820
      %v822 = vrot.slane %v473, 1
      %v823 = vsel %vm812, %v820, %v822
      %v846 = vunpack.c.l.b16 %v793
      %v847 = vunpack.c.l.b16 %v794
      %v848 = vunpack.c.l.b16 %v795
      %v849 = vunpack.c.l.b16 %v796
      %v850 = vunpack.c.l.b16 %v797
      %v851 = vunpack.c.l.b16 %v798
      %v852 = vunpack.c.l.b16 %v799
      %v853 = vunpack.c.l.b16 %v800
      %v854 = vunpack.c.l.b16 %v801
      %v855 = vunpack.c.l.b16 %v802
      %v856 = vunpack.c.l.b16 %v803
      %v857 = vunpack.c.l.b16 %v804
      %v858 = vunpack.c.l.b16 %v805
      %v859 = vunpack.c.l.b16 %v806
      %v860 = vunpack.c.l.b16 %v807
      %v861 = vunpack.c.l.b16 %v808
      %v862 = vpack.c.b16 %v847, %v846
      %v863 = vpack.c.b16 %v849, %v848
      %v864 = vpack.c.b16 %v851, %v850
      %v865 = vpack.c.b16 %v853, %v852
      %v866 = vpack.c.b16 %v855, %v854
      %v867 = vpack.c.b16 %v857, %v856
      %v868 = vpack.c.b16 %v859, %v858
      %v869 = vpack.c.b16 %v861, %v860
      %878 = vmatprep.subr.bf16.mxu0 0
      %879 = vmatpush1.bf16.msra.mxu0 %v862
      %880 = vmatprep.subr.bf16.mxu0 0
      %881 = vmatpush1.bf16.msra.mxu0 %v863
      %882 = vmatprep.subr.bf16.mxu0 0
      %883 = vmatpush1.bf16.msra.mxu0 %v864
      %884 = vmatprep.subr.bf16.mxu0 0
      %885 = vmatpush1.bf16.msra.mxu0 %v865
      %886 = vmatprep.subr.bf16.mxu0 0
      %887 = vmatpush1.bf16.msra.mxu0 %v866
      %888 = vmatprep.subr.bf16.mxu0 0
      %889 = vmatpush1.bf16.msra.mxu0 %v867
      %890 = vmatprep.subr.bf16.mxu0 0
      %891 = vmatpush1.bf16.msra.mxu0 %v868
      %892 = vmatprep.subr.bf16.mxu0 0
      %893 = vmatpush1.bf16.msra.mxu0 %v869
      %894 = vmatprep.subr.bf16.mxu0 0
      %895 = vmatpush1.bf16.msra.mxu0 0
      %896 = vmatprep.subr.bf16.mxu0 0
      %897 = vmatpush1.bf16.msra.mxu0 0
      %898 = vmatprep.subr.bf16.mxu0 0
      %899 = vmatpush1.bf16.msra.mxu0 0
      %900 = vmatprep.subr.bf16.mxu0 0
      %901 = vmatpush1.bf16.msra.mxu0 0
      %902 = vmatprep.subr.bf16.mxu0 0
      %903 = vmatpush1.bf16.msra.mxu0 0
      %904 = vmatprep.subr.bf16.mxu0 0
      %905 = vmatpush1.bf16.msra.mxu0 0
      %906 = vmatprep.subr.bf16.mxu0 0
      %907 = vmatpush1.bf16.msra.mxu0 0
      %908 = vmatprep.subr.bf16.mxu0 0
      %909 = vmatpush1.bf16.msra.mxu0 0
      %910 = vmatprep.mubr.bf16.mxu0 0
      %911 = vmatmul.mubr.bf16.gmra.mrb[0].mxu0 %v815
      %v912 = vpop.f32.mrb[0].mxu0
      %v913 = vadd.f32 0.0, %v912
      %v914 = vpop.f32.mrb[0].mxu0
      %v915 = vpop.f32.mrb[0].mxu0
      %v916 = vadd.f32 0.0, %v915
      %v917 = vpop.f32.mrb[0].mxu0
      %918 = vmatprep.mubr.bf16.mxu0 0
      %919 = vmatmul.mubr.bf16.gmra.mrb[0].mxu0 %v817
      %v920 = vpop.f32.mrb[0].mxu0
      %v921 = vadd.f32 0.0, %v920
      %v922 = vpop.f32.mrb[0].mxu0
      %v923 = vpop.f32.mrb[0].mxu0
      %v924 = vadd.f32 0.0, %v923
      %v925 = vpop.f32.mrb[0].mxu0
      %926 = vmatprep.mubr.bf16.mxu0 0
      %927 = vmatmul.mubr.bf16.gmra.mrb[0].mxu0 %v819
      %v928 = vpop.f32.mrb[0].mxu0
      %v929 = vadd.f32 0.0, %v928
      %v930 = vpop.f32.mrb[0].mxu0
      %v931 = vpop.f32.mrb[0].mxu0
      %v932 = vadd.f32 0.0, %v931
      %v933 = vpop.f32.mrb[0].mxu0
      %934 = vmatprep.mubr.bf16.mxu0 0
      %935 = vmatmul.mubr.bf16.gmra.mrb[0].mxu0 %v821
      %v936 = vpop.f32.mrb[0].mxu0
      %v937 = vadd.f32 0.0, %v936
      %v938 = vpop.f32.mrb[0].mxu0
      %v939 = vpop.f32.mrb[0].mxu0
      %v940 = vadd.f32 0.0, %v939
      %v941 = vpop.f32.mrb[0].mxu0
      %942 = vmatprep.mubr.bf16.mxu0 0
      %943 = vmatmul.mubr.bf16.gmra.mrb[0].mxu0 %v823
      %v944 = vpop.f32.mrb[0].mxu0
      %v945 = vadd.f32 0.0, %v944
      %v946 = vpop.f32.mrb[0].mxu0
      %v947 = vpop.f32.mrb[0].mxu0
      %v948 = vadd.f32 0.0, %v947
      %v949 = vpop.f32.mrb[0].mxu0
      %950 = vmatprep.mubr.bf16.mxu0 0
      %951 = vmatmul.mubr.bf16.gmra.mrb[0].mxu0 %v822
      %v952 = vpop.f32.mrb[0].mxu0
      %v953 = vadd.f32 0.0, %v952
      %v954 = vpop.f32.mrb[0].mxu0
      %v955 = vpop.f32.mrb[0].mxu0
      %v956 = vpop.f32.mrb[0].mxu0
      %957 = vdwg.mxu0
      %v958 = vadd.f32 %v746, %v913
      %v959 = vadd.f32 %v749, %v916
      %v960 = vadd.f32 %v754, %v921
      %v961 = vadd.f32 %v757, %v924
      %v962 = vadd.f32 %v762, %v929
      %v963 = vadd.f32 %v765, %v932
      %v964 = vadd.f32 %v770, %v937
      %v965 = vadd.f32 %v773, %v940
      %v966 = vadd.f32 %v778, %v945
      %v967 = vadd.f32 %v781, %v948
      %v968 = vadd.f32 %v786, %v953
      %v969 = vld [vmem:[%s370 + $0x4] sm:$0xe]
      %v970 = vld [vmem:[%s370 + $0x8] sm:$0xf]
      %v971 = vld [vmem:[%s370 + $0xc] sm:$0xf]
      %v972 = vld [vmem:[%s370 + $0x10] sm:$0xf]
      %v973 = vld [vmem:[%s370 + $0x14] sm:$0xf]
      %v974 = vld [vmem:[%s370 + $0x18] sm:$0xf]
      %v975 = vld [vmem:[%s370 + $0x1c] sm:$0xf]
      %v976 = vld [vmem:[%s370 + $0x20] sm:$0xf]
      %v977 = vld [vmem:[%s370 + $0x24] sm:$0xf]
      %v978 = vld [vmem:[%s370 + $0x28] sm:$0xf]
      %v979 = vld [vmem:[%s370 + $0x2c] sm:$0xf]
      %v980 = vld [vmem:[%s370 + $0x30] sm:$0x3]
      %s981 = scalar_lea.vmem %s1, 192
      %v982 = vld [vmem:[%s981] sm:$0xf]
      %v983 = vld [vmem:[%s981 + $0x4] sm:$0xf]
      %v984 = vld [vmem:[%s981 + $0x8] sm:$0xf]
      %v985 = vld [vmem:[%s981 + $0xc] sm:$0xf]
      %v986 = vld [vmem:[%s981 + $0x10] sm:$0xf]
      %v987 = vld [vmem:[%s981 + $0x14] sm:$0xf]
      %v988 = vld [vmem:[%s981 + $0x18] sm:$0xf]
      %v989 = vld [vmem:[%s981 + $0x1c] sm:$0xf]
      %v990 = vld [vmem:[%s981 + $0x20] sm:$0xf]
      %v991 = vld [vmem:[%s981 + $0x24] sm:$0xf]
      %v992 = vld [vmem:[%s981 + $0x28] sm:$0xf]
      %v993 = vld [vmem:[%s981 + $0x2c] sm:$0xf]
      %v994 = vld [vmem:[%s981 + $0x30] sm:$0xf]
      %v995 = vld [vmem:[%s981 + $0x34] sm:$0xf]
      %v996 = vld [vmem:[%s981 + $0x38] sm:$0xf]
      %v997 = vld [vmem:[%s981 + $0x3c] sm:$0xf]
      %v1010 = vunpack.c.l.b16 %v969
      %v1011 = vunpack.c.l.b16 %v970
      %v1012 = vunpack.c.l.b16 %v971
      %v1013 = vunpack.c.l.b16 %v972
      %v1014 = vunpack.c.l.b16 %v973
      %v1015 = vunpack.c.l.b16 %v974
      %v1016 = vunpack.c.l.b16 %v975
      %v1017 = vunpack.c.l.b16 %v976
      %v1018 = vunpack.c.l.b16 %v977
      %v1019 = vunpack.c.l.b16 %v978
      %v1020 = vunpack.c.l.b16 %v979
      %v1021 = vunpack.c.l.b16 %v980
      %v1022 = vpack.c.b16 %v1011, %v1010
      %v1023 = vpack.c.b16 %v1013, %v1012
      %v1024 = vpack.c.b16 %v1015, %v1014
      %v1025 = vpack.c.b16 %v1017, %v1016
      %v1026 = vpack.c.b16 %v1019, %v1018
      %v1027 = vpack.c.b16 %v1021, %v1020
      %vm1028 = vsmask.f32 6400
      %v1030 = vshrl.u32 %v1022, 16
      %v1032 = vrot.slane %v1030, 1
      %v1033 = vshll.u32 %v1022, 16
      %v1035 = vrot.slane %v1033, 2
      %v1036 = vor.u32 %v1032, %v1035
      %v1038 = vshrl.u32 %v1023, 16
      %v1040 = vrot.slane %v1038, 1
      %v1041 = vshll.u32 %v1023, 16
      %v1043 = vrot.slane %v1041, 2
      %v1044 = vor.u32 %v1040, %v1043
      %v1045 = vsel %vm1028, %v1036, %v1044
      %v1047 = vshrl.u32 %v1024, 16
      %v1049 = vrot.slane %v1047, 1
      %v1050 = vshll.u32 %v1024, 16
      %v1052 = vrot.slane %v1050, 2
      %v1053 = vor.u32 %v1049, %v1052
      %v1054 = vsel %vm1028, %v1044, %v1053
      %v1056 = vshrl.u32 %v1025, 16
      %v1058 = vrot.slane %v1056, 1
      %v1059 = vshll.u32 %v1025, 16
      %v1061 = vrot.slane %v1059, 2
      %v1062 = vor.u32 %v1058, %v1061
      %v1063 = vsel %vm1028, %v1053, %v1062
      %v1065 = vshrl.u32 %v1026, 16
      %v1067 = vrot.slane %v1065, 1
      %v1068 = vshll.u32 %v1026, 16
      %v1070 = vrot.slane %v1068, 2
      %v1071 = vor.u32 %v1067, %v1070
      %v1072 = vsel %vm1028, %v1062, %v1071
      %v1074 = vshrl.u32 %v1027, 16
      %v1076 = vrot.slane %v1074, 1
      %v1077 = vshll.u32 %v1027, 16
      %v1079 = vrot.slane %v1077, 2
      %v1080 = vor.u32 %v1076, %v1079
      %v1081 = vsel %vm1028, %v1071, %v1080
      %v1104 = vunpack.c.l.b16 %v982
      %v1105 = vunpack.c.l.b16 %v983
      %v1106 = vunpack.c.l.b16 %v984
      %v1107 = vunpack.c.l.b16 %v985
      %v1108 = vunpack.c.l.b16 %v986
      %v1109 = vunpack.c.l.b16 %v987
      %v1110 = vunpack.c.l.b16 %v988
      %v1111 = vunpack.c.l.b16 %v989
      %v1112 = vunpack.c.l.b16 %v990
      %v1113 = vunpack.c.l.b16 %v991
      %v1114 = vunpack.c.l.b16 %v992
      %v1115 = vunpack.c.l.b16 %v993
      %v1116 = vunpack.c.l.b16 %v994
      %v1117 = vunpack.c.l.b16 %v995
      %v1118 = vunpack.c.l.b16 %v996
      %v1119 = vunpack.c.l.b16 %v997
      %v1120 = vpack.c.b16 %v1105, %v1104
      %v1121 = vpack.c.b16 %v1107, %v1106
      %v1122 = vpack.c.b16 %v1109, %v1108
      %v1123 = vpack.c.b16 %v1111, %v1110
      %v1124 = vpack.c.b16 %v1113, %v1112
      %v1125 = vpack.c.b16 %v1115, %v1114
      %v1126 = vpack.c.b16 %v1117, %v1116
      %v1127 = vpack.c.b16 %v1119, %v1118
      %1136 = vmatprep.subr.bf16.mxu0 0
      %1137 = vmatpush1.bf16.msra.mxu0 %v1120
      %1138 = vmatprep.subr.bf16.mxu0 0
      %1139 = vmatpush1.bf16.msra.mxu0 %v1121
      %1140 = vmatprep.subr.bf16.mxu0 0
      %1141 = vmatpush1.bf16.msra.mxu0 %v1122
      %1142 = vmatprep.subr.bf16.mxu0 0
      %1143 = vmatpush1.bf16.msra.mxu0 %v1123
      %1144 = vmatprep.subr.bf16.mxu0 0
      %1145 = vmatpush1.bf16.msra.mxu0 %v1124
      %1146 = vmatprep.subr.bf16.mxu0 0
      %1147 = vmatpush1.bf16.msra.mxu0 %v1125
      %1148 = vmatprep.subr.bf16.mxu0 0
      %1149 = vmatpush1.bf16.msra.mxu0 %v1126
      %1150 = vmatprep.subr.bf16.mxu0 0
      %1151 = vmatpush1.bf16.msra.mxu0 %v1127
      %1152 = vmatprep.subr.bf16.mxu0 0
      %1153 = vmatpush1.bf16.msra.mxu0 0
      %1154 = vmatprep.subr.bf16.mxu0 0
      %1155 = vmatpush1.bf16.msra.mxu0 0
      %1156 = vmatprep.subr.bf16.mxu0 0
      %1157 = vmatpush1.bf16.msra.mxu0 0
      %1158 = vmatprep.subr.bf16.mxu0 0
      %1159 = vmatpush1.bf16.msra.mxu0 0
      %1160 = vmatprep.subr.bf16.mxu0 0
      %1161 = vmatpush1.bf16.msra.mxu0 0
      %1162 = vmatprep.subr.bf16.mxu0 0
      %1163 = vmatpush1.bf16.msra.mxu0 0
      %1164 = vmatprep.subr.bf16.mxu0 0
      %1165 = vmatpush1.bf16.msra.mxu0 0
      %1166 = vmatprep.subr.bf16.mxu0 0
      %1167 = vmatpush1.bf16.msra.mxu0 0
      %1168 = vmatprep.mubr.bf16.mxu0 0
      %1169 = vmatmul.mubr.bf16.gmra.mrb[0].mxu0 %v1045
      %v1170 = vpop.f32.mrb[0].mxu0
      %v1171 = vadd.f32 0.0, %v1170
      %v1172 = vpop.f32.mrb[0].mxu0
      %v1173 = vpop.f32.mrb[0].mxu0
      %v1174 = vadd.f32 0.0, %v1173
      %v1175 = vpop.f32.mrb[0].mxu0
      %1176 = vmatprep.mubr.bf16.mxu0 0
      %1177 = vmatmul.mubr.bf16.gmra.mrb[0].mxu0 %v1054
      %v1178 = vpop.f32.mrb[0].mxu0
      %v1179 = vadd.f32 0.0, %v1178
      %v1180 = vpop.f32.mrb[0].mxu0
      %v1181 = vpop.f32.mrb[0].mxu0
      %v1182 = vadd.f32 0.0, %v1181
      %v1183 = vpop.f32.mrb[0].mxu0
      %1184 = vmatprep.mubr.bf16.mxu0 0
      %1185 = vmatmul.mubr.bf16.gmra.mrb[0].mxu0 %v1063
      %v1186 = vpop.f32.mrb[0].mxu0
      %v1187 = vadd.f32 0.0, %v1186
      %v1188 = vpop.f32.mrb[0].mxu0
      %v1189 = vpop.f32.mrb[0].mxu0
      %v1190 = vadd.f32 0.0, %v1189
      %v1191 = vpop.f32.mrb[0].mxu0
      %1192 = vmatprep.mubr.bf16.mxu0 0
      %1193 = vmatmul.mubr.bf16.gmra.mrb[0].mxu0 %v1072
      %v1194 = vpop.f32.mrb[0].mxu0
      %v1195 = vadd.f32 0.0, %v1194
      %v1196 = vpop.f32.mrb[0].mxu0
      %v1197 = vpop.f32.mrb[0].mxu0
      %v1198 = vadd.f32 0.0, %v1197
      %v1199 = vpop.f32.mrb[0].mxu0
      %1200 = vmatprep.mubr.bf16.mxu0 0
      %1201 = vmatmul.mubr.bf16.gmra.mrb[0].mxu0 %v1081
      %v1202 = vpop.f32.mrb[0].mxu0
      %v1203 = vadd.f32 0.0, %v1202
      %v1204 = vpop.f32.mrb[0].mxu0
      %v1205 = vpop.f32.mrb[0].mxu0
      %v1206 = vadd.f32 0.0, %v1205
      %v1207 = vpop.f32.mrb[0].mxu0
      %1208 = vmatprep.mubr.bf16.mxu0 0
      %1209 = vmatmul.mubr.bf16.gmra.mrb[0].mxu0 %v1080
      %v1210 = vpop.f32.mrb[0].mxu0
      %v1211 = vadd.f32 0.0, %v1210
      %v1212 = vpop.f32.mrb[0].mxu0
      %v1213 = vpop.f32.mrb[0].mxu0
      %v1214 = vpop.f32.mrb[0].mxu0
      %1215 = vdwg.mxu0
      %v1216 = vadd.f32 %v958, %v1171
      %v1217 = vadd.f32 %v959, %v1174
      %v1218 = vadd.f32 %v960, %v1179
      %v1219 = vadd.f32 %v961, %v1182
      %v1220 = vadd.f32 %v962, %v1187
      %v1221 = vadd.f32 %v963, %v1190
      %v1222 = vadd.f32 %v964, %v1195
      %v1223 = vadd.f32 %v965, %v1198
      %v1224 = vadd.f32 %v966, %v1203
      %v1225 = vadd.f32 %v967, %v1206
      %v1226 = vadd.f32 %v968, %v1211
      %v1227 = vld [vmem:[%s370 + $0x4] sm:$0xc]
      %s1228 = scalar_lea.vmem %s1, 256
      %v1229 = vld [vmem:[%s1228] sm:$0xf]
      %v1230 = vld [vmem:[%s1228 + $0x4] sm:$0xf]
      %v1231 = vld [vmem:[%s1228 + $0x8] sm:$0xf]
      %v1232 = vld [vmem:[%s1228 + $0xc] sm:$0xf]
      %v1233 = vld [vmem:[%s1228 + $0x10] sm:$0xf]
      %v1234 = vld [vmem:[%s1228 + $0x14] sm:$0xf]
      %v1235 = vld [vmem:[%s1228 + $0x18] sm:$0xf]
      %v1236 = vld [vmem:[%s1228 + $0x1c] sm:$0xf]
      %v1237 = vld [vmem:[%s1228 + $0x20] sm:$0xf]
      %v1238 = vld [vmem:[%s1228 + $0x24] sm:$0xf]
      %v1239 = vld [vmem:[%s1228 + $0x28] sm:$0xf]
      %v1240 = vld [vmem:[%s1228 + $0x2c] sm:$0xf]
      %v1241 = vld [vmem:[%s1228 + $0x30] sm:$0xf]
      %v1242 = vld [vmem:[%s1228 + $0x34] sm:$0xf]
      %v1243 = vld [vmem:[%s1228 + $0x38] sm:$0xf]
      %v1244 = vld [vmem:[%s1228 + $0x3c] sm:$0xf]
      %v1246 = vunpack.c.l.b16 %v1227
      %v1247 = vpack.c.b16 %v1011, %v1246
      %vm1248 = vcmask 1045504
      %v1249 = vrot.slane %v1247, 2
      %v1250 = vrot.slane %v1023, 2
      %v1251 = vsel %vm1248, %v1249, %v1250
      %v1252 = vrot.slane %v1024, 2
      %v1253 = vsel %vm1248, %v1250, %v1252
      %v1254 = vrot.slane %v1025, 2
      %v1255 = vsel %vm1248, %v1252, %v1254
      %v1256 = vrot.slane %v1026, 2
      %v1257 = vsel %vm1248, %v1254, %v1256
      %v1258 = vrot.slane %v1027, 2
      %v1259 = vsel %vm1248, %v1256, %v1258
      %v1282 = vunpack.c.l.b16 %v1229
      %v1283 = vunpack.c.l.b16 %v1230
      %v1284 = vunpack.c.l.b16 %v1231
      %v1285 = vunpack.c.l.b16 %v1232
      %v1286 = vunpack.c.l.b16 %v1233
      %v1287 = vunpack.c.l.b16 %v1234
      %v1288 = vunpack.c.l.b16 %v1235
      %v1289 = vunpack.c.l.b16 %v1236
      %v1290 = vunpack.c.l.b16 %v1237
      %v1291 = vunpack.c.l.b16 %v1238
      %v1292 = vunpack.c.l.b16 %v1239
      %v1293 = vunpack.c.l.b16 %v1240
      %v1294 = vunpack.c.l.b16 %v1241
      %v1295 = vunpack.c.l.b16 %v1242
      %v1296 = vunpack.c.l.b16 %v1243
      %v1297 = vunpack.c.l.b16 %v1244
      %v1298 = vpack.c.b16 %v1283, %v1282
      %v1299 = vpack.c.b16 %v1285, %v1284
      %v1300 = vpack.c.b16 %v1287, %v1286
      %v1301 = vpack.c.b16 %v1289, %v1288
      %v1302 = vpack.c.b16 %v1291, %v1290
      %v1303 = vpack.c.b16 %v1293, %v1292
      %v1304 = vpack.c.b16 %v1295, %v1294
      %v1305 = vpack.c.b16 %v1297, %v1296
      %1314 = vmatprep.subr.bf16.mxu0 0
      %1315 = vmatpush1.bf16.msra.mxu0 %v1298
      %1316 = vmatprep.subr.bf16.mxu0 0
      %1317 = vmatpush1.bf16.msra.mxu0 %v1299
      %1318 = vmatprep.subr.bf16.mxu0 0
      %1319 = vmatpush1.bf16.msra.mxu0 %v1300
      %1320 = vmatprep.subr.bf16.mxu0 0
      %1321 = vmatpush1.bf16.msra.mxu0 %v1301
      %1322 = vmatprep.subr.bf16.mxu0 0
      %1323 = vmatpush1.bf16.msra.mxu0 %v1302
      %1324 = vmatprep.subr.bf16.mxu0 0
      %1325 = vmatpush1.bf16.msra.mxu0 %v1303
      %1326 = vmatprep.subr.bf16.mxu0 0
      %1327 = vmatpush1.bf16.msra.mxu0 %v1304
      %1328 = vmatprep.subr.bf16.mxu0 0
      %1329 = vmatpush1.bf16.msra.mxu0 %v1305
      %1330 = vmatprep.subr.bf16.mxu0 0
      %1331 = vmatpush1.bf16.msra.mxu0 0
      %1332 = vmatprep.subr.bf16.mxu0 0
      %1333 = vmatpush1.bf16.msra.mxu0 0
      %1334 = vmatprep.subr.bf16.mxu0 0
      %1335 = vmatpush1.bf16.msra.mxu0 0
      %1336 = vmatprep.subr.bf16.mxu0 0
      %1337 = vmatpush1.bf16.msra.mxu0 0
      %1338 = vmatprep.subr.bf16.mxu0 0
      %1339 = vmatpush1.bf16.msra.mxu0 0
      %1340 = vmatprep.subr.bf16.mxu0 0
      %1341 = vmatpush1.bf16.msra.mxu0 0
      %1342 = vmatprep.subr.bf16.mxu0 0
      %1343 = vmatpush1.bf16.msra.mxu0 0
      %1344 = vmatprep.subr.bf16.mxu0 0
      %1345 = vmatpush1.bf16.msra.mxu0 0
      %1346 = vmatprep.mubr.bf16.mxu0 0
      %1347 = vmatmul.mubr.bf16.gmra.mrb[0].mxu0 %v1251
      %v1348 = vpop.f32.mrb[0].mxu0
      %v1349 = vadd.f32 0.0, %v1348
      %v1350 = vpop.f32.mrb[0].mxu0
      %v1351 = vpop.f32.mrb[0].mxu0
      %v1352 = vadd.f32 0.0, %v1351
      %v1353 = vpop.f32.mrb[0].mxu0
      %1354 = vmatprep.mubr.bf16.mxu0 0
      %1355 = vmatmul.mubr.bf16.gmra.mrb[0].mxu0 %v1253
      %v1356 = vpop.f32.mrb[0].mxu0
      %v1357 = vadd.f32 0.0, %v1356
      %v1358 = vpop.f32.mrb[0].mxu0
      %v1359 = vpop.f32.mrb[0].mxu0
      %v1360 = vadd.f32 0.0, %v1359
      %v1361 = vpop.f32.mrb[0].mxu0
      %1362 = vmatprep.mubr.bf16.mxu0 0
      %1363 = vmatmul.mubr.bf16.gmra.mrb[0].mxu0 %v1255
      %v1364 = vpop.f32.mrb[0].mxu0
      %v1365 = vadd.f32 0.0, %v1364
      %v1366 = vpop.f32.mrb[0].mxu0
      %v1367 = vpop.f32.mrb[0].mxu0
      %v1368 = vadd.f32 0.0, %v1367
      %v1369 = vpop.f32.mrb[0].mxu0
      %1370 = vmatprep.mubr.bf16.mxu0 0
      %1371 = vmatmul.mubr.bf16.gmra.mrb[0].mxu0 %v1257
      %v1372 = vpop.f32.mrb[0].mxu0
      %v1373 = vadd.f32 0.0, %v1372
      %v1374 = vpop.f32.mrb[0].mxu0
      %v1375 = vpop.f32.mrb[0].mxu0
      %v1376 = vadd.f32 0.0, %v1375
      %v1377 = vpop.f32.mrb[0].mxu0
      %1378 = vmatprep.mubr.bf16.mxu0 0
      %1379 = vmatmul.mubr.bf16.gmra.mrb[0].mxu0 %v1259
      %v1380 = vpop.f32.mrb[0].mxu0
      %v1381 = vadd.f32 0.0, %v1380
      %v1382 = vpop.f32.mrb[0].mxu0
      %v1383 = vpop.f32.mrb[0].mxu0
      %v1384 = vadd.f32 0.0, %v1383
      %v1385 = vpop.f32.mrb[0].mxu0
      %1386 = vmatprep.mubr.bf16.mxu0 0
      %1387 = vmatmul.mubr.bf16.gmra.mrb[0].mxu0 %v1258
      %v1388 = vpop.f32.mrb[0].mxu0
      %v1389 = vadd.f32 0.0, %v1388
      %v1390 = vpop.f32.mrb[0].mxu0
      %v1391 = vpop.f32.mrb[0].mxu0
      %v1392 = vpop.f32.mrb[0].mxu0
      %1393 = vdwg.mxu0
      %v1394 = vadd.f32 %v1216, %v1349
      %v1395 = vadd.f32 %v1217, %v1352
      %v1396 = vadd.f32 %v1218, %v1357
      %v1397 = vadd.f32 %v1219, %v1360
      %v1398 = vadd.f32 %v1220, %v1365
      %v1399 = vadd.f32 %v1221, %v1368
      %v1400 = vadd.f32 %v1222, %v1373
      %v1401 = vadd.f32 %v1223, %v1376
      %v1402 = vadd.f32 %v1224, %v1381
      %v1403 = vadd.f32 %v1225, %v1384
      %v1404 = vadd.f32 %v1226, %v1389
      %v1405 = vld [vmem:[%s370 + $0x30] sm:$0x7]
      %s1406 = scalar_lea.vmem %s1, 320
      %v1407 = vld [vmem:[%s1406] sm:$0xf]
      %v1408 = vld [vmem:[%s1406 + $0x4] sm:$0xf]
      %v1409 = vld [vmem:[%s1406 + $0x8] sm:$0xf]
      %v1410 = vld [vmem:[%s1406 + $0xc] sm:$0xf]
      %v1411 = vld [vmem:[%s1406 + $0x10] sm:$0xf]
      %v1412 = vld [vmem:[%s1406 + $0x14] sm:$0xf]
      %v1413 = vld [vmem:[%s1406 + $0x18] sm:$0xf]
      %v1414 = vld [vmem:[%s1406 + $0x1c] sm:$0xf]
      %v1415 = vld [vmem:[%s1406 + $0x20] sm:$0xf]
      %v1416 = vld [vmem:[%s1406 + $0x24] sm:$0xf]
      %v1417 = vld [vmem:[%s1406 + $0x28] sm:$0xf]
      %v1418 = vld [vmem:[%s1406 + $0x2c] sm:$0xf]
      %v1419 = vld [vmem:[%s1406 + $0x30] sm:$0xf]
      %v1420 = vld [vmem:[%s1406 + $0x34] sm:$0xf]
      %v1421 = vld [vmem:[%s1406 + $0x38] sm:$0xf]
      %v1422 = vld [vmem:[%s1406 + $0x3c] sm:$0xf]
      %v1424 = vunpack.c.l.b16 %v1405
      %v1425 = vpack.c.b16 %v1424, %v1020
      %vm1426 = vsmask.f32 5376
      %v1428 = vshrl.u32 %v1247, 16
      %v1430 = vrot.slane %v1428, 2
      %v1431 = vshll.u32 %v1247, 16
      %v1433 = vrot.slane %v1431, 3
      %v1434 = vor.u32 %v1430, %v1433
      %v1435 = vrot.slane %v1038, 2
      %v1436 = vrot.slane %v1041, 3
      %v1437 = vor.u32 %v1435, %v1436
      %v1438 = vsel %vm1426, %v1434, %v1437
      %v1439 = vrot.slane %v1047, 2
      %v1440 = vrot.slane %v1050, 3
      %v1441 = vor.u32 %v1439, %v1440
      %v1442 = vsel %vm1426, %v1437, %v1441
      %v1443 = vrot.slane %v1056, 2
      %v1444 = vrot.slane %v1059, 3
      %v1445 = vor.u32 %v1443, %v1444
      %v1446 = vsel %vm1426, %v1441, %v1445
      %v1447 = vrot.slane %v1065, 2
      %v1448 = vrot.slane %v1068, 3
      %v1449 = vor.u32 %v1447, %v1448
      %v1450 = vsel %vm1426, %v1445, %v1449
      %v1452 = vshrl.u32 %v1425, 16
      %v1454 = vrot.slane %v1452, 2
      %v1455 = vshll.u32 %v1425, 16
      %v1457 = vrot.slane %v1455, 3
      %v1458 = vor.u32 %v1454, %v1457
      %v1459 = vsel %vm1426, %v1449, %v1458
      %v1482 = vunpack.c.l.b16 %v1407
      %v1483 = vunpack.c.l.b16 %v1408
      %v1484 = vunpack.c.l.b16 %v1409
      %v1485 = vunpack.c.l.b16 %v1410
      %v1486 = vunpack.c.l.b16 %v1411
      %v1487 = vunpack.c.l.b16 %v1412
      %v1488 = vunpack.c.l.b16 %v1413
      %v1489 = vunpack.c.l.b16 %v1414
      %v1490 = vunpack.c.l.b16 %v1415
      %v1491 = vunpack.c.l.b16 %v1416
      %v1492 = vunpack.c.l.b16 %v1417
      %v1493 = vunpack.c.l.b16 %v1418
      %v1494 = vunpack.c.l.b16 %v1419
      %v1495 = vunpack.c.l.b16 %v1420
      %v1496 = vunpack.c.l.b16 %v1421
      %v1497 = vunpack.c.l.b16 %v1422
      %v1498 = vpack.c.b16 %v1483, %v1482
      %v1499 = vpack.c.b16 %v1485, %v1484
      %v1500 = vpack.c.b16 %v1487, %v1486
      %v1501 = vpack.c.b16 %v1489, %v1488
      %v1502 = vpack.c.b16 %v1491, %v1490
      %v1503 = vpack.c.b16 %v1493, %v1492
      %v1504 = vpack.c.b16 %v1495, %v1494
      %v1505 = vpack.c.b16 %v1497, %v1496
      %1514 = vmatprep.subr.bf16.mxu0 0
      %1515 = vmatpush1.bf16.msra.mxu0 %v1498
      %1516 = vmatprep.subr.bf16.mxu0 0
      %1517 = vmatpush1.bf16.msra.mxu0 %v1499
      %1518 = vmatprep.subr.bf16.mxu0 0
      %1519 = vmatpush1.bf16.msra.mxu0 %v1500
      %1520 = vmatprep.subr.bf16.mxu0 0
      %1521 = vmatpush1.bf16.msra.mxu0 %v1501
      %1522 = vmatprep.subr.bf16.mxu0 0
      %1523 = vmatpush1.bf16.msra.mxu0 %v1502
      %1524 = vmatprep.subr.bf16.mxu0 0
      %1525 = vmatpush1.bf16.msra.mxu0 %v1503
      %1526 = vmatprep.subr.bf16.mxu0 0
      %1527 = vmatpush1.bf16.msra.mxu0 %v1504
      %1528 = vmatprep.subr.bf16.mxu0 0
      %1529 = vmatpush1.bf16.msra.mxu0 %v1505
      %1530 = vmatprep.subr.bf16.mxu0 0
      %1531 = vmatpush1.bf16.msra.mxu0 0
      %1532 = vmatprep.subr.bf16.mxu0 0
      %1533 = vmatpush1.bf16.msra.mxu0 0
      %1534 = vmatprep.subr.bf16.mxu0 0
      %1535 = vmatpush1.bf16.msra.mxu0 0
      %1536 = vmatprep.subr.bf16.mxu0 0
      %1537 = vmatpush1.bf16.msra.mxu0 0
      %1538 = vmatprep.subr.bf16.mxu0 0
      %1539 = vmatpush1.bf16.msra.mxu0 0
      %1540 = vmatprep.subr.bf16.mxu0 0
      %1541 = vmatpush1.bf16.msra.mxu0 0
      %1542 = vmatprep.subr.bf16.mxu0 0
      %1543 = vmatpush1.bf16.msra.mxu0 0
      %1544 = vmatprep.subr.bf16.mxu0 0
      %1545 = vmatpush1.bf16.msra.mxu0 0
      %1546 = vmatprep.mubr.bf16.mxu0 0
      %1547 = vmatmul.mubr.bf16.gmra.mrb[0].mxu0 %v1438
      %v1548 = vpop.f32.mrb[0].mxu0
      %v1549 = vadd.f32 0.0, %v1548
      %v1550 = vpop.f32.mrb[0].mxu0
      %v1551 = vpop.f32.mrb[0].mxu0
      %v1552 = vadd.f32 0.0, %v1551
      %v1553 = vpop.f32.mrb[0].mxu0
      %1554 = vmatprep.mubr.bf16.mxu0 0
      %1555 = vmatmul.mubr.bf16.gmra.mrb[0].mxu0 %v1442
      %v1556 = vpop.f32.mrb[0].mxu0
      %v1557 = vadd.f32 0.0, %v1556
      %v1558 = vpop.f32.mrb[0].mxu0
      %v1559 = vpop.f32.mrb[0].mxu0
      %v1560 = vadd.f32 0.0, %v1559
      %v1561 = vpop.f32.mrb[0].mxu0
      %1562 = vmatprep.mubr.bf16.mxu0 0
      %1563 = vmatmul.mubr.bf16.gmra.mrb[0].mxu0 %v1446
      %v1564 = vpop.f32.mrb[0].mxu0
      %v1565 = vadd.f32 0.0, %v1564
      %v1566 = vpop.f32.mrb[0].mxu0
      %v1567 = vpop.f32.mrb[0].mxu0
      %v1568 = vadd.f32 0.0, %v1567
      %v1569 = vpop.f32.mrb[0].mxu0
      %1570 = vmatprep.mubr.bf16.mxu0 0
      %1571 = vmatmul.mubr.bf16.gmra.mrb[0].mxu0 %v1450
      %v1572 = vpop.f32.mrb[0].mxu0
      %v1573 = vadd.f32 0.0, %v1572
      %v1574 = vpop.f32.mrb[0].mxu0
      %v1575 = vpop.f32.mrb[0].mxu0
      %v1576 = vadd.f32 0.0, %v1575
      %v1577 = vpop.f32.mrb[0].mxu0
      %1578 = vmatprep.mubr.bf16.mxu0 0
      %1579 = vmatmul.mubr.bf16.gmra.mrb[0].mxu0 %v1459
      %v1580 = vpop.f32.mrb[0].mxu0
      %v1581 = vadd.f32 0.0, %v1580
      %v1582 = vpop.f32.mrb[0].mxu0
      %v1583 = vpop.f32.mrb[0].mxu0
      %v1584 = vadd.f32 0.0, %v1583
      %v1585 = vpop.f32.mrb[0].mxu0
      %1586 = vmatprep.mubr.bf16.mxu0 0
      %1587 = vmatmul.mubr.bf16.gmra.mrb[0].mxu0 %v1458
      %v1588 = vpop.f32.mrb[0].mxu0
      %v1589 = vadd.f32 0.0, %v1588
      %v1590 = vpop.f32.mrb[0].mxu0
      %v1591 = vpop.f32.mrb[0].mxu0
      %v1592 = vpop.f32.mrb[0].mxu0
      %1593 = vdwg.mxu0
      %v1594 = vadd.f32 %v1394, %v1549
      %v1595 = vadd.f32 %v1395, %v1552
      %v1596 = vadd.f32 %v1396, %v1557
      %v1597 = vadd.f32 %v1397, %v1560
      %v1598 = vadd.f32 %v1398, %v1565
      %v1599 = vadd.f32 %v1399, %v1568
      %v1600 = vadd.f32 %v1400, %v1573
      %v1601 = vadd.f32 %v1401, %v1576
      %v1602 = vadd.f32 %v1402, %v1581
      %v1603 = vadd.f32 %v1403, %v1584
      %v1604 = vadd.f32 %v1404, %v1589
      %v1605 = vld [vmem:[%s370 + $0x8] sm:$0x8]
      %v1606 = vld [vmem:[%s370 + $0xc] sm:$0xf]
      %v1607 = vld [vmem:[%s370 + $0x10] sm:$0xf]
      %v1608 = vld [vmem:[%s370 + $0x14] sm:$0xf]
      %v1609 = vld [vmem:[%s370 + $0x18] sm:$0xf]
      %v1610 = vld [vmem:[%s370 + $0x1c] sm:$0xf]
      %v1611 = vld [vmem:[%s370 + $0x20] sm:$0xf]
      %v1612 = vld [vmem:[%s370 + $0x24] sm:$0xf]
      %v1613 = vld [vmem:[%s370 + $0x28] sm:$0xf]
      %v1614 = vld [vmem:[%s370 + $0x2c] sm:$0xf]
      %v1615 = vld [vmem:[%s370 + $0x30] sm:$0xf]
      %v1616 = vld [vmem:[%s370 + $0x34] sm:$0x7]
      %s1617 = scalar_lea.vmem %s1, 384
      %v1618 = vld [vmem:[%s1617] sm:$0xf]
      %v1619 = vld [vmem:[%s1617 + $0x4] sm:$0xf]
      %v1620 = vld [vmem:[%s1617 + $0x8] sm:$0xf]
      %v1621 = vld [vmem:[%s1617 + $0xc] sm:$0xf]
      %v1622 = vld [vmem:[%s1617 + $0x10] sm:$0xf]
      %v1623 = vld [vmem:[%s1617 + $0x14] sm:$0xf]
      %v1624 = vld [vmem:[%s1617 + $0x18] sm:$0xf]
      %v1625 = vld [vmem:[%s1617 + $0x1c] sm:$0xf]
      %v1626 = vld [vmem:[%s1617 + $0x20] sm:$0xf]
      %v1627 = vld [vmem:[%s1617 + $0x24] sm:$0xf]
      %v1628 = vld [vmem:[%s1617 + $0x28] sm:$0xf]
      %v1629 = vld [vmem:[%s1617 + $0x2c] sm:$0xf]
      %v1630 = vld [vmem:[%s1617 + $0x30] sm:$0xf]
      %v1631 = vld [vmem:[%s1617 + $0x34] sm:$0xf]
      %v1632 = vld [vmem:[%s1617 + $0x38] sm:$0xf]
      %v1633 = vld [vmem:[%s1617 + $0x3c] sm:$0xf]
      %v1646 = vunpack.c.l.b16 %v1605
      %v1647 = vunpack.c.l.b16 %v1606
      %v1648 = vunpack.c.l.b16 %v1607
      %v1649 = vunpack.c.l.b16 %v1608
      %v1650 = vunpack.c.l.b16 %v1609
      %v1651 = vunpack.c.l.b16 %v1610
      %v1652 = vunpack.c.l.b16 %v1611
      %v1653 = vunpack.c.l.b16 %v1612
      %v1654 = vunpack.c.l.b16 %v1613
      %v1655 = vunpack.c.l.b16 %v1614
      %v1656 = vunpack.c.l.b16 %v1615
      %v1657 = vunpack.c.l.b16 %v1616
      %v1658 = vpack.c.b16 %v1647, %v1646
      %v1659 = vpack.c.b16 %v1649, %v1648
      %v1660 = vpack.c.b16 %v1651, %v1650
      %v1661 = vpack.c.b16 %v1653, %v1652
      %v1662 = vpack.c.b16 %v1655, %v1654
      %v1663 = vpack.c.b16 %v1657, %v1656
      %vm1664 = vcmask 1044480
      %v1665 = vrot.slane %v1658, 3
      %v1666 = vrot.slane %v1659, 3
      %v1667 = vsel %vm1664, %v1665, %v1666
      %v1668 = vrot.slane %v1660, 3
      %v1669 = vsel %vm1664, %v1666, %v1668
      %v1670 = vrot.slane %v1661, 3
      %v1671 = vsel %vm1664, %v1668, %v1670
      %v1672 = vrot.slane %v1662, 3
      %v1673 = vsel %vm1664, %v1670, %v1672
      %v1674 = vrot.slane %v1663, 3
      %v1675 = vsel %vm1664, %v1672, %v1674
      %v1698 = vunpack.c.l.b16 %v1618
      %v1699 = vunpack.c.l.b16 %v1619
      %v1700 = vunpack.c.l.b16 %v1620
      %v1701 = vunpack.c.l.b16 %v1621
      %v1702 = vunpack.c.l.b16 %v1622
      %v1703 = vunpack.c.l.b16 %v1623
      %v1704 = vunpack.c.l.b16 %v1624
      %v1705 = vunpack.c.l.b16 %v1625
      %v1706 = vunpack.c.l.b16 %v1626
      %v1707 = vunpack.c.l.b16 %v1627
      %v1708 = vunpack.c.l.b16 %v1628
      %v1709 = vunpack.c.l.b16 %v1629
      %v1710 = vunpack.c.l.b16 %v1630
      %v1711 = vunpack.c.l.b16 %v1631
      %v1712 = vunpack.c.l.b16 %v1632
      %v1713 = vunpack.c.l.b16 %v1633
      %v1714 = vpack.c.b16 %v1699, %v1698
      %v1715 = vpack.c.b16 %v1701, %v1700
      %v1716 = vpack.c.b16 %v1703, %v1702
      %v1717 = vpack.c.b16 %v1705, %v1704
      %v1718 = vpack.c.b16 %v1707, %v1706
      %v1719 = vpack.c.b16 %v1709, %v1708
      %v1720 = vpack.c.b16 %v1711, %v1710
      %v1721 = vpack.c.b16 %v1713, %v1712
      %1730 = vmatprep.subr.bf16.mxu0 0
      %1731 = vmatpush1.bf16.msra.mxu0 %v1714
      %1732 = vmatprep.subr.bf16.mxu0 0
      %1733 = vmatpush1.bf16.msra.mxu0 %v1715
      %1734 = vmatprep.subr.bf16.mxu0 0
      %1735 = vmatpush1.bf16.msra.mxu0 %v1716
      %1736 = vmatprep.subr.bf16.mxu0 0
      %1737 = vmatpush1.bf16.msra.mxu0 %v1717
      %1738 = vmatprep.subr.bf16.mxu0 0
      %1739 = vmatpush1.bf16.msra.mxu0 %v1718
      %1740 = vmatprep.subr.bf16.mxu0 0
      %1741 = vmatpush1.bf16.msra.mxu0 %v1719
      %1742 = vmatprep.subr.bf16.mxu0 0
      %1743 = vmatpush1.bf16.msra.mxu0 %v1720
      %1744 = vmatprep.subr.bf16.mxu0 0
      %1745 = vmatpush1.bf16.msra.mxu0 %v1721
      %1746 = vmatprep.subr.bf16.mxu0 0
      %1747 = vmatpush1.bf16.msra.mxu0 0
      %1748 = vmatprep.subr.bf16.mxu0 0
      %1749 = vmatpush1.bf16.msra.mxu0 0
      %1750 = vmatprep.subr.bf16.mxu0 0
      %1751 = vmatpush1.bf16.msra.mxu0 0
      %1752 = vmatprep.subr.bf16.mxu0 0
      %1753 = vmatpush1.bf16.msra.mxu0 0
      %1754 = vmatprep.subr.bf16.mxu0 0
      %1755 = vmatpush1.bf16.msra.mxu0 0
      %1756 = vmatprep.subr.bf16.mxu0 0
      %1757 = vmatpush1.bf16.msra.mxu0 0
      %1758 = vmatprep.subr.bf16.mxu0 0
      %1759 = vmatpush1.bf16.msra.mxu0 0
      %1760 = vmatprep.subr.bf16.mxu0 0
      %1761 = vmatpush1.bf16.msra.mxu0 0
      %1762 = vmatprep.mubr.bf16.mxu0 0
      %1763 = vmatmul.mubr.bf16.gmra.mrb[0].mxu0 %v1667
      %v1764 = vpop.f32.mrb[0].mxu0
      %v1765 = vadd.f32 0.0, %v1764
      %v1766 = vpop.f32.mrb[0].mxu0
      %v1767 = vpop.f32.mrb[0].mxu0
      %v1768 = vadd.f32 0.0, %v1767
      %v1769 = vpop.f32.mrb[0].mxu0
      %1770 = vmatprep.mubr.bf16.mxu0 0
      %1771 = vmatmul.mubr.bf16.gmra.mrb[0].mxu0 %v1669
      %v1772 = vpop.f32.mrb[0].mxu0
      %v1773 = vadd.f32 0.0, %v1772
      %v1774 = vpop.f32.mrb[0].mxu0
      %v1775 = vpop.f32.mrb[0].mxu0
      %v1776 = vadd.f32 0.0, %v1775
      %v1777 = vpop.f32.mrb[0].mxu0
      %1778 = vmatprep.mubr.bf16.mxu0 0
      %1779 = vmatmul.mubr.bf16.gmra.mrb[0].mxu0 %v1671
      %v1780 = vpop.f32.mrb[0].mxu0
      %v1781 = vadd.f32 0.0, %v1780
      %v1782 = vpop.f32.mrb[0].mxu0
      %v1783 = vpop.f32.mrb[0].mxu0
      %v1784 = vadd.f32 0.0, %v1783
      %v1785 = vpop.f32.mrb[0].mxu0
      %1786 = vmatprep.mubr.bf16.mxu0 0
      %1787 = vmatmul.mubr.bf16.gmra.mrb[0].mxu0 %v1673
      %v1788 = vpop.f32.mrb[0].mxu0
      %v1789 = vadd.f32 0.0, %v1788
      %v1790 = vpop.f32.mrb[0].mxu0
      %v1791 = vpop.f32.mrb[0].mxu0
      %v1792 = vadd.f32 0.0, %v1791
      %v1793 = vpop.f32.mrb[0].mxu0
      %1794 = vmatprep.mubr.bf16.mxu0 0
      %1795 = vmatmul.mubr.bf16.gmra.mrb[0].mxu0 %v1675
      %v1796 = vpop.f32.mrb[0].mxu0
      %v1797 = vadd.f32 0.0, %v1796
      %v1798 = vpop.f32.mrb[0].mxu0
      %v1799 = vpop.f32.mrb[0].mxu0
      %v1800 = vadd.f32 0.0, %v1799
      %v1801 = vpop.f32.mrb[0].mxu0
      %1802 = vmatprep.mubr.bf16.mxu0 0
      %1803 = vmatmul.mubr.bf16.gmra.mrb[0].mxu0 %v1674
      %v1804 = vpop.f32.mrb[0].mxu0
      %v1805 = vadd.f32 0.0, %v1804
      %v1806 = vpop.f32.mrb[0].mxu0
      %v1807 = vpop.f32.mrb[0].mxu0
      %v1808 = vpop.f32.mrb[0].mxu0
      %1809 = vdwg.mxu0
      %v1810 = vadd.f32 %v1594, %v1765
      %v1811 = vadd.f32 %v1595, %v1768
      %v1812 = vadd.f32 %v1596, %v1773
      %v1813 = vadd.f32 %v1597, %v1776
      %v1814 = vadd.f32 %v1598, %v1781
      %v1815 = vadd.f32 %v1599, %v1784
      %v1816 = vadd.f32 %v1600, %v1789
      %v1817 = vadd.f32 %v1601, %v1792
      %v1818 = vadd.f32 %v1602, %v1797
      %v1819 = vadd.f32 %v1603, %v1800
      %v1820 = vadd.f32 %v1604, %v1805
      %v1821 = vld [vmem:[%s370 + $0x34] sm:$0xf]
      %s1822 = scalar_lea.vmem %s1, 448
      %v1823 = vld [vmem:[%s1822] sm:$0xf]
      %v1824 = vld [vmem:[%s1822 + $0x4] sm:$0xf]
      %v1825 = vld [vmem:[%s1822 + $0x8] sm:$0xf]
      %v1826 = vld [vmem:[%s1822 + $0xc] sm:$0xf]
      %v1827 = vld [vmem:[%s1822 + $0x10] sm:$0xf]
      %v1828 = vld [vmem:[%s1822 + $0x14] sm:$0xf]
      %v1829 = vld [vmem:[%s1822 + $0x18] sm:$0xf]
      %v1830 = vld [vmem:[%s1822 + $0x1c] sm:$0xf]
      %v1831 = vld [vmem:[%s1822 + $0x20] sm:$0xf]
      %v1832 = vld [vmem:[%s1822 + $0x24] sm:$0xf]
      %v1833 = vld [vmem:[%s1822 + $0x28] sm:$0xf]
      %v1834 = vld [vmem:[%s1822 + $0x2c] sm:$0xf]
      %v1835 = vld [vmem:[%s1822 + $0x30] sm:$0xf]
      %v1836 = vld [vmem:[%s1822 + $0x34] sm:$0xf]
      %v1837 = vld [vmem:[%s1822 + $0x38] sm:$0xf]
      %v1838 = vld [vmem:[%s1822 + $0x3c] sm:$0xf]
      %v1840 = vunpack.c.l.b16 %v1821
      %v1841 = vpack.c.b16 %v1840, %v1656
      %vm1842 = vsmask.f32 4352
      %v1844 = vshrl.u32 %v1658, 16
      %v1846 = vrot.slane %v1844, 3
      %v1847 = vshll.u32 %v1658, 16
      %v1849 = vrot.slane %v1847, 4
      %v1850 = vor.u32 %v1846, %v1849
      %v1852 = vshrl.u32 %v1659, 16
      %v1854 = vrot.slane %v1852, 3
      %v1855 = vshll.u32 %v1659, 16
      %v1857 = vrot.slane %v1855, 4
      %v1858 = vor.u32 %v1854, %v1857
      %v1859 = vsel %vm1842, %v1850, %v1858
      %v1861 = vshrl.u32 %v1660, 16
      %v1863 = vrot.slane %v1861, 3
      %v1864 = vshll.u32 %v1660, 16
      %v1866 = vrot.slane %v1864, 4
      %v1867 = vor.u32 %v1863, %v1866
      %v1868 = vsel %vm1842, %v1858, %v1867
      %v1870 = vshrl.u32 %v1661, 16
      %v1872 = vrot.slane %v1870, 3
      %v1873 = vshll.u32 %v1661, 16
      %v1875 = vrot.slane %v1873, 4
      %v1876 = vor.u32 %v1872, %v1875
      %v1877 = vsel %vm1842, %v1867, %v1876
      %v1879 = vshrl.u32 %v1662, 16
      %v1881 = vrot.slane %v1879, 3
      %v1882 = vshll.u32 %v1662, 16
      %v1884 = vrot.slane %v1882, 4
      %v1885 = vor.u32 %v1881, %v1884
      %v1886 = vsel %vm1842, %v1876, %v1885
      %v1888 = vshrl.u32 %v1841, 16
      %v1890 = vrot.slane %v1888, 3
      %v1891 = vshll.u32 %v1841, 16
      %v1893 = vrot.slane %v1891, 4
      %v1894 = vor.u32 %v1890, %v1893
      %v1895 = vsel %vm1842, %v1885, %v1894
      %v1918 = vunpack.c.l.b16 %v1823
      %v1919 = vunpack.c.l.b16 %v1824
      %v1920 = vunpack.c.l.b16 %v1825
      %v1921 = vunpack.c.l.b16 %v1826
      %v1922 = vunpack.c.l.b16 %v1827
      %v1923 = vunpack.c.l.b16 %v1828
      %v1924 = vunpack.c.l.b16 %v1829
      %v1925 = vunpack.c.l.b16 %v1830
      %v1926 = vunpack.c.l.b16 %v1831
      %v1927 = vunpack.c.l.b16 %v1832
      %v1928 = vunpack.c.l.b16 %v1833
      %v1929 = vunpack.c.l.b16 %v1834
      %v1930 = vunpack.c.l.b16 %v1835
      %v1931 = vunpack.c.l.b16 %v1836
      %v1932 = vunpack.c.l.b16 %v1837
      %v1933 = vunpack.c.l.b16 %v1838
      %v1934 = vpack.c.b16 %v1919, %v1918
      %v1935 = vpack.c.b16 %v1921, %v1920
      %v1936 = vpack.c.b16 %v1923, %v1922
      %v1937 = vpack.c.b16 %v1925, %v1924
      %v1938 = vpack.c.b16 %v1927, %v1926
      %v1939 = vpack.c.b16 %v1929, %v1928
      %v1940 = vpack.c.b16 %v1931, %v1930
      %v1941 = vpack.c.b16 %v1933, %v1932
      %1950 = vmatprep.subr.bf16.mxu0 0
      %1951 = vmatpush1.bf16.msra.mxu0 %v1934
      %1952 = vmatprep.subr.bf16.mxu0 0
      %1953 = vmatpush1.bf16.msra.mxu0 %v1935
      %1954 = vmatprep.subr.bf16.mxu0 0
      %1955 = vmatpush1.bf16.msra.mxu0 %v1936
      %1956 = vmatprep.subr.bf16.mxu0 0
      %1957 = vmatpush1.bf16.msra.mxu0 %v1937
      %1958 = vmatprep.subr.bf16.mxu0 0
      %1959 = vmatpush1.bf16.msra.mxu0 %v1938
      %1960 = vmatprep.subr.bf16.mxu0 0
      %1961 = vmatpush1.bf16.msra.mxu0 %v1939
      %1962 = vmatprep.subr.bf16.mxu0 0
      %1963 = vmatpush1.bf16.msra.mxu0 %v1940
      %1964 = vmatprep.subr.bf16.mxu0 0
      %1965 = vmatpush1.bf16.msra.mxu0 %v1941
      %1966 = vmatprep.subr.bf16.mxu0 0
      %1967 = vmatpush1.bf16.msra.mxu0 0
      %1968 = vmatprep.subr.bf16.mxu0 0
      %1969 = vmatpush1.bf16.msra.mxu0 0
      %1970 = vmatprep.subr.bf16.mxu0 0
      %1971 = vmatpush1.bf16.msra.mxu0 0
      %1972 = vmatprep.subr.bf16.mxu0 0
      %1973 = vmatpush1.bf16.msra.mxu0 0
      %1974 = vmatprep.subr.bf16.mxu0 0
      %1975 = vmatpush1.bf16.msra.mxu0 0
      %1976 = vmatprep.subr.bf16.mxu0 0
      %1977 = vmatpush1.bf16.msra.mxu0 0
      %1978 = vmatprep.subr.bf16.mxu0 0
      %1979 = vmatpush1.bf16.msra.mxu0 0
      %1980 = vmatprep.subr.bf16.mxu0 0
      %1981 = vmatpush1.bf16.msra.mxu0 0
      %1982 = vmatprep.mubr.bf16.mxu0 0
      %1983 = vmatmul.mubr.bf16.gmra.mrb[0].mxu0 %v1859
      %v1984 = vpop.f32.mrb[0].mxu0
      %v1985 = vadd.f32 0.0, %v1984
      %v1986 = vpop.f32.mrb[0].mxu0
      %v1987 = vpop.f32.mrb[0].mxu0
      %v1988 = vadd.f32 0.0, %v1987
      %v1989 = vpop.f32.mrb[0].mxu0
      %1990 = vmatprep.mubr.bf16.mxu0 0
      %1991 = vmatmul.mubr.bf16.gmra.mrb[0].mxu0 %v1868
      %v1992 = vpop.f32.mrb[0].mxu0
      %v1993 = vadd.f32 0.0, %v1992
      %v1994 = vpop.f32.mrb[0].mxu0
      %v1995 = vpop.f32.mrb[0].mxu0
      %v1996 = vadd.f32 0.0, %v1995
      %v1997 = vpop.f32.mrb[0].mxu0
      %1998 = vmatprep.mubr.bf16.mxu0 0
      %1999 = vmatmul.mubr.bf16.gmra.mrb[0].mxu0 %v1877
      %v2000 = vpop.f32.mrb[0].mxu0
      %v2001 = vadd.f32 0.0, %v2000
      %v2002 = vpop.f32.mrb[0].mxu0
      %v2003 = vpop.f32.mrb[0].mxu0
      %v2004 = vadd.f32 0.0, %v2003
      %v2005 = vpop.f32.mrb[0].mxu0
      %2006 = vmatprep.mubr.bf16.mxu0 0
      %2007 = vmatmul.mubr.bf16.gmra.mrb[0].mxu0 %v1886
      %v2008 = vpop.f32.mrb[0].mxu0
      %v2009 = vadd.f32 0.0, %v2008
      %v2010 = vpop.f32.mrb[0].mxu0
      %v2011 = vpop.f32.mrb[0].mxu0
      %v2012 = vadd.f32 0.0, %v2011
      %v2013 = vpop.f32.mrb[0].mxu0
      %2014 = vmatprep.mubr.bf16.mxu0 0
      %2015 = vmatmul.mubr.bf16.gmra.mrb[0].mxu0 %v1895
      %v2016 = vpop.f32.mrb[0].mxu0
      %v2017 = vadd.f32 0.0, %v2016
      %v2018 = vpop.f32.mrb[0].mxu0
      %v2019 = vpop.f32.mrb[0].mxu0
      %v2020 = vadd.f32 0.0, %v2019
      %v2021 = vpop.f32.mrb[0].mxu0
      %2022 = vmatprep.mubr.bf16.mxu0 0
      %2023 = vmatmul.mubr.bf16.gmra.mrb[0].mxu0 %v1894
      %v2024 = vpop.f32.mrb[0].mxu0
      %v2025 = vadd.f32 0.0, %v2024
      %v2026 = vpop.f32.mrb[0].mxu0
      %v2027 = vpop.f32.mrb[0].mxu0
      %v2028 = vpop.f32.mrb[0].mxu0
      %2029 = vdwg.mxu0
      %v2030 = vadd.f32 %v1810, %v1985
      %v2031 = vadd.f32 %v1811, %v1988
      %v2032 = vadd.f32 %v1812, %v1993
      %v2033 = vadd.f32 %v1813, %v1996
      %v2034 = vadd.f32 %v1814, %v2001
      %v2035 = vadd.f32 %v1815, %v2004
      %v2036 = vadd.f32 %v1816, %v2009
      %v2037 = vadd.f32 %v1817, %v2012
      %v2038 = vadd.f32 %v1818, %v2017
      %v2039 = vadd.f32 %v1819, %v2020
      %v2040 = vadd.f32 %v1820, %v2025
      %s2041 = scalar_lea.vmem %s1, 512
      %v2042 = vld [vmem:[%s2041] sm:$0xf]
      %v2043 = vld [vmem:[%s2041 + $0x4] sm:$0xf]
      %v2044 = vld [vmem:[%s2041 + $0x8] sm:$0xf]
      %v2045 = vld [vmem:[%s2041 + $0xc] sm:$0xf]
      %v2046 = vld [vmem:[%s2041 + $0x10] sm:$0xf]
      %v2047 = vld [vmem:[%s2041 + $0x14] sm:$0xf]
      %v2048 = vld [vmem:[%s2041 + $0x18] sm:$0xf]
      %v2049 = vld [vmem:[%s2041 + $0x1c] sm:$0xf]
      %v2050 = vld [vmem:[%s2041 + $0x20] sm:$0xf]
      %v2051 = vld [vmem:[%s2041 + $0x24] sm:$0xf]
      %v2052 = vld [vmem:[%s2041 + $0x28] sm:$0xf]
      %v2053 = vld [vmem:[%s2041 + $0x2c] sm:$0xf]
      %v2054 = vld [vmem:[%s2041 + $0x30] sm:$0xf]
      %v2055 = vld [vmem:[%s2041 + $0x34] sm:$0xf]
      %v2056 = vld [vmem:[%s2041 + $0x38] sm:$0xf]
      %v2057 = vld [vmem:[%s2041 + $0x3c] sm:$0xf]
      %v2058 = vpack.c.b16 %v1648, %v1647
      %v2059 = vpack.c.b16 %v1650, %v1649
      %v2060 = vpack.c.b16 %v1652, %v1651
      %v2061 = vpack.c.b16 %v1654, %v1653
      %v2062 = vpack.c.b16 %v1656, %v1655
      %v2063 = vpack.c.b16 %v1840, %v1840
      %v2086 = vunpack.c.l.b16 %v2042
      %v2087 = vunpack.c.l.b16 %v2043
      %v2088 = vunpack.c.l.b16 %v2044
      %v2089 = vunpack.c.l.b16 %v2045
      %v2090 = vunpack.c.l.b16 %v2046
      %v2091 = vunpack.c.l.b16 %v2047
      %v2092 = vunpack.c.l.b16 %v2048
      %v2093 = vunpack.c.l.b16 %v2049
      %v2094 = vunpack.c.l.b16 %v2050
      %v2095 = vunpack.c.l.b16 %v2051
      %v2096 = vunpack.c.l.b16 %v2052
      %v2097 = vunpack.c.l.b16 %v2053
      %v2098 = vunpack.c.l.b16 %v2054
      %v2099 = vunpack.c.l.b16 %v2055
      %v2100 = vunpack.c.l.b16 %v2056
      %v2101 = vunpack.c.l.b16 %v2057
      %v2102 = vpack.c.b16 %v2087, %v2086
      %v2103 = vpack.c.b16 %v2089, %v2088
      %v2104 = vpack.c.b16 %v2091, %v2090
      %v2105 = vpack.c.b16 %v2093, %v2092
      %v2106 = vpack.c.b16 %v2095, %v2094
      %v2107 = vpack.c.b16 %v2097, %v2096
      %v2108 = vpack.c.b16 %v2099, %v2098
      %v2109 = vpack.c.b16 %v2101, %v2100
      %2118 = vmatprep.subr.bf16.mxu0 0
      %2119 = vmatpush1.bf16.msra.mxu0 %v2102
      %2120 = vmatprep.subr.bf16.mxu0 0
      %2121 = vmatpush1.bf16.msra.mxu0 %v2103
      %2122 = vmatprep.subr.bf16.mxu0 0
      %2123 = vmatpush1.bf16.msra.mxu0 %v2104
      %2124 = vmatprep.subr.bf16.mxu0 0
      %2125 = vmatpush1.bf16.msra.mxu0 %v2105
      %2126 = vmatprep.subr.bf16.mxu0 0
      %2127 = vmatpush1.bf16.msra.mxu0 %v2106
      %2128 = vmatprep.subr.bf16.mxu0 0
      %2129 = vmatpush1.bf16.msra.mxu0 %v2107
      %2130 = vmatprep.subr.bf16.mxu0 0
      %2131 = vmatpush1.bf16.msra.mxu0 %v2108
      %2132 = vmatprep.subr.bf16.mxu0 0
      %2133 = vmatpush1.bf16.msra.mxu0 %v2109
      %2134 = vmatprep.subr.bf16.mxu0 0
      %2135 = vmatpush1.bf16.msra.mxu0 0
      %2136 = vmatprep.subr.bf16.mxu0 0
      %2137 = vmatpush1.bf16.msra.mxu0 0
      %2138 = vmatprep.subr.bf16.mxu0 0
      %2139 = vmatpush1.bf16.msra.mxu0 0
      %2140 = vmatprep.subr.bf16.mxu0 0
      %2141 = vmatpush1.bf16.msra.mxu0 0
      %2142 = vmatprep.subr.bf16.mxu0 0
      %2143 = vmatpush1.bf16.msra.mxu0 0
      %2144 = vmatprep.subr.bf16.mxu0 0
      %2145 = vmatpush1.bf16.msra.mxu0 0
      %2146 = vmatprep.subr.bf16.mxu0 0
      %2147 = vmatpush1.bf16.msra.mxu0 0
      %2148 = vmatprep.subr.bf16.mxu0 0
      %2149 = vmatpush1.bf16.msra.mxu0 0
      %2150 = vmatprep.mubr.bf16.mxu0 0
      %2151 = vmatmul.mubr.bf16.gmra.mrb[0].mxu0 %v2058
      %v2152 = vpop.f32.mrb[0].mxu0
      %v2153 = vadd.f32 0.0, %v2152
      %v2154 = vpop.f32.mrb[0].mxu0
      %v2155 = vpop.f32.mrb[0].mxu0
      %v2156 = vadd.f32 0.0, %v2155
      %v2157 = vpop.f32.mrb[0].mxu0
      %2158 = vmatprep.mubr.bf16.mxu0 0
      %2159 = vmatmul.mubr.bf16.gmra.mrb[0].mxu0 %v2059
      %v2160 = vpop.f32.mrb[0].mxu0
      %v2161 = vadd.f32 0.0, %v2160
      %v2162 = vpop.f32.mrb[0].mxu0
      %v2163 = vpop.f32.mrb[0].mxu0
      %v2164 = vadd.f32 0.0, %v2163
      %v2165 = vpop.f32.mrb[0].mxu0
      %2166 = vmatprep.mubr.bf16.mxu0 0
      %2167 = vmatmul.mubr.bf16.gmra.mrb[0].mxu0 %v2060
      %v2168 = vpop.f32.mrb[0].mxu0
      %v2169 = vadd.f32 0.0, %v2168
      %v2170 = vpop.f32.mrb[0].mxu0
      %v2171 = vpop.f32.mrb[0].mxu0
      %v2172 = vadd.f32 0.0, %v2171
      %v2173 = vpop.f32.mrb[0].mxu0
      %2174 = vmatprep.mubr.bf16.mxu0 0
      %2175 = vmatmul.mubr.bf16.gmra.mrb[0].mxu0 %v2061
      %v2176 = vpop.f32.mrb[0].mxu0
      %v2177 = vadd.f32 0.0, %v2176
      %v2178 = vpop.f32.mrb[0].mxu0
      %v2179 = vpop.f32.mrb[0].mxu0
      %v2180 = vadd.f32 0.0, %v2179
      %v2181 = vpop.f32.mrb[0].mxu0
      %2182 = vmatprep.mubr.bf16.mxu0 0
      %2183 = vmatmul.mubr.bf16.gmra.mrb[0].mxu0 %v2062
      %v2184 = vpop.f32.mrb[0].mxu0
      %v2185 = vadd.f32 0.0, %v2184
      %v2186 = vpop.f32.mrb[0].mxu0
      %v2187 = vpop.f32.mrb[0].mxu0
      %v2188 = vadd.f32 0.0, %v2187
      %v2189 = vpop.f32.mrb[0].mxu0
      %2190 = vmatprep.mubr.bf16.mxu0 0
      %2191 = vmatmul.mubr.bf16.gmra.mrb[0].mxu0 %v2063
      %v2192 = vpop.f32.mrb[0].mxu0
      %v2193 = vadd.f32 0.0, %v2192
      %v2194 = vpop.f32.mrb[0].mxu0
      %v2195 = vpop.f32.mrb[0].mxu0
      %v2196 = vpop.f32.mrb[0].mxu0
      %2197 = vdwg.mxu0
      %v2198 = vadd.f32 %v2030, %v2153
      %v2199 = vadd.f32 %v2031, %v2156
      %v2200 = vadd.f32 %v2032, %v2161
      %v2201 = vadd.f32 %v2033, %v2164
      %v2202 = vadd.f32 %v2034, %v2169
      %v2203 = vadd.f32 %v2035, %v2172
      %v2204 = vadd.f32 %v2036, %v2177
      %v2205 = vadd.f32 %v2037, %v2180
      %v2206 = vadd.f32 %v2038, %v2185
      %v2207 = vadd.f32 %v2039, %v2188
      %v2208 = vadd.f32 %v2040, %v2193
      %v2209 = vlaneseq
      %v2210 = vshrl.u32 %v2209, 7
      %v2211 = vadd.s32 %v2210, 8
      %v2212 = vadd.s32 %v2210, 16
      %v2213 = vadd.s32 %v2210, 24
      %v2214 = vadd.s32 %v2210, 32
      %v2215 = vadd.s32 %v2210, 40
      %v2216 = vadd.s32 %v2210, 48
      %v2217 = vadd.s32 %v2210, 56
      %v2218 = vadd.s32 %v2210, 64
      %v2219 = vadd.s32 %v2210, 72
      %v2220 = vadd.s32 %v2210, 80
      %v2221 = vcvt.s32.f32 %v2210
      %v2222 = vcvt.s32.f32 %v2211
      %v2223 = vcvt.s32.f32 %v2212
      %v2224 = vcvt.s32.f32 %v2213
      %v2225 = vcvt.s32.f32 %v2214
      %v2226 = vcvt.s32.f32 %v2215
      %v2227 = vcvt.s32.f32 %v2216
      %v2228 = vcvt.s32.f32 %v2217
      %v2229 = vcvt.s32.f32 %v2218
      %v2230 = vcvt.s32.f32 %v2219
      %v2231 = vcvt.s32.f32 %v2220
      %v2232 = vrcp.pop 11.0
      %v2233 = vmul.f32 %v2221, %v2232
      %v2234 = vmul.f32 %v2222, %v2232
      %v2235 = vmul.f32 %v2223, %v2232
      %v2236 = vmul.f32 %v2224, %v2232
      %v2237 = vmul.f32 %v2225, %v2232
      %v2238 = vmul.f32 %v2226, %v2232
      %v2239 = vmul.f32 %v2227, %v2232
      %v2240 = vmul.f32 %v2228, %v2232
      %v2241 = vmul.f32 %v2229, %v2232
      %v2242 = vmul.f32 %v2230, %v2232
      %v2243 = vmul.f32 %v2231, %v2232
      %v2244 = vfloor.f32 %v2233
      %v2245 = vfloor.f32 %v2234
      %v2246 = vfloor.f32 %v2235
      %v2247 = vfloor.f32 %v2236
      %v2248 = vfloor.f32 %v2237
      %v2249 = vfloor.f32 %v2238
      %v2250 = vfloor.f32 %v2239
      %v2251 = vfloor.f32 %v2240
      %v2252 = vfloor.f32 %v2241
      %v2253 = vfloor.f32 %v2242
      %v2254 = vfloor.f32 %v2243
      %v2255 = vmul.f32 %v2244, 11.0
      %v2256 = vmul.f32 %v2245, 11.0
      %v2257 = vmul.f32 %v2246, 11.0
      %v2258 = vmul.f32 %v2247, 11.0
      %v2259 = vmul.f32 %v2248, 11.0
      %v2260 = vmul.f32 %v2249, 11.0
      %v2261 = vmul.f32 %v2250, 11.0
      %v2262 = vmul.f32 %v2251, 11.0
      %v2263 = vmul.f32 %v2252, 11.0
      %v2264 = vmul.f32 %v2253, 11.0
      %v2265 = vmul.f32 %v2254, 11.0
      %v2266 = vsub.f32 %v2221, %v2255
      %v2267 = vsub.f32 %v2222, %v2256
      %v2268 = vsub.f32 %v2223, %v2257
      %v2269 = vsub.f32 %v2224, %v2258
      %v2270 = vsub.f32 %v2225, %v2259
      %v2271 = vsub.f32 %v2226, %v2260
      %v2272 = vsub.f32 %v2227, %v2261
      %v2273 = vsub.f32 %v2228, %v2262
      %v2274 = vsub.f32 %v2229, %v2263
      %v2275 = vsub.f32 %v2230, %v2264
      %v2276 = vsub.f32 %v2231, %v2265
      %vm2277 = vcmp.lt.f32.partialorder %v2266, 8.0
      %vm2278 = vcmp.lt.f32.partialorder %v2267, 8.0
      %vm2279 = vcmp.lt.f32.partialorder %v2268, 8.0
      %vm2280 = vcmp.lt.f32.partialorder %v2269, 8.0
      %vm2281 = vcmp.lt.f32.partialorder %v2270, 8.0
      %vm2282 = vcmp.lt.f32.partialorder %v2271, 8.0
      %vm2283 = vcmp.lt.f32.partialorder %v2272, 8.0
      %vm2284 = vcmp.lt.f32.partialorder %v2273, 8.0
      %vm2285 = vcmp.lt.f32.partialorder %v2274, 8.0
      %vm2286 = vcmp.lt.f32.partialorder %v2275, 8.0
      %vm2287 = vcmp.lt.f32.partialorder %v2276, 8.0
      %v2288 = vsel %vm2277, %v2198, 0.0
      %v2289 = vsel %vm2278, %v2199, 0.0
      %v2290 = vsel %vm2279, %v2200, 0.0
      %v2291 = vsel %vm2280, %v2201, 0.0
      %v2292 = vsel %vm2281, %v2202, 0.0
      %v2293 = vsel %vm2282, %v2203, 0.0
      %v2294 = vsel %vm2283, %v2204, 0.0
      %v2295 = vsel %vm2284, %v2205, 0.0
      %v2296 = vsel %vm2285, %v2206, 0.0
      %v2297 = vsel %vm2286, %v2207, 0.0
      %v2298 = vsel %vm2287, %v2208, 0.0
      %v2299 = vpack.c.bf16 %v2289, %v2288
      %v2300 = vpack.c.bf16 %v2291, %v2290
      %v2301 = vpack.c.bf16 %v2293, %v2292
      %v2302 = vpack.c.bf16 %v2295, %v2294
      %v2303 = vpack.c.bf16 %v2297, %v2296
      %v2304 = vpack.c.bf16 %v2298, %v2298
      %v2311 = vunpack.c.l.b16 %v2299
      %v2312 = vunpack.c.h.b16 %v2299
      %v2313 = vunpack.c.l.b16 %v2300
      %v2314 = vunpack.c.h.b16 %v2300
      %v2315 = vunpack.c.l.b16 %v2301
      %v2316 = vunpack.c.h.b16 %v2301
      %v2317 = vunpack.c.l.b16 %v2302
      %v2318 = vunpack.c.h.b16 %v2302
      %v2319 = vunpack.c.l.b16 %v2303
      %v2320 = vunpack.c.h.b16 %v2303
      %v2321 = vunpack.c.l.b16 %v2304
      %v2322 = vpack.c.b16 %v2311, %v2311
      %v2323 = vpack.c.b16 %v2312, %v2312
      %v2324 = vpack.c.b16 %v2313, %v2313
      %v2325 = vpack.c.b16 %v2314, %v2314
      %v2326 = vpack.c.b16 %v2315, %v2315
      %v2327 = vpack.c.b16 %v2316, %v2316
      %v2328 = vpack.c.b16 %v2317, %v2317
      %v2329 = vpack.c.b16 %v2318, %v2318
      %v2330 = vpack.c.b16 %v2319, %v2319
      %v2331 = vpack.c.b16 %v2320, %v2320
      %v2332 = vpack.c.b16 %v2321, %v2321
      %2344 = vst [vmem:[%s380] sm:$0xf] %v2322
      %2345 = vst [vmem:[%s380 + $0x4] sm:$0xf] %v2323
      %2346 = vst [vmem:[%s380 + $0x8] sm:$0xf] %v2324
      %2347 = vst [vmem:[%s380 + $0xc] sm:$0xf] %v2325
      %2348 = vst [vmem:[%s380 + $0x10] sm:$0xf] %v2326
      %2349 = vst [vmem:[%s380 + $0x14] sm:$0xf] %v2327
      %2350 = vst [vmem:[%s380 + $0x18] sm:$0xf] %v2328
      %2351 = vst [vmem:[%s380 + $0x1c] sm:$0xf] %v2329
      %2352 = vst [vmem:[%s380 + $0x20] sm:$0xf] %v2330
      %2353 = vst [vmem:[%s380 + $0x24] sm:$0xf] %v2331
      %2354 = vst [vmem:[%s380 + $0x28] sm:$0xf] %v2332
      %v2355 = vadd.f32 %v2288, %v2289
      %v2356 = vadd.f32 %v2355, %v2290
      %v2357 = vadd.f32 %v2356, %v2291
      %v2358 = vadd.f32 %v2357, %v2292
      %v2359 = vadd.f32 %v2358, %v2293
      %v2360 = vadd.f32 %v2359, %v2294
      %v2361 = vadd.f32 %v2360, %v2295
      %v2362 = vadd.f32 %v2361, %v2296
      %v2363 = vadd.f32 %v2362, %v2297
      %v2364 = vadd.f32 %v2363, %v2298
      %v2365 = vrot.slane %v2364, 4
      %v2366 = vadd.f32 %v2364, %v2365
      %v2367 = vrot.slane %v2366, 2
      %v2368 = vadd.f32 %v2366, %v2367
      %v2369 = vrot.slane %v2368, 1
      %v2370 = vadd.f32 %v2368, %v2369
      %2371 = vst [vmem:[%s388] sm:$0x1] %v2370
      %v2372 = vmul.f32 %v2288, %v2288
      %v2373 = vmul.f32 %v2289, %v2289
      %v2374 = vmul.f32 %v2290, %v2290
      %v2375 = vmul.f32 %v2291, %v2291
      %v2376 = vmul.f32 %v2292, %v2292
      %v2377 = vmul.f32 %v2293, %v2293
      %v2378 = vmul.f32 %v2294, %v2294
      %v2379 = vmul.f32 %v2295, %v2295
      %v2380 = vmul.f32 %v2296, %v2296
      %v2381 = vmul.f32 %v2297, %v2297
      %v2382 = vmul.f32 %v2298, %v2298
      %v2383 = vadd.f32 %v2372, %v2373
      %v2384 = vadd.f32 %v2383, %v2374
      %v2385 = vadd.f32 %v2384, %v2375
      %v2386 = vadd.f32 %v2385, %v2376
      %v2387 = vadd.f32 %v2386, %v2377
      %v2388 = vadd.f32 %v2387, %v2378
      %v2389 = vadd.f32 %v2388, %v2379
      %v2390 = vadd.f32 %v2389, %v2380
      %v2391 = vadd.f32 %v2390, %v2381
      %v2392 = vadd.f32 %v2391, %v2382
      %v2393 = vrot.slane %v2392, 4
      %v2394 = vadd.f32 %v2392, %v2393
      %v2395 = vrot.slane %v2394, 2
      %v2396 = vadd.f32 %v2394, %v2395
      %v2397 = vrot.slane %v2396, 1
      %v2398 = vadd.f32 %v2396, %v2397
      %2399 = vst [vmem:[%s391] sm:$0x1] %v2398
      %v2400 = vld [vmem:[%s375] sm:$0xf]
      %v2401 = vld [vmem:[%s375 + $0x4] sm:$0xf]
      %v2402 = vld [vmem:[%s375 + $0x8] sm:$0xf]
      %v2403 = vld [vmem:[%s375 + $0xc] sm:$0xf]
      %v2404 = vld [vmem:[%s375 + $0x10] sm:$0xf]
      %v2405 = vld [vmem:[%s375 + $0x14] sm:$0xf]
      %v2406 = vld [vmem:[%s375 + $0x18] sm:$0xf]
      %v2407 = vld [vmem:[%s375 + $0x1c] sm:$0xf]
      %v2408 = vld [vmem:[%s375 + $0x20] sm:$0xf]
      %v2409 = vld [vmem:[%s375 + $0x24] sm:$0xf]
      %v2410 = vld [vmem:[%s375 + $0x28] sm:$0xf]
      %v2411 = vld [vmem:[%s3] sm:$0xf]
      %v2412 = vld [vmem:[%s3 + $0x4] sm:$0xf]
      %v2413 = vld [vmem:[%s3 + $0x8] sm:$0xf]
      %v2414 = vld [vmem:[%s3 + $0xc] sm:$0xf]
      %v2415 = vld [vmem:[%s3 + $0x10] sm:$0xf]
      %v2416 = vld [vmem:[%s3 + $0x14] sm:$0xf]
      %v2417 = vld [vmem:[%s3 + $0x18] sm:$0xf]
      %v2418 = vld [vmem:[%s3 + $0x1c] sm:$0xf]
      %v2419 = vld [vmem:[%s3 + $0x20] sm:$0xf]
      %v2420 = vld [vmem:[%s3 + $0x24] sm:$0xf]
      %v2421 = vld [vmem:[%s3 + $0x28] sm:$0xf]
      %v2422 = vld [vmem:[%s3 + $0x2c] sm:$0xf]
      %v2423 = vld [vmem:[%s3 + $0x30] sm:$0xf]
      %v2424 = vld [vmem:[%s3 + $0x34] sm:$0xf]
      %v2425 = vld [vmem:[%s3 + $0x38] sm:$0xf]
      %v2426 = vld [vmem:[%s3 + $0x3c] sm:$0xf]
      %v2438 = vunpack.c.l.b16 %v2400
      %v2439 = vunpack.c.l.b16 %v2401
      %v2440 = vunpack.c.l.b16 %v2402
      %v2441 = vunpack.c.l.b16 %v2403
      %v2442 = vunpack.c.l.b16 %v2404
      %v2443 = vunpack.c.l.b16 %v2405
      %v2444 = vunpack.c.l.b16 %v2406
      %v2445 = vunpack.c.l.b16 %v2407
      %v2446 = vunpack.c.l.b16 %v2408
      %v2447 = vunpack.c.l.b16 %v2409
      %v2448 = vunpack.c.l.b16 %v2410
      %v2449 = vpack.c.b16 %v2439, %v2438
      %v2450 = vpack.c.b16 %v2441, %v2440
      %v2451 = vpack.c.b16 %v2443, %v2442
      %v2452 = vpack.c.b16 %v2445, %v2444
      %v2453 = vpack.c.b16 %v2447, %v2446
      %v2454 = vpack.c.b16 %v2448, %v2448
      %v2477 = vunpack.c.l.b16 %v2411
      %v2478 = vunpack.c.l.b16 %v2412
      %v2479 = vunpack.c.l.b16 %v2413
      %v2480 = vunpack.c.l.b16 %v2414
      %v2481 = vunpack.c.l.b16 %v2415
      %v2482 = vunpack.c.l.b16 %v2416
      %v2483 = vunpack.c.l.b16 %v2417
      %v2484 = vunpack.c.l.b16 %v2418
      %v2485 = vunpack.c.l.b16 %v2419
      %v2486 = vunpack.c.l.b16 %v2420
      %v2487 = vunpack.c.l.b16 %v2421
      %v2488 = vunpack.c.l.b16 %v2422
      %v2489 = vunpack.c.l.b16 %v2423
      %v2490 = vunpack.c.l.b16 %v2424
      %v2491 = vunpack.c.l.b16 %v2425
      %v2492 = vunpack.c.l.b16 %v2426
      %v2493 = vpack.c.b16 %v2478, %v2477
      %v2494 = vpack.c.b16 %v2480, %v2479
      %v2495 = vpack.c.b16 %v2482, %v2481
      %v2496 = vpack.c.b16 %v2484, %v2483
      %v2497 = vpack.c.b16 %v2486, %v2485
      %v2498 = vpack.c.b16 %v2488, %v2487
      %v2499 = vpack.c.b16 %v2490, %v2489
      %v2500 = vpack.c.b16 %v2492, %v2491
      %2509 = vmatprep.subr.bf16.mxu0 0
      %2510 = vmatpush1.bf16.msra.mxu0 %v2493
      %2511 = vmatprep.subr.bf16.mxu0 0
      %2512 = vmatpush1.bf16.msra.mxu0 %v2494
      %2513 = vmatprep.subr.bf16.mxu0 0
      %2514 = vmatpush1.bf16.msra.mxu0 %v2495
      %2515 = vmatprep.subr.bf16.mxu0 0
      %2516 = vmatpush1.bf16.msra.mxu0 %v2496
      %2517 = vmatprep.subr.bf16.mxu0 0
      %2518 = vmatpush1.bf16.msra.mxu0 %v2497
      %2519 = vmatprep.subr.bf16.mxu0 0
      %2520 = vmatpush1.bf16.msra.mxu0 %v2498
      %2521 = vmatprep.subr.bf16.mxu0 0
      %2522 = vmatpush1.bf16.msra.mxu0 %v2499
      %2523 = vmatprep.subr.bf16.mxu0 0
      %2524 = vmatpush1.bf16.msra.mxu0 %v2500
      %2525 = vmatprep.subr.bf16.mxu0 0
      %2526 = vmatpush1.bf16.msra.mxu0 0
      %2527 = vmatprep.subr.bf16.mxu0 0
      %2528 = vmatpush1.bf16.msra.mxu0 0
      %2529 = vmatprep.subr.bf16.mxu0 0
      %2530 = vmatpush1.bf16.msra.mxu0 0
      %2531 = vmatprep.subr.bf16.mxu0 0
      %2532 = vmatpush1.bf16.msra.mxu0 0
      %2533 = vmatprep.subr.bf16.mxu0 0
      %2534 = vmatpush1.bf16.msra.mxu0 0
      %2535 = vmatprep.subr.bf16.mxu0 0
      %2536 = vmatpush1.bf16.msra.mxu0 0
      %2537 = vmatprep.subr.bf16.mxu0 0
      %2538 = vmatpush1.bf16.msra.mxu0 0
      %2539 = vmatprep.subr.bf16.mxu0 0
      %2540 = vmatpush1.bf16.msra.mxu0 0
      %2541 = vmatprep.mubr.bf16.mxu0 0
      %2542 = vmatmul.mubr.bf16.gmra.mrb[0].mxu0 %v2449
      %v2543 = vpop.f32.mrb[0].mxu0
      %v2544 = vadd.f32 0.0, %v2543
      %v2545 = vpop.f32.mrb[0].mxu0
      %v2546 = vpop.f32.mrb[0].mxu0
      %v2547 = vadd.f32 0.0, %v2546
      %v2548 = vpop.f32.mrb[0].mxu0
      %2549 = vmatprep.mubr.bf16.mxu0 0
      %2550 = vmatmul.mubr.bf16.gmra.mrb[0].mxu0 %v2450
      %v2551 = vpop.f32.mrb[0].mxu0
      %v2552 = vadd.f32 0.0, %v2551
      %v2553 = vpop.f32.mrb[0].mxu0
      %v2554 = vpop.f32.mrb[0].mxu0
      %v2555 = vadd.f32 0.0, %v2554
      %v2556 = vpop.f32.mrb[0].mxu0
      %2557 = vmatprep.mubr.bf16.mxu0 0
      %2558 = vmatmul.mubr.bf16.gmra.mrb[0].mxu0 %v2451
      %v2559 = vpop.f32.mrb[0].mxu0
      %v2560 = vadd.f32 0.0, %v2559
      %v2561 = vpop.f32.mrb[0].mxu0
      %v2562 = vpop.f32.mrb[0].mxu0
      %v2563 = vadd.f32 0.0, %v2562
      %v2564 = vpop.f32.mrb[0].mxu0
      %2565 = vmatprep.mubr.bf16.mxu0 0
      %2566 = vmatmul.mubr.bf16.gmra.mrb[0].mxu0 %v2452
      %v2567 = vpop.f32.mrb[0].mxu0
      %v2568 = vadd.f32 0.0, %v2567
      %v2569 = vpop.f32.mrb[0].mxu0
      %v2570 = vpop.f32.mrb[0].mxu0
      %v2571 = vadd.f32 0.0, %v2570
      %v2572 = vpop.f32.mrb[0].mxu0
      %2573 = vmatprep.mubr.bf16.mxu0 0
      %2574 = vmatmul.mubr.bf16.gmra.mrb[0].mxu0 %v2453
      %v2575 = vpop.f32.mrb[0].mxu0
      %v2576 = vadd.f32 0.0, %v2575
      %v2577 = vpop.f32.mrb[0].mxu0
      %v2578 = vpop.f32.mrb[0].mxu0
      %v2579 = vadd.f32 0.0, %v2578
      %v2580 = vpop.f32.mrb[0].mxu0
      %2581 = vmatprep.mubr.bf16.mxu0 0
      %2582 = vmatmul.mubr.bf16.gmra.mrb[0].mxu0 %v2454
      %v2583 = vpop.f32.mrb[0].mxu0
      %v2584 = vadd.f32 0.0, %v2583
      %v2585 = vpop.f32.mrb[0].mxu0
      %v2586 = vpop.f32.mrb[0].mxu0
      %v2587 = vpop.f32.mrb[0].mxu0
      %2588 = vdwg.mxu0
      %v2589 = vpack.c.bf16 %v2547, %v2544
      %v2590 = vpack.c.bf16 %v2555, %v2552
      %v2591 = vpack.c.bf16 %v2563, %v2560
      %v2592 = vpack.c.bf16 %v2571, %v2568
      %v2593 = vpack.c.bf16 %v2579, %v2576
      %v2594 = vpack.c.bf16 %v2584, %v2584
      %v2601 = vunpack.c.l.b16 %v2589
      %v2602 = vunpack.c.h.b16 %v2589
      %v2603 = vunpack.c.l.b16 %v2590
      %v2604 = vunpack.c.h.b16 %v2590
      %v2605 = vunpack.c.l.b16 %v2591
      %v2606 = vunpack.c.h.b16 %v2591
      %v2607 = vunpack.c.l.b16 %v2592
      %v2608 = vunpack.c.h.b16 %v2592
      %v2609 = vunpack.c.l.b16 %v2593
      %v2610 = vunpack.c.h.b16 %v2593
      %v2611 = vunpack.c.l.b16 %v2594
      %v2612 = vpack.c.b16 %v2601, %v2601
      %v2613 = vpack.c.b16 %v2602, %v2602
      %v2614 = vpack.c.b16 %v2603, %v2603
      %v2615 = vpack.c.b16 %v2604, %v2604
      %v2616 = vpack.c.b16 %v2605, %v2605
      %v2617 = vpack.c.b16 %v2606, %v2606
      %v2618 = vpack.c.b16 %v2607, %v2607
      %v2619 = vpack.c.b16 %v2608, %v2608
      %v2620 = vpack.c.b16 %v2609, %v2609
      %v2621 = vpack.c.b16 %v2610, %v2610
      %v2622 = vpack.c.b16 %v2611, %v2611
      %2634 = vst [vmem:[%s385] sm:$0xf] %v2612
      %2635 = vst [vmem:[%s385 + $0x4] sm:$0xf] %v2613
      %2636 = vst [vmem:[%s385 + $0x8] sm:$0xf] %v2614
      %2637 = vst [vmem:[%s385 + $0xc] sm:$0xf] %v2615
      %2638 = vst [vmem:[%s385 + $0x10] sm:$0xf] %v2616
      %2639 = vst [vmem:[%s385 + $0x14] sm:$0xf] %v2617
      %2640 = vst [vmem:[%s385 + $0x18] sm:$0xf] %v2618
      %2641 = vst [vmem:[%s385 + $0x1c] sm:$0xf] %v2619
      %2642 = vst [vmem:[%s385 + $0x20] sm:$0xf] %v2620
      %2643 = vst [vmem:[%s385 + $0x24] sm:$0xf] %v2621
      %2644 = vst [vmem:[%s385 + $0x28] sm:$0xf] %v2622
      %v2645 = vadd.f32 %v2544, %v2547
      %v2646 = vadd.f32 %v2645, %v2552
      %v2647 = vadd.f32 %v2646, %v2555
      %v2648 = vadd.f32 %v2647, %v2560
      %v2649 = vadd.f32 %v2648, %v2563
      %v2650 = vadd.f32 %v2649, %v2568
      %v2651 = vadd.f32 %v2650, %v2571
      %v2652 = vadd.f32 %v2651, %v2576
      %v2653 = vadd.f32 %v2652, %v2579
      %v2654 = vadd.f32 %v2653, %v2584
      %v2655 = vrot.slane %v2654, 4
      %v2656 = vadd.f32 %v2654, %v2655
      %v2657 = vrot.slane %v2656, 2
      %v2658 = vadd.f32 %v2656, %v2657
      %v2659 = vrot.slane %v2658, 1
      %v2660 = vadd.f32 %v2658, %v2659
      %2661 = vst [vmem:[%s394] sm:$0x1] %v2660
      %v2662 = vmul.f32 %v2544, %v2544
      %v2663 = vmul.f32 %v2547, %v2547
      %v2664 = vmul.f32 %v2552, %v2552
      %v2665 = vmul.f32 %v2555, %v2555
      %v2666 = vmul.f32 %v2560, %v2560
      %v2667 = vmul.f32 %v2563, %v2563
      %v2668 = vmul.f32 %v2568, %v2568
      %v2669 = vmul.f32 %v2571, %v2571
      %v2670 = vmul.f32 %v2576, %v2576
      %v2671 = vmul.f32 %v2579, %v2579
      %v2672 = vmul.f32 %v2584, %v2584
      %v2673 = vadd.f32 %v2662, %v2663
      %v2674 = vadd.f32 %v2673, %v2664
      %v2675 = vadd.f32 %v2674, %v2665
      %v2676 = vadd.f32 %v2675, %v2666
      %v2677 = vadd.f32 %v2676, %v2667
      %v2678 = vadd.f32 %v2677, %v2668
      %v2679 = vadd.f32 %v2678, %v2669
      %v2680 = vadd.f32 %v2679, %v2670
      %v2681 = vadd.f32 %v2680, %v2671
      %v2682 = vadd.f32 %v2681, %v2672
      %v2683 = vrot.slane %v2682, 4
      %v2684 = vadd.f32 %v2682, %v2683
      %v2685 = vrot.slane %v2684, 2
      %v2686 = vadd.f32 %v2684, %v2685
      %v2687 = vrot.slane %v2686, 1
      %v2688 = vadd.f32 %v2686, %v2687
      %2689 = vst [vmem:[%s397] sm:$0x1] %v2688
      %p2690 = scmp.lt.s32.totalorder %s21, 1
      %s2691 = scalar_select %p2690, %s21, 1
      %s2692 = smul.addr %s2691, 11
      %s2693 = smul.addr %s2692, 4
      %s2694 = scalar_lea.vmem %s4, %s2693
      %p2695 = scmp.lt.s32.totalorder %s21, 1
      %s2696 = scalar_select %p2695, %s21, 1
      %s2697 = smul.addr %s2696, 11
      %s2698 = smul.addr %s2697, 4
      %s2699 = scalar_lea.vmem %s5, %s2698
      %p2700 = scmp.lt.s32.totalorder %s21, 1
      %s2701 = scalar_select %p2700, %s21, 1
      %s2702 = scalar_lea.vmem %s6, %s2701
      %p2703 = scmp.lt.s32.totalorder %s21, 1
      %s2704 = scalar_select %p2703, %s21, 1
      %s2705 = scalar_lea.vmem %s7, %s2704
      %p2706 = scmp.lt.s32.totalorder %s21, 1
      %s2707 = scalar_select %p2706, %s21, 1
      %s2708 = scalar_lea.vmem %s8, %s2707
      %p2709 = scmp.lt.s32.totalorder %s21, 1
      %s2710 = scalar_select %p2709, %s21, 1
      %s2711 = scalar_lea.vmem %s9, %s2710
      // Predicated region
      $region37: #{block_forward.6} parent=35 // pred_check
        %p2712 = pneg %p133
      $region38: #{block_forward.6} parent=35 // pred_check_branch
        %2714 = sbr.rel (%p2712) target = $region40
      $region39: #{block_forward.6} parent=35 // pred_region
        _
      $region40: #{block_forward.6} parent=35 // pred_fallthru
        _
      // Predicated region
      $region41: #{block_forward.6} parent=35 // pred_check
        %p2715 = pneg %p159
      $region42: #{block_forward.6} parent=35 // pred_check_branch
        %2717 = sbr.rel (%p2715) target = $region44
      $region43: #{block_forward.6} parent=35 // pred_region
        _
      $region44: #{block_forward.6} parent=35 // pred_fallthru
        _
      // Predicated region
      $region45: #{block_forward.6} parent=35 // pred_check
        %p2718 = pneg %p185
      $region46: #{block_forward.6} parent=35 // pred_check_branch
        %2720 = sbr.rel (%p2718) target = $region48
      $region47: #{block_forward.6} parent=35 // pred_region
        _
      $region48: #{block_forward.6} parent=35 // pred_fallthru
        _
      // Predicated region
      $region49: #{block_forward.6} parent=35 // pred_check
        %p2721 = pneg %p211
      $region50: #{block_forward.6} parent=35 // pred_check_branch
        %2723 = sbr.rel (%p2721) target = $region52
      $region51: #{block_forward.6} parent=35 // pred_region
        _
      $region52: #{block_forward.6} parent=35 // pred_fallthru
        _
      // Predicated region
      $region53: #{block_forward.6} parent=35 // pred_check
        %p2724 = pneg %p237
      $region54: #{block_forward.6} parent=35 // pred_check_branch
        %2726 = sbr.rel (%p2724) target = $region56
      $region55: #{block_forward.6} parent=35 // pred_region
        _
      $region56: #{block_forward.6} parent=35 // pred_fallthru
        _
      // Predicated region
      $region57: #{block_forward.6} parent=35 // pred_check
        %p2727 = pneg %p263
      $region58: #{block_forward.6} parent=35 // pred_check_branch
        %2729 = sbr.rel (%p2727) target = $region60
      $region59: #{block_forward.6} parent=35 // pred_region
        _
      $region60: #{block_forward.6} parent=35 // pred_fallthru
        _
    $region36: #{block_forward.6} parent=5 // pred_fallthru
      _
    %p2730 = scmp.le.s32.totalorder 2, %s16
    // Predicated region
    $region61: #{block_forward.6} parent=5 // pred_check
      %p2731 = pneg %p2730
    $region62: #{block_forward.6} parent=5 // pred_check_branch
      %2733 = sbr.rel (%p2731) target = $region64
    $region63: #{block_forward.6} parent=5 // pred_region
      %s2734 = ssub.s32 %s16, 2
      // Predicated region
      $region65: #{block_forward.6} parent=63 // pred_check
        %p2735 = pneg %p139
      $region66: #{block_forward.6} parent=63 // pred_check_branch
        %2737 = sbr.rel (%p2735) target = $region68
      $region67: #{block_forward.6} parent=63 // pred_region
        %p2738 = scmp.lt.s32.totalorder %s22, 1
        %s2739 = scalar_select %p2738, %s22, 1
        %s2740 = smul.addr %s2739, 11
        %s2741 = smul.addr %s2740, 4
        %s2742 = scalar_lea.vmem %s4, %s2741
      $region68: #{block_forward.6} parent=63 // pred_fallthru
        _
      // Predicated region
      $region69: #{block_forward.6} parent=63 // pred_check
        %p2743 = pneg %p165
      $region70: #{block_forward.6} parent=63 // pred_check_branch
        %2745 = sbr.rel (%p2743) target = $region72
      $region71: #{block_forward.6} parent=63 // pred_region
        %p2746 = scmp.lt.s32.totalorder %s22, 1
        %s2747 = scalar_select %p2746, %s22, 1
        %s2748 = smul.addr %s2747, 11
        %s2749 = smul.addr %s2748, 4
        %s2750 = scalar_lea.vmem %s5, %s2749
      $region72: #{block_forward.6} parent=63 // pred_fallthru
        _
      // Predicated region
      $region73: #{block_forward.6} parent=63 // pred_check
        %p2751 = pneg %p191
      $region74: #{block_forward.6} parent=63 // pred_check_branch
        %2753 = sbr.rel (%p2751) target = $region76
      $region75: #{block_forward.6} parent=63 // pred_region
        %p2754 = scmp.lt.s32.totalorder %s22, 1
        %s2755 = scalar_select %p2754, %s22, 1
        %s2756 = scalar_lea.vmem %s6, %s2755
      $region76: #{block_forward.6} parent=63 // pred_fallthru
        _
      // Predicated region
      $region77: #{block_forward.6} parent=63 // pred_check
        %p2757 = pneg %p217
      $region78: #{block_forward.6} parent=63 // pred_check_branch
        %2759 = sbr.rel (%p2757) target = $region80
      $region79: #{block_forward.6} parent=63 // pred_region
        %p2760 = scmp.lt.s32.totalorder %s22, 1
        %s2761 = scalar_select %p2760, %s22, 1
        %s2762 = scalar_lea.vmem %s7, %s2761
      $region80: #{block_forward.6} parent=63 // pred_fallthru
        _
      // Predicated region
      $region81: #{block_forward.6} parent=63 // pred_check
        %p2763 = pneg %p243
      $region82: #{block_forward.6} parent=63 // pred_check_branch
        %2765 = sbr.rel (%p2763) target = $region84
      $region83: #{block_forward.6} parent=63 // pred_region
        %p2766 = scmp.lt.s32.totalorder %s22, 1
        %s2767 = scalar_select %p2766, %s22, 1
        %s2768 = scalar_lea.vmem %s8, %s2767
      $region84: #{block_forward.6} parent=63 // pred_fallthru
        _
      // Predicated region
      $region85: #{block_forward.6} parent=63 // pred_check
        %p2769 = pneg %p269
      $region86: #{block_forward.6} parent=63 // pred_check_branch
        %2771 = sbr.rel (%p2769) target = $region88
      $region87: #{block_forward.6} parent=63 // pred_region
        %p2772 = scmp.lt.s32.totalorder %s22, 1
        %s2773 = scalar_select %p2772, %s22, 1
        %s2774 = scalar_lea.vmem %s9, %s2773
      $region88: #{block_forward.6} parent=63 // pred_fallthru
        _
    $region64: #{block_forward.6} parent=5 // pred_fallthru
      _
  $region6: #{block_forward.6} parent=0 // loop_footer
    %s20 = sadd.s32 1, %s16
  $region7: #{block_forward.6} parent=0 // loop_footer_branch
    %15 = sbr.rel target = $region3
  $region8: #{block_forward.6} parent=0 // loop_exit
    _

</llo_original>
